<compile_context>
chip_gen: v5e
topology: v5e:2x2
jax: 0.10.0
libtpu: 0.0.40
codegen_flags: <defaults>
</compile_context>

<pallas_src>
import jax
import jax.numpy as jnp
from jax.experimental import pallas as pl
from jax.experimental.pallas import tpu as pltpu  # noqa: F401

# ---------------- configuration (small, consistent with the module) ----------------
B = 2          # batch
T = 16         # sequence length
C_IN = 2       # input_size (x, y coordinates)
CH = 16        # TCN channels (num_channels = [16]*4 for both TCNs)
K = 12         # kernel_size
NBLK = 8       # 4 temporal blocks in tcn1 + 4 in tcn2
ENC = 4        # GaussianEncoding encoded_size
OUT = 3        # output_size
DILS = (1, 2, 4, 8, 1, 2, 4, 8)   # dilation restarts for each TCN


def _n_eff(dil):
    """Number of conv taps whose causal shift (K-1-k)*dil lands inside the sequence."""
    return min(K, -(-T // dil))


# ---------------- Pallas kernel: fused forward, whole batch in one invocation -------
def seq2seq_kernel(x_ref, cw_ref, cb_ref, dw_ref, db_ref, encb_ref, lw_ref, lb_ref, o_ref):
    # x_ref:    (B*T, CH)            input, zero-padded from C_IN to CH channels
    # cw_ref:   (NBLK*2, CH, K*CH)   lane-dense per-conv weight slabs,
    #                                slab[conv, c_out, j*CH + c_in] = W_{k_j}[c_in, c_out]
    #                                (effective taps packed first, unused tail is zero)
    # cb_ref:   (NBLK*2, CH)         conv biases
    # dw_ref:   (CH, CH)             1x1 downsample (block-0 residual), unused rows zeroed
    # db_ref:   (1, CH)
    # encb_ref: (CH, ENC)            Gaussian encoding matrix (transposed)
    # lw_ref:   (2*ENC, OUT), lb_ref: (1, OUT)
    # o_ref:    (B*T, OUT)
    rows = x_ref.shape[0]
    # hoisted once: row index within each length-T sequence (JAX does not CSE iota)
    rowmod = jax.lax.broadcasted_iota(jnp.int32, (rows, CH), 0) % T

    def shift_down(v, s):
        # per-sequence causal shift: out[b*T + t] = v[b*T + t - s] for t >= s, else 0.
        # Roll of the whole (B*T, CH) slab may wrap across the batch boundary, but those
        # rows have (t % T) < s and are masked to zero.
        if s == 0:
            return v
        return jnp.where(rowmod >= s, jnp.roll(v, s, axis=0), 0.0)

    def conv_apply(v, conv_idx, dil):
        # dilated causal conv1d == one im2col matmul over the effective taps
        n = _n_eff(dil)
        stack = None
        for j in range(n):
            piece = shift_down(v, (n - 1 - j) * dil)              # (B*T, CH)
            stack = piece if stack is None else jnp.concatenate([stack, piece], axis=1)
        w = cw_ref[conv_idx][:, : n * CH]                         # (CH_out, n*CH_in)
        out = jax.lax.dot_general(stack, w, (((1,), (1,)), ((), ())),
                                  preferred_element_type=jnp.float32)
        return out + cb_ref[conv_idx:conv_idx + 1, :]             # (B*T, CH)

    h = x_ref[...]
    for blk in range(NBLK):
        dil = DILS[blk]
        if blk == 0:
            # in_channels != out_channels -> 1x1 downsample on the residual path
            res = jnp.dot(h, dw_ref[...], preferred_element_type=jnp.float32) + db_ref[...]
        else:
            res = h
        out = jnp.tanh(conv_apply(h, blk * 2 + 0, dil))
        out = jnp.tanh(conv_apply(out, blk * 2 + 1, dil))
        h = jnp.tanh(out + res)

    # rff GaussianEncoding: v = 2*pi * h @ B^T ; features = [cos(v), sin(v)]
    v = (2.0 * jnp.pi) * jnp.dot(h, encb_ref[...], preferred_element_type=jnp.float32)
    feats = jnp.concatenate([jnp.cos(v), jnp.sin(v)], axis=1)     # (B*T, 2*ENC)
    out = jnp.dot(feats, lw_ref[...], preferred_element_type=jnp.float32) + lb_ref[...]
    o_ref[...] = out.astype(o_ref.dtype)                          # single (B*T, OUT) store


# ---------------- wrapper: weight packing + pallas_call -----------------------------
def pack_conv_weights(conv_w):
    # conv_w: (NBLK, 2, K, CH_in, CH_out) -> (NBLK*2, CH_out, K*CH_in), lane-dense,
    # effective taps packed first (taps whose shift >= T only ever touch zero padding).
    slabs = jnp.zeros((NBLK * 2, CH, K * CH), jnp.float32)
    for blk in range(NBLK):
        n = _n_eff(DILS[blk])
        for ci in range(2):
            idx = blk * 2 + ci
            for j in range(n):
                k = K - n + j
                slabs = slabs.at[idx, :, j * CH:(j + 1) * CH].set(conv_w[blk, ci, k].T)
    return slabs


def seq2seq_forward(x, conv_w, conv_b, down_w, down_b, enc_bt, lin_w, lin_b):
    b, t, c_in = x.shape
    assert (t, c_in) == (T, C_IN)
    # zero-pad input channels to CH; the extra weight rows are zero -> identical math
    xpad = jnp.pad(x, ((0, 0), (0, 0), (0, CH - c_in))).astype(jnp.float32)
    x_flat = xpad.reshape(b * T, CH)
    cw_packed = pack_conv_weights(conv_w.astype(jnp.float32))

    out_flat = pl.pallas_call(
        seq2seq_kernel,
        out_shape=jax.ShapeDtypeStruct((b * T, OUT), jnp.float32),
        # no grid: single invocation, whole-array VMEM blocks, no double-buffering
    )(x_flat, cw_packed, conv_b, down_w, down_b, enc_bt, lin_w, lin_b)
    return out_flat.reshape(b, T, OUT)


# ---------------- pure-JAX reference (for a sanity check) ---------------------------
def reference_forward(x, conv_w, conv_b, down_w, down_b, enc_bt, lin_w, lin_b):
    hi = jax.lax.Precision.HIGHEST
    xpad = jnp.pad(x, ((0, 0), (0, 0), (0, CH - x.shape[-1]))).astype(jnp.float32)
    h = xpad

    def cconv(v, blk, ci, dil):
        acc = jnp.zeros((v.shape[0], T, CH), jnp.float32)
        for k in range(K):
            s = (K - 1 - k) * dil
            if s >= T:
                continue
            vs = jnp.pad(v, ((0, 0), (s, 0), (0, 0)))[:, :T, :]
            acc = acc + jnp.einsum('btc,cd->btd', vs, conv_w[blk, ci, k], precision=hi)
        return acc + conv_b[blk * 2 + ci][None, None, :]

    for blk in range(NBLK):
        dil = DILS[blk]
        if blk == 0:
            res = jnp.einsum('btc,cd->btd', h, down_w, precision=hi) + down_b[None]
        else:
            res = h
        out = jnp.tanh(cconv(h, blk, 0, dil))
        out = jnp.tanh(cconv(out, blk, 1, dil))
        h = jnp.tanh(out + res)

    v = 2.0 * jnp.pi * jnp.einsum('btc,ce->bte', h, enc_bt, precision=hi)
    feats = jnp.concatenate([jnp.cos(v), jnp.sin(v)], axis=-1)
    return jnp.einsum('bte,eo->bto', feats, lin_w, precision=hi) + lin_b[None]


# ---------------- deterministic parameter construction ------------------------------
def make_params():
    keys = jax.random.split(jax.random.PRNGKey(0), 8)
    conv_w = 0.1 * jax.random.normal(keys[0], (NBLK, 2, K, CH, CH), jnp.float32)
    # block 0 / conv0 really has in_channels = C_IN: zero the nonexistent input rows
    conv_w = conv_w.at[0, 0, :, C_IN:, :].set(0.0)
    conv_b = 0.1 * jax.random.normal(keys[1], (NBLK * 2, CH), jnp.float32)
    down_w = 0.1 * jax.random.normal(keys[2], (CH, CH), jnp.float32)
    down_w = down_w.at[C_IN:, :].set(0.0)            # 1x1 conv really maps C_IN -> CH
    down_b = 0.1 * jax.random.normal(keys[3], (1, CH), jnp.float32)
    enc_bt = 0.07 * jax.random.normal(keys[4], (CH, ENC), jnp.float32)   # sigma = 0.07
    lin_w = 0.1 * jax.random.normal(keys[5], (2 * ENC, OUT), jnp.float32)  # normal_(0, 0.1)
    lin_b = 0.1 * jax.random.normal(keys[6], (1, OUT), jnp.float32)
    return conv_w, conv_b, down_w, down_b, enc_bt, lin_w, lin_b


if __name__ == "__main__":
    params = make_params()
    x = jax.random.normal(jax.random.PRNGKey(0), (B, T, C_IN), jnp.float32)

    out = seq2seq_forward(x, *params)
    out = jax.block_until_ready(out)
    assert out.shape == (B, T, OUT), out.shape

    ref = reference_forward(x, *params)
    # f32 vs the module's f64: tolerance documents the expected precision gap.
    assert jnp.allclose(out, ref, atol=1e-2, rtol=1e-2), (
        float(jnp.max(jnp.abs(out - ref))))

    print("KERNEL_OK")
</pallas_src>

<mosaic_0001>
module attributes {stable_mosaic.version = 11 : i64} {
  func.func @seq2seq_kernel(%arg0: memref<32x16xf32, #tpu.memory_space<vmem>>, %arg1: memref<16x16x192xf32, #tpu.memory_space<vmem>>, %arg2: memref<16x16xf32, #tpu.memory_space<vmem>>, %arg3: memref<16x16xf32, #tpu.memory_space<vmem>>, %arg4: memref<1x16xf32, #tpu.memory_space<vmem>>, %arg5: memref<16x4xf32, #tpu.memory_space<vmem>>, %arg6: memref<8x3xf32, #tpu.memory_space<vmem>>, %arg7: memref<1x3xf32, #tpu.memory_space<vmem>>, %arg8: memref<32x3xf32, #tpu.memory_space<vmem>>) attributes {dimension_semantics = [], scalar_prefetch = 0 : i64, scratch_operands = 0 : i64, tpu.core_type = #tpu.core_type<tc>} {
    %0 = tpu.iota {dimensions = array<i32: 0>} : vector<32x16xi32>
    %c16_i32 = arith.constant 16 : i32
    %c0_i32 = arith.constant 0 : i32
    %1 = arith.cmpi eq, %c16_i32, %c0_i32 : i32
    %c1_i32 = arith.constant 1 : i32
    %2 = arith.select %1, %c1_i32, %c16_i32 : i32
    %3 = vector.broadcast %2 : i32 to vector<32x16xi32>
    %4 = arith.remsi %0, %3 : vector<32x16xi32>
    %c0_i32_0 = arith.constant 0 : i32
    %5 = vector.broadcast %c0_i32_0 : i32 to vector<32x16xi32>
    %6 = arith.cmpi ne, %4, %5 : vector<32x16xi32>
    %c0_i32_1 = arith.constant 0 : i32
    %7 = vector.broadcast %c0_i32_1 : i32 to vector<32x16xi32>
    %8 = arith.cmpi slt, %4, %7 : vector<32x16xi32>
    %c0_i32_2 = arith.constant 0 : i32
    %9 = arith.cmpi slt, %2, %c0_i32_2 : i32
    %10 = vector.broadcast %9 : i1 to vector<32x16xi1>
    %11 = vector.broadcast %10 : vector<32x16xi1> to vector<32x16xi1>
    %12 = arith.xori %8, %11 : vector<32x16xi1>
    %13 = arith.andi %12, %6 : vector<32x16xi1>
    %14 = vector.broadcast %2 : i32 to vector<32x16xi32>
    %15 = arith.addi %4, %14 : vector<32x16xi32>
    %16 = arith.select %13, %15, %4 : vector<32x16xi1>, vector<32x16xi32>
    %c0 = arith.constant 0 : index
    %c0_3 = arith.constant 0 : index
    %17 = vector.load %arg0[%c0, %c0_3] : memref<32x16xf32, #tpu.memory_space<vmem>>, vector<32x16xf32>
    %c0_4 = arith.constant 0 : index
    %c0_5 = arith.constant 0 : index
    %18 = vector.load %arg3[%c0_4, %c0_5] : memref<16x16xf32, #tpu.memory_space<vmem>>, vector<16x16xf32>
    %cst = arith.constant dense<0.000000e+00> : vector<32x16xf32>
    %19 = tpu.matmul %17, %18, %cst {dimension_numbers = #tpu.dot_dimension_numbers<[1], [0], [0], [1], [0, 0, 1, 1], [], []>} : vector<32x16xf32>, vector<16x16xf32>, vector<32x16xf32> -> vector<32x16xf32>
    %c0_6 = arith.constant 0 : index
    %c0_7 = arith.constant 0 : index
    %20 = vector.load %arg4[%c0_6, %c0_7] : memref<1x16xf32, #tpu.memory_space<vmem>>, vector<1x16xf32>
    %21 = vector.broadcast %20 : vector<1x16xf32> to vector<32x16xf32>
    %22 = arith.addf %19, %21 : vector<32x16xf32>
    %c11_i32 = arith.constant 11 : i32
    %23 = vector.broadcast %c11_i32 : i32 to vector<32x16xi32>
    %24 = arith.cmpi sge, %16, %23 : vector<32x16xi32>
    %25 = vector.extract_strided_slice %17 {offsets = [21, 0], sizes = [11, 16], strides = [1, 1]} : vector<32x16xf32> to vector<11x16xf32>
    %26 = vector.extract_strided_slice %17 {offsets = [0, 0], sizes = [21, 16], strides = [1, 1]} : vector<32x16xf32> to vector<21x16xf32>
    %27 = tpu.concatenate %25, %26 in 0 : vector<11x16xf32>, vector<21x16xf32> -> vector<32x16xf32>
    %cst_8 = arith.constant 0.000000e+00 : f32
    %28 = vector.broadcast %cst_8 : f32 to vector<32x16xf32>
    %29 = arith.select %24, %27, %28 : vector<32x16xi1>, vector<32x16xf32>
    %c10_i32 = arith.constant 10 : i32
    %30 = vector.broadcast %c10_i32 : i32 to vector<32x16xi32>
    %31 = arith.cmpi sge, %16, %30 : vector<32x16xi32>
    %32 = vector.extract_strided_slice %17 {offsets = [22, 0], sizes = [10, 16], strides = [1, 1]} : vector<32x16xf32> to vector<10x16xf32>
    %33 = vector.extract_strided_slice %17 {offsets = [0, 0], sizes = [22, 16], strides = [1, 1]} : vector<32x16xf32> to vector<22x16xf32>
    %34 = tpu.concatenate %32, %33 in 0 : vector<10x16xf32>, vector<22x16xf32> -> vector<32x16xf32>
    %cst_9 = arith.constant 0.000000e+00 : f32
    %35 = vector.broadcast %cst_9 : f32 to vector<32x16xf32>
    %36 = arith.select %31, %34, %35 : vector<32x16xi1>, vector<32x16xf32>
    %37 = tpu.concatenate %29, %36 in 1 : vector<32x16xf32>, vector<32x16xf32> -> vector<32x32xf32>
    %c9_i32 = arith.constant 9 : i32
    %38 = vector.broadcast %c9_i32 : i32 to vector<32x16xi32>
    %39 = arith.cmpi sge, %16, %38 : vector<32x16xi32>
    %40 = vector.extract_strided_slice %17 {offsets = [23, 0], sizes = [9, 16], strides = [1, 1]} : vector<32x16xf32> to vector<9x16xf32>
    %41 = vector.extract_strided_slice %17 {offsets = [0, 0], sizes = [23, 16], strides = [1, 1]} : vector<32x16xf32> to vector<23x16xf32>
    %42 = tpu.concatenate %40, %41 in 0 : vector<9x16xf32>, vector<23x16xf32> -> vector<32x16xf32>
    %cst_10 = arith.constant 0.000000e+00 : f32
    %43 = vector.broadcast %cst_10 : f32 to vector<32x16xf32>
    %44 = arith.select %39, %42, %43 : vector<32x16xi1>, vector<32x16xf32>
    %45 = tpu.concatenate %37, %44 in 1 : vector<32x32xf32>, vector<32x16xf32> -> vector<32x48xf32>
    %c8_i32 = arith.constant 8 : i32
    %46 = vector.broadcast %c8_i32 : i32 to vector<32x16xi32>
    %47 = arith.cmpi sge, %16, %46 : vector<32x16xi32>
    %48 = vector.extract_strided_slice %17 {offsets = [24, 0], sizes = [8, 16], strides = [1, 1]} : vector<32x16xf32> to vector<8x16xf32>
    %49 = vector.extract_strided_slice %17 {offsets = [0, 0], sizes = [24, 16], strides = [1, 1]} : vector<32x16xf32> to vector<24x16xf32>
    %50 = tpu.concatenate %48, %49 in 0 : vector<8x16xf32>, vector<24x16xf32> -> vector<32x16xf32>
    %cst_11 = arith.constant 0.000000e+00 : f32
    %51 = vector.broadcast %cst_11 : f32 to vector<32x16xf32>
    %52 = arith.select %47, %50, %51 : vector<32x16xi1>, vector<32x16xf32>
    %53 = tpu.concatenate %45, %52 in 1 : vector<32x48xf32>, vector<32x16xf32> -> vector<32x64xf32>
    %c7_i32 = arith.constant 7 : i32
    %54 = vector.broadcast %c7_i32 : i32 to vector<32x16xi32>
    %55 = arith.cmpi sge, %16, %54 : vector<32x16xi32>
    %56 = vector.extract_strided_slice %17 {offsets = [25, 0], sizes = [7, 16], strides = [1, 1]} : vector<32x16xf32> to vector<7x16xf32>
    %57 = vector.extract_strided_slice %17 {offsets = [0, 0], sizes = [25, 16], strides = [1, 1]} : vector<32x16xf32> to vector<25x16xf32>
    %58 = tpu.concatenate %56, %57 in 0 : vector<7x16xf32>, vector<25x16xf32> -> vector<32x16xf32>
    %cst_12 = arith.constant 0.000000e+00 : f32
    %59 = vector.broadcast %cst_12 : f32 to vector<32x16xf32>
    %60 = arith.select %55, %58, %59 : vector<32x16xi1>, vector<32x16xf32>
    %61 = tpu.concatenate %53, %60 in 1 : vector<32x64xf32>, vector<32x16xf32> -> vector<32x80xf32>
    %c6_i32 = arith.constant 6 : i32
    %62 = vector.broadcast %c6_i32 : i32 to vector<32x16xi32>
    %63 = arith.cmpi sge, %16, %62 : vector<32x16xi32>
    %64 = vector.extract_strided_slice %17 {offsets = [26, 0], sizes = [6, 16], strides = [1, 1]} : vector<32x16xf32> to vector<6x16xf32>
    %65 = vector.extract_strided_slice %17 {offsets = [0, 0], sizes = [26, 16], strides = [1, 1]} : vector<32x16xf32> to vector<26x16xf32>
    %66 = tpu.concatenate %64, %65 in 0 : vector<6x16xf32>, vector<26x16xf32> -> vector<32x16xf32>
    %cst_13 = arith.constant 0.000000e+00 : f32
    %67 = vector.broadcast %cst_13 : f32 to vector<32x16xf32>
    %68 = arith.select %63, %66, %67 : vector<32x16xi1>, vector<32x16xf32>
    %69 = tpu.concatenate %61, %68 in 1 : vector<32x80xf32>, vector<32x16xf32> -> vector<32x96xf32>
    %c5_i32 = arith.constant 5 : i32
    %70 = vector.broadcast %c5_i32 : i32 to vector<32x16xi32>
    %71 = arith.cmpi sge, %16, %70 : vector<32x16xi32>
    %72 = vector.extract_strided_slice %17 {offsets = [27, 0], sizes = [5, 16], strides = [1, 1]} : vector<32x16xf32> to vector<5x16xf32>
    %73 = vector.extract_strided_slice %17 {offsets = [0, 0], sizes = [27, 16], strides = [1, 1]} : vector<32x16xf32> to vector<27x16xf32>
    %74 = tpu.concatenate %72, %73 in 0 : vector<5x16xf32>, vector<27x16xf32> -> vector<32x16xf32>
    %cst_14 = arith.constant 0.000000e+00 : f32
    %75 = vector.broadcast %cst_14 : f32 to vector<32x16xf32>
    %76 = arith.select %71, %74, %75 : vector<32x16xi1>, vector<32x16xf32>
    %77 = tpu.concatenate %69, %76 in 1 : vector<32x96xf32>, vector<32x16xf32> -> vector<32x112xf32>
    %c4_i32 = arith.constant 4 : i32
    %78 = vector.broadcast %c4_i32 : i32 to vector<32x16xi32>
    %79 = arith.cmpi sge, %16, %78 : vector<32x16xi32>
    %80 = vector.extract_strided_slice %17 {offsets = [28, 0], sizes = [4, 16], strides = [1, 1]} : vector<32x16xf32> to vector<4x16xf32>
    %81 = vector.extract_strided_slice %17 {offsets = [0, 0], sizes = [28, 16], strides = [1, 1]} : vector<32x16xf32> to vector<28x16xf32>
    %82 = tpu.concatenate %80, %81 in 0 : vector<4x16xf32>, vector<28x16xf32> -> vector<32x16xf32>
    %cst_15 = arith.constant 0.000000e+00 : f32
    %83 = vector.broadcast %cst_15 : f32 to vector<32x16xf32>
    %84 = arith.select %79, %82, %83 : vector<32x16xi1>, vector<32x16xf32>
    %85 = tpu.concatenate %77, %84 in 1 : vector<32x112xf32>, vector<32x16xf32> -> vector<32x128xf32>
    %c3_i32 = arith.constant 3 : i32
    %86 = vector.broadcast %c3_i32 : i32 to vector<32x16xi32>
    %87 = arith.cmpi sge, %16, %86 : vector<32x16xi32>
    %88 = vector.extract_strided_slice %17 {offsets = [29, 0], sizes = [3, 16], strides = [1, 1]} : vector<32x16xf32> to vector<3x16xf32>
    %89 = vector.extract_strided_slice %17 {offsets = [0, 0], sizes = [29, 16], strides = [1, 1]} : vector<32x16xf32> to vector<29x16xf32>
    %90 = tpu.concatenate %88, %89 in 0 : vector<3x16xf32>, vector<29x16xf32> -> vector<32x16xf32>
    %cst_16 = arith.constant 0.000000e+00 : f32
    %91 = vector.broadcast %cst_16 : f32 to vector<32x16xf32>
    %92 = arith.select %87, %90, %91 : vector<32x16xi1>, vector<32x16xf32>
    %93 = tpu.concatenate %85, %92 in 1 : vector<32x128xf32>, vector<32x16xf32> -> vector<32x144xf32>
    %c2_i32 = arith.constant 2 : i32
    %94 = vector.broadcast %c2_i32 : i32 to vector<32x16xi32>
    %95 = arith.cmpi sge, %16, %94 : vector<32x16xi32>
    %96 = vector.extract_strided_slice %17 {offsets = [30, 0], sizes = [2, 16], strides = [1, 1]} : vector<32x16xf32> to vector<2x16xf32>
    %97 = vector.extract_strided_slice %17 {offsets = [0, 0], sizes = [30, 16], strides = [1, 1]} : vector<32x16xf32> to vector<30x16xf32>
    %98 = tpu.concatenate %96, %97 in 0 : vector<2x16xf32>, vector<30x16xf32> -> vector<32x16xf32>
    %cst_17 = arith.constant 0.000000e+00 : f32
    %99 = vector.broadcast %cst_17 : f32 to vector<32x16xf32>
    %100 = arith.select %95, %98, %99 : vector<32x16xi1>, vector<32x16xf32>
    %101 = tpu.concatenate %93, %100 in 1 : vector<32x144xf32>, vector<32x16xf32> -> vector<32x160xf32>
    %c1_i32_18 = arith.constant 1 : i32
    %102 = vector.broadcast %c1_i32_18 : i32 to vector<32x16xi32>
    %103 = arith.cmpi sge, %16, %102 : vector<32x16xi32>
    %104 = vector.extract_strided_slice %17 {offsets = [31, 0], sizes = [1, 16], strides = [1, 1]} : vector<32x16xf32> to vector<1x16xf32>
    %105 = vector.extract_strided_slice %17 {offsets = [0, 0], sizes = [31, 16], strides = [1, 1]} : vector<32x16xf32> to vector<31x16xf32>
    %106 = tpu.concatenate %104, %105 in 0 : vector<1x16xf32>, vector<31x16xf32> -> vector<32x16xf32>
    %cst_19 = arith.constant 0.000000e+00 : f32
    %107 = vector.broadcast %cst_19 : f32 to vector<32x16xf32>
    %108 = arith.select %103, %106, %107 : vector<32x16xi1>, vector<32x16xf32>
    %109 = tpu.concatenate %101, %108 in 1 : vector<32x160xf32>, vector<32x16xf32> -> vector<32x176xf32>
    %110 = tpu.concatenate %109, %17 in 1 : vector<32x176xf32>, vector<32x16xf32> -> vector<32x192xf32>
    %c0_20 = arith.constant 0 : index
    %c0_21 = arith.constant 0 : index
    %c0_22 = arith.constant 0 : index
    %111 = vector.load %arg1[%c0_20, %c0_21, %c0_22] : memref<16x16x192xf32, #tpu.memory_space<vmem>>, vector<1x16x192xf32>
    %112 = vector.shape_cast %111 : vector<1x16x192xf32> to vector<16x192xf32>
    %cst_23 = arith.constant dense<0.000000e+00> : vector<32x16xf32>
    %113 = tpu.matmul %110, %112, %cst_23 {dimension_numbers = #tpu.dot_dimension_numbers<[1], [1], [0], [0], [0, 0, 1, 0], [], []>} : vector<32x192xf32>, vector<16x192xf32>, vector<32x16xf32> -> vector<32x16xf32>
    %c0_24 = arith.constant 0 : index
    %c0_25 = arith.constant 0 : index
    %114 = vector.load %arg2[%c0_24, %c0_25] : memref<16x16xf32, #tpu.memory_space<vmem>>, vector<1x16xf32>
    %115 = vector.broadcast %114 : vector<1x16xf32> to vector<32x16xf32>
    %116 = arith.addf %113, %115 : vector<32x16xf32>
    %117 = math.tanh %116 : vector<32x16xf32>
    %c11_i32_26 = arith.constant 11 : i32
    %118 = vector.broadcast %c11_i32_26 : i32 to vector<32x16xi32>
    %119 = arith.cmpi sge, %16, %118 : vector<32x16xi32>
    %120 = vector.extract_strided_slice %117 {offsets = [21, 0], sizes = [11, 16], strides = [1, 1]} : vector<32x16xf32> to vector<11x16xf32>
    %121 = vector.extract_strided_slice %117 {offsets = [0, 0], sizes = [21, 16], strides = [1, 1]} : vector<32x16xf32> to vector<21x16xf32>
    %122 = tpu.concatenate %120, %121 in 0 : vector<11x16xf32>, vector<21x16xf32> -> vector<32x16xf32>
    %cst_27 = arith.constant 0.000000e+00 : f32
    %123 = vector.broadcast %cst_27 : f32 to vector<32x16xf32>
    %124 = arith.select %119, %122, %123 : vector<32x16xi1>, vector<32x16xf32>
    %c10_i32_28 = arith.constant 10 : i32
    %125 = vector.broadcast %c10_i32_28 : i32 to vector<32x16xi32>
    %126 = arith.cmpi sge, %16, %125 : vector<32x16xi32>
    %127 = vector.extract_strided_slice %117 {offsets = [22, 0], sizes = [10, 16], strides = [1, 1]} : vector<32x16xf32> to vector<10x16xf32>
    %128 = vector.extract_strided_slice %117 {offsets = [0, 0], sizes = [22, 16], strides = [1, 1]} : vector<32x16xf32> to vector<22x16xf32>
    %129 = tpu.concatenate %127, %128 in 0 : vector<10x16xf32>, vector<22x16xf32> -> vector<32x16xf32>
    %cst_29 = arith.constant 0.000000e+00 : f32
    %130 = vector.broadcast %cst_29 : f32 to vector<32x16xf32>
    %131 = arith.select %126, %129, %130 : vector<32x16xi1>, vector<32x16xf32>
    %132 = tpu.concatenate %124, %131 in 1 : vector<32x16xf32>, vector<32x16xf32> -> vector<32x32xf32>
    %c9_i32_30 = arith.constant 9 : i32
    %133 = vector.broadcast %c9_i32_30 : i32 to vector<32x16xi32>
    %134 = arith.cmpi sge, %16, %133 : vector<32x16xi32>
    %135 = vector.extract_strided_slice %117 {offsets = [23, 0], sizes = [9, 16], strides = [1, 1]} : vector<32x16xf32> to vector<9x16xf32>
    %136 = vector.extract_strided_slice %117 {offsets = [0, 0], sizes = [23, 16], strides = [1, 1]} : vector<32x16xf32> to vector<23x16xf32>
    %137 = tpu.concatenate %135, %136 in 0 : vector<9x16xf32>, vector<23x16xf32> -> vector<32x16xf32>
    %cst_31 = arith.constant 0.000000e+00 : f32
    %138 = vector.broadcast %cst_31 : f32 to vector<32x16xf32>
    %139 = arith.select %134, %137, %138 : vector<32x16xi1>, vector<32x16xf32>
    %140 = tpu.concatenate %132, %139 in 1 : vector<32x32xf32>, vector<32x16xf32> -> vector<32x48xf32>
    %c8_i32_32 = arith.constant 8 : i32
    %141 = vector.broadcast %c8_i32_32 : i32 to vector<32x16xi32>
    %142 = arith.cmpi sge, %16, %141 : vector<32x16xi32>
    %143 = vector.extract_strided_slice %117 {offsets = [24, 0], sizes = [8, 16], strides = [1, 1]} : vector<32x16xf32> to vector<8x16xf32>
    %144 = vector.extract_strided_slice %117 {offsets = [0, 0], sizes = [24, 16], strides = [1, 1]} : vector<32x16xf32> to vector<24x16xf32>
    %145 = tpu.concatenate %143, %144 in 0 : vector<8x16xf32>, vector<24x16xf32> -> vector<32x16xf32>
    %cst_33 = arith.constant 0.000000e+00 : f32
    %146 = vector.broadcast %cst_33 : f32 to vector<32x16xf32>
    %147 = arith.select %142, %145, %146 : vector<32x16xi1>, vector<32x16xf32>
    %148 = tpu.concatenate %140, %147 in 1 : vector<32x48xf32>, vector<32x16xf32> -> vector<32x64xf32>
    %c7_i32_34 = arith.constant 7 : i32
    %149 = vector.broadcast %c7_i32_34 : i32 to vector<32x16xi32>
    %150 = arith.cmpi sge, %16, %149 : vector<32x16xi32>
    %151 = vector.extract_strided_slice %117 {offsets = [25, 0], sizes = [7, 16], strides = [1, 1]} : vector<32x16xf32> to vector<7x16xf32>
    %152 = vector.extract_strided_slice %117 {offsets = [0, 0], sizes = [25, 16], strides = [1, 1]} : vector<32x16xf32> to vector<25x16xf32>
    %153 = tpu.concatenate %151, %152 in 0 : vector<7x16xf32>, vector<25x16xf32> -> vector<32x16xf32>
    %cst_35 = arith.constant 0.000000e+00 : f32
    %154 = vector.broadcast %cst_35 : f32 to vector<32x16xf32>
    %155 = arith.select %150, %153, %154 : vector<32x16xi1>, vector<32x16xf32>
    %156 = tpu.concatenate %148, %155 in 1 : vector<32x64xf32>, vector<32x16xf32> -> vector<32x80xf32>
    %c6_i32_36 = arith.constant 6 : i32
    %157 = vector.broadcast %c6_i32_36 : i32 to vector<32x16xi32>
    %158 = arith.cmpi sge, %16, %157 : vector<32x16xi32>
    %159 = vector.extract_strided_slice %117 {offsets = [26, 0], sizes = [6, 16], strides = [1, 1]} : vector<32x16xf32> to vector<6x16xf32>
    %160 = vector.extract_strided_slice %117 {offsets = [0, 0], sizes = [26, 16], strides = [1, 1]} : vector<32x16xf32> to vector<26x16xf32>
    %161 = tpu.concatenate %159, %160 in 0 : vector<6x16xf32>, vector<26x16xf32> -> vector<32x16xf32>
    %cst_37 = arith.constant 0.000000e+00 : f32
    %162 = vector.broadcast %cst_37 : f32 to vector<32x16xf32>
    %163 = arith.select %158, %161, %162 : vector<32x16xi1>, vector<32x16xf32>
    %164 = tpu.concatenate %156, %163 in 1 : vector<32x80xf32>, vector<32x16xf32> -> vector<32x96xf32>
    %c5_i32_38 = arith.constant 5 : i32
    %165 = vector.broadcast %c5_i32_38 : i32 to vector<32x16xi32>
    %166 = arith.cmpi sge, %16, %165 : vector<32x16xi32>
    %167 = vector.extract_strided_slice %117 {offsets = [27, 0], sizes = [5, 16], strides = [1, 1]} : vector<32x16xf32> to vector<5x16xf32>
    %168 = vector.extract_strided_slice %117 {offsets = [0, 0], sizes = [27, 16], strides = [1, 1]} : vector<32x16xf32> to vector<27x16xf32>
    %169 = tpu.concatenate %167, %168 in 0 : vector<5x16xf32>, vector<27x16xf32> -> vector<32x16xf32>
    %cst_39 = arith.constant 0.000000e+00 : f32
    %170 = vector.broadcast %cst_39 : f32 to vector<32x16xf32>
    %171 = arith.select %166, %169, %170 : vector<32x16xi1>, vector<32x16xf32>
    %172 = tpu.concatenate %164, %171 in 1 : vector<32x96xf32>, vector<32x16xf32> -> vector<32x112xf32>
    %c4_i32_40 = arith.constant 4 : i32
    %173 = vector.broadcast %c4_i32_40 : i32 to vector<32x16xi32>
    %174 = arith.cmpi sge, %16, %173 : vector<32x16xi32>
    %175 = vector.extract_strided_slice %117 {offsets = [28, 0], sizes = [4, 16], strides = [1, 1]} : vector<32x16xf32> to vector<4x16xf32>
    %176 = vector.extract_strided_slice %117 {offsets = [0, 0], sizes = [28, 16], strides = [1, 1]} : vector<32x16xf32> to vector<28x16xf32>
    %177 = tpu.concatenate %175, %176 in 0 : vector<4x16xf32>, vector<28x16xf32> -> vector<32x16xf32>
    %cst_41 = arith.constant 0.000000e+00 : f32
    %178 = vector.broadcast %cst_41 : f32 to vector<32x16xf32>
    %179 = arith.select %174, %177, %178 : vector<32x16xi1>, vector<32x16xf32>
    %180 = tpu.concatenate %172, %179 in 1 : vector<32x112xf32>, vector<32x16xf32> -> vector<32x128xf32>
    %c3_i32_42 = arith.constant 3 : i32
    %181 = vector.broadcast %c3_i32_42 : i32 to vector<32x16xi32>
    %182 = arith.cmpi sge, %16, %181 : vector<32x16xi32>
    %183 = vector.extract_strided_slice %117 {offsets = [29, 0], sizes = [3, 16], strides = [1, 1]} : vector<32x16xf32> to vector<3x16xf32>
    %184 = vector.extract_strided_slice %117 {offsets = [0, 0], sizes = [29, 16], strides = [1, 1]} : vector<32x16xf32> to vector<29x16xf32>
    %185 = tpu.concatenate %183, %184 in 0 : vector<3x16xf32>, vector<29x16xf32> -> vector<32x16xf32>
    %cst_43 = arith.constant 0.000000e+00 : f32
    %186 = vector.broadcast %cst_43 : f32 to vector<32x16xf32>
    %187 = arith.select %182, %185, %186 : vector<32x16xi1>, vector<32x16xf32>
    %188 = tpu.concatenate %180, %187 in 1 : vector<32x128xf32>, vector<32x16xf32> -> vector<32x144xf32>
    %c2_i32_44 = arith.constant 2 : i32
    %189 = vector.broadcast %c2_i32_44 : i32 to vector<32x16xi32>
    %190 = arith.cmpi sge, %16, %189 : vector<32x16xi32>
    %191 = vector.extract_strided_slice %117 {offsets = [30, 0], sizes = [2, 16], strides = [1, 1]} : vector<32x16xf32> to vector<2x16xf32>
    %192 = vector.extract_strided_slice %117 {offsets = [0, 0], sizes = [30, 16], strides = [1, 1]} : vector<32x16xf32> to vector<30x16xf32>
    %193 = tpu.concatenate %191, %192 in 0 : vector<2x16xf32>, vector<30x16xf32> -> vector<32x16xf32>
    %cst_45 = arith.constant 0.000000e+00 : f32
    %194 = vector.broadcast %cst_45 : f32 to vector<32x16xf32>
    %195 = arith.select %190, %193, %194 : vector<32x16xi1>, vector<32x16xf32>
    %196 = tpu.concatenate %188, %195 in 1 : vector<32x144xf32>, vector<32x16xf32> -> vector<32x160xf32>
    %c1_i32_46 = arith.constant 1 : i32
    %197 = vector.broadcast %c1_i32_46 : i32 to vector<32x16xi32>
    %198 = arith.cmpi sge, %16, %197 : vector<32x16xi32>
    %199 = vector.extract_strided_slice %117 {offsets = [31, 0], sizes = [1, 16], strides = [1, 1]} : vector<32x16xf32> to vector<1x16xf32>
    %200 = vector.extract_strided_slice %117 {offsets = [0, 0], sizes = [31, 16], strides = [1, 1]} : vector<32x16xf32> to vector<31x16xf32>
    %201 = tpu.concatenate %199, %200 in 0 : vector<1x16xf32>, vector<31x16xf32> -> vector<32x16xf32>
    %cst_47 = arith.constant 0.000000e+00 : f32
    %202 = vector.broadcast %cst_47 : f32 to vector<32x16xf32>
    %203 = arith.select %198, %201, %202 : vector<32x16xi1>, vector<32x16xf32>
    %204 = tpu.concatenate %196, %203 in 1 : vector<32x160xf32>, vector<32x16xf32> -> vector<32x176xf32>
    %205 = tpu.concatenate %204, %117 in 1 : vector<32x176xf32>, vector<32x16xf32> -> vector<32x192xf32>
    %c1 = arith.constant 1 : index
    %c0_48 = arith.constant 0 : index
    %c0_49 = arith.constant 0 : index
    %206 = vector.load %arg1[%c1, %c0_48, %c0_49] : memref<16x16x192xf32, #tpu.memory_space<vmem>>, vector<1x16x192xf32>
    %207 = vector.shape_cast %206 : vector<1x16x192xf32> to vector<16x192xf32>
    %cst_50 = arith.constant dense<0.000000e+00> : vector<32x16xf32>
    %208 = tpu.matmul %205, %207, %cst_50 {dimension_numbers = #tpu.dot_dimension_numbers<[1], [1], [0], [0], [0, 0, 1, 0], [], []>} : vector<32x192xf32>, vector<16x192xf32>, vector<32x16xf32> -> vector<32x16xf32>
    %c1_51 = arith.constant 1 : index
    %c0_52 = arith.constant 0 : index
    %209 = vector.load %arg2[%c1_51, %c0_52] : memref<16x16xf32, #tpu.memory_space<vmem>>, vector<1x16xf32>
    %210 = vector.broadcast %209 : vector<1x16xf32> to vector<32x16xf32>
    %211 = arith.addf %208, %210 : vector<32x16xf32>
    %212 = math.tanh %211 : vector<32x16xf32>
    %213 = arith.addf %212, %22 : vector<32x16xf32>
    %214 = math.tanh %213 : vector<32x16xf32>
    %c14_i32 = arith.constant 14 : i32
    %215 = vector.broadcast %c14_i32 : i32 to vector<32x16xi32>
    %216 = arith.cmpi sge, %16, %215 : vector<32x16xi32>
    %217 = vector.extract_strided_slice %214 {offsets = [18, 0], sizes = [14, 16], strides = [1, 1]} : vector<32x16xf32> to vector<14x16xf32>
    %218 = vector.extract_strided_slice %214 {offsets = [0, 0], sizes = [18, 16], strides = [1, 1]} : vector<32x16xf32> to vector<18x16xf32>
    %219 = tpu.concatenate %217, %218 in 0 : vector<14x16xf32>, vector<18x16xf32> -> vector<32x16xf32>
    %cst_53 = arith.constant 0.000000e+00 : f32
    %220 = vector.broadcast %cst_53 : f32 to vector<32x16xf32>
    %221 = arith.select %216, %219, %220 : vector<32x16xi1>, vector<32x16xf32>
    %c12_i32 = arith.constant 12 : i32
    %222 = vector.broadcast %c12_i32 : i32 to vector<32x16xi32>
    %223 = arith.cmpi sge, %16, %222 : vector<32x16xi32>
    %224 = vector.extract_strided_slice %214 {offsets = [20, 0], sizes = [12, 16], strides = [1, 1]} : vector<32x16xf32> to vector<12x16xf32>
    %225 = vector.extract_strided_slice %214 {offsets = [0, 0], sizes = [20, 16], strides = [1, 1]} : vector<32x16xf32> to vector<20x16xf32>
    %226 = tpu.concatenate %224, %225 in 0 : vector<12x16xf32>, vector<20x16xf32> -> vector<32x16xf32>
    %cst_54 = arith.constant 0.000000e+00 : f32
    %227 = vector.broadcast %cst_54 : f32 to vector<32x16xf32>
    %228 = arith.select %223, %226, %227 : vector<32x16xi1>, vector<32x16xf32>
    %229 = tpu.concatenate %221, %228 in 1 : vector<32x16xf32>, vector<32x16xf32> -> vector<32x32xf32>
    %c10_i32_55 = arith.constant 10 : i32
    %230 = vector.broadcast %c10_i32_55 : i32 to vector<32x16xi32>
    %231 = arith.cmpi sge, %16, %230 : vector<32x16xi32>
    %232 = vector.extract_strided_slice %214 {offsets = [22, 0], sizes = [10, 16], strides = [1, 1]} : vector<32x16xf32> to vector<10x16xf32>
    %233 = vector.extract_strided_slice %214 {offsets = [0, 0], sizes = [22, 16], strides = [1, 1]} : vector<32x16xf32> to vector<22x16xf32>
    %234 = tpu.concatenate %232, %233 in 0 : vector<10x16xf32>, vector<22x16xf32> -> vector<32x16xf32>
    %cst_56 = arith.constant 0.000000e+00 : f32
    %235 = vector.broadcast %cst_56 : f32 to vector<32x16xf32>
    %236 = arith.select %231, %234, %235 : vector<32x16xi1>, vector<32x16xf32>
    %237 = tpu.concatenate %229, %236 in 1 : vector<32x32xf32>, vector<32x16xf32> -> vector<32x48xf32>
    %c8_i32_57 = arith.constant 8 : i32
    %238 = vector.broadcast %c8_i32_57 : i32 to vector<32x16xi32>
    %239 = arith.cmpi sge, %16, %238 : vector<32x16xi32>
    %240 = vector.extract_strided_slice %214 {offsets = [24, 0], sizes = [8, 16], strides = [1, 1]} : vector<32x16xf32> to vector<8x16xf32>
    %241 = vector.extract_strided_slice %214 {offsets = [0, 0], sizes = [24, 16], strides = [1, 1]} : vector<32x16xf32> to vector<24x16xf32>
    %242 = tpu.concatenate %240, %241 in 0 : vector<8x16xf32>, vector<24x16xf32> -> vector<32x16xf32>
    %cst_58 = arith.constant 0.000000e+00 : f32
    %243 = vector.broadcast %cst_58 : f32 to vector<32x16xf32>
    %244 = arith.select %239, %242, %243 : vector<32x16xi1>, vector<32x16xf32>
    %245 = tpu.concatenate %237, %244 in 1 : vector<32x48xf32>, vector<32x16xf32> -> vector<32x64xf32>
    %c6_i32_59 = arith.constant 6 : i32
    %246 = vector.broadcast %c6_i32_59 : i32 to vector<32x16xi32>
    %247 = arith.cmpi sge, %16, %246 : vector<32x16xi32>
    %248 = vector.extract_strided_slice %214 {offsets = [26, 0], sizes = [6, 16], strides = [1, 1]} : vector<32x16xf32> to vector<6x16xf32>
    %249 = vector.extract_strided_slice %214 {offsets = [0, 0], sizes = [26, 16], strides = [1, 1]} : vector<32x16xf32> to vector<26x16xf32>
    %250 = tpu.concatenate %248, %249 in 0 : vector<6x16xf32>, vector<26x16xf32> -> vector<32x16xf32>
    %cst_60 = arith.constant 0.000000e+00 : f32
    %251 = vector.broadcast %cst_60 : f32 to vector<32x16xf32>
    %252 = arith.select %247, %250, %251 : vector<32x16xi1>, vector<32x16xf32>
    %253 = tpu.concatenate %245, %252 in 1 : vector<32x64xf32>, vector<32x16xf32> -> vector<32x80xf32>
    %c4_i32_61 = arith.constant 4 : i32
    %254 = vector.broadcast %c4_i32_61 : i32 to vector<32x16xi32>
    %255 = arith.cmpi sge, %16, %254 : vector<32x16xi32>
    %256 = vector.extract_strided_slice %214 {offsets = [28, 0], sizes = [4, 16], strides = [1, 1]} : vector<32x16xf32> to vector<4x16xf32>
    %257 = vector.extract_strided_slice %214 {offsets = [0, 0], sizes = [28, 16], strides = [1, 1]} : vector<32x16xf32> to vector<28x16xf32>
    %258 = tpu.concatenate %256, %257 in 0 : vector<4x16xf32>, vector<28x16xf32> -> vector<32x16xf32>
    %cst_62 = arith.constant 0.000000e+00 : f32
    %259 = vector.broadcast %cst_62 : f32 to vector<32x16xf32>
    %260 = arith.select %255, %258, %259 : vector<32x16xi1>, vector<32x16xf32>
    %261 = tpu.concatenate %253, %260 in 1 : vector<32x80xf32>, vector<32x16xf32> -> vector<32x96xf32>
    %c2_i32_63 = arith.constant 2 : i32
    %262 = vector.broadcast %c2_i32_63 : i32 to vector<32x16xi32>
    %263 = arith.cmpi sge, %16, %262 : vector<32x16xi32>
    %264 = vector.extract_strided_slice %214 {offsets = [30, 0], sizes = [2, 16], strides = [1, 1]} : vector<32x16xf32> to vector<2x16xf32>
    %265 = vector.extract_strided_slice %214 {offsets = [0, 0], sizes = [30, 16], strides = [1, 1]} : vector<32x16xf32> to vector<30x16xf32>
    %266 = tpu.concatenate %264, %265 in 0 : vector<2x16xf32>, vector<30x16xf32> -> vector<32x16xf32>
    %cst_64 = arith.constant 0.000000e+00 : f32
    %267 = vector.broadcast %cst_64 : f32 to vector<32x16xf32>
    %268 = arith.select %263, %266, %267 : vector<32x16xi1>, vector<32x16xf32>
    %269 = tpu.concatenate %261, %268 in 1 : vector<32x96xf32>, vector<32x16xf32> -> vector<32x112xf32>
    %270 = tpu.concatenate %269, %214 in 1 : vector<32x112xf32>, vector<32x16xf32> -> vector<32x128xf32>
    %c2 = arith.constant 2 : index
    %c0_65 = arith.constant 0 : index
    %c0_66 = arith.constant 0 : index
    %271 = vector.load %arg1[%c2, %c0_65, %c0_66] : memref<16x16x192xf32, #tpu.memory_space<vmem>>, vector<1x16x192xf32>
    %272 = vector.shape_cast %271 : vector<1x16x192xf32> to vector<16x192xf32>
    %273 = vector.extract_strided_slice %272 {offsets = [0, 0], sizes = [16, 128], strides = [1, 1]} : vector<16x192xf32> to vector<16x128xf32>
    %cst_67 = arith.constant dense<0.000000e+00> : vector<32x16xf32>
    %274 = tpu.matmul %270, %273, %cst_67 {dimension_numbers = #tpu.dot_dimension_numbers<[1], [1], [0], [0], [0, 0, 1, 0], [], []>} : vector<32x128xf32>, vector<16x128xf32>, vector<32x16xf32> -> vector<32x16xf32>
    %c2_68 = arith.constant 2 : index
    %c0_69 = arith.constant 0 : index
    %275 = vector.load %arg2[%c2_68, %c0_69] : memref<16x16xf32, #tpu.memory_space<vmem>>, vector<1x16xf32>
    %276 = vector.broadcast %275 : vector<1x16xf32> to vector<32x16xf32>
    %277 = arith.addf %274, %276 : vector<32x16xf32>
    %278 = math.tanh %277 : vector<32x16xf32>
    %c14_i32_70 = arith.constant 14 : i32
    %279 = vector.broadcast %c14_i32_70 : i32 to vector<32x16xi32>
    %280 = arith.cmpi sge, %16, %279 : vector<32x16xi32>
    %281 = vector.extract_strided_slice %278 {offsets = [18, 0], sizes = [14, 16], strides = [1, 1]} : vector<32x16xf32> to vector<14x16xf32>
    %282 = vector.extract_strided_slice %278 {offsets = [0, 0], sizes = [18, 16], strides = [1, 1]} : vector<32x16xf32> to vector<18x16xf32>
    %283 = tpu.concatenate %281, %282 in 0 : vector<14x16xf32>, vector<18x16xf32> -> vector<32x16xf32>
    %cst_71 = arith.constant 0.000000e+00 : f32
    %284 = vector.broadcast %cst_71 : f32 to vector<32x16xf32>
    %285 = arith.select %280, %283, %284 : vector<32x16xi1>, vector<32x16xf32>
    %c12_i32_72 = arith.constant 12 : i32
    %286 = vector.broadcast %c12_i32_72 : i32 to vector<32x16xi32>
    %287 = arith.cmpi sge, %16, %286 : vector<32x16xi32>
    %288 = vector.extract_strided_slice %278 {offsets = [20, 0], sizes = [12, 16], strides = [1, 1]} : vector<32x16xf32> to vector<12x16xf32>
    %289 = vector.extract_strided_slice %278 {offsets = [0, 0], sizes = [20, 16], strides = [1, 1]} : vector<32x16xf32> to vector<20x16xf32>
    %290 = tpu.concatenate %288, %289 in 0 : vector<12x16xf32>, vector<20x16xf32> -> vector<32x16xf32>
    %cst_73 = arith.constant 0.000000e+00 : f32
    %291 = vector.broadcast %cst_73 : f32 to vector<32x16xf32>
    %292 = arith.select %287, %290, %291 : vector<32x16xi1>, vector<32x16xf32>
    %293 = tpu.concatenate %285, %292 in 1 : vector<32x16xf32>, vector<32x16xf32> -> vector<32x32xf32>
    %c10_i32_74 = arith.constant 10 : i32
    %294 = vector.broadcast %c10_i32_74 : i32 to vector<32x16xi32>
    %295 = arith.cmpi sge, %16, %294 : vector<32x16xi32>
    %296 = vector.extract_strided_slice %278 {offsets = [22, 0], sizes = [10, 16], strides = [1, 1]} : vector<32x16xf32> to vector<10x16xf32>
    %297 = vector.extract_strided_slice %278 {offsets = [0, 0], sizes = [22, 16], strides = [1, 1]} : vector<32x16xf32> to vector<22x16xf32>
    %298 = tpu.concatenate %296, %297 in 0 : vector<10x16xf32>, vector<22x16xf32> -> vector<32x16xf32>
    %cst_75 = arith.constant 0.000000e+00 : f32
    %299 = vector.broadcast %cst_75 : f32 to vector<32x16xf32>
    %300 = arith.select %295, %298, %299 : vector<32x16xi1>, vector<32x16xf32>
    %301 = tpu.concatenate %293, %300 in 1 : vector<32x32xf32>, vector<32x16xf32> -> vector<32x48xf32>
    %c8_i32_76 = arith.constant 8 : i32
    %302 = vector.broadcast %c8_i32_76 : i32 to vector<32x16xi32>
    %303 = arith.cmpi sge, %16, %302 : vector<32x16xi32>
    %304 = vector.extract_strided_slice %278 {offsets = [24, 0], sizes = [8, 16], strides = [1, 1]} : vector<32x16xf32> to vector<8x16xf32>
    %305 = vector.extract_strided_slice %278 {offsets = [0, 0], sizes = [24, 16], strides = [1, 1]} : vector<32x16xf32> to vector<24x16xf32>
    %306 = tpu.concatenate %304, %305 in 0 : vector<8x16xf32>, vector<24x16xf32> -> vector<32x16xf32>
    %cst_77 = arith.constant 0.000000e+00 : f32
    %307 = vector.broadcast %cst_77 : f32 to vector<32x16xf32>
    %308 = arith.select %303, %306, %307 : vector<32x16xi1>, vector<32x16xf32>
    %309 = tpu.concatenate %301, %308 in 1 : vector<32x48xf32>, vector<32x16xf32> -> vector<32x64xf32>
    %c6_i32_78 = arith.constant 6 : i32
    %310 = vector.broadcast %c6_i32_78 : i32 to vector<32x16xi32>
    %311 = arith.cmpi sge, %16, %310 : vector<32x16xi32>
    %312 = vector.extract_strided_slice %278 {offsets = [26, 0], sizes = [6, 16], strides = [1, 1]} : vector<32x16xf32> to vector<6x16xf32>
    %313 = vector.extract_strided_slice %278 {offsets = [0, 0], sizes = [26, 16], strides = [1, 1]} : vector<32x16xf32> to vector<26x16xf32>
    %314 = tpu.concatenate %312, %313 in 0 : vector<6x16xf32>, vector<26x16xf32> -> vector<32x16xf32>
    %cst_79 = arith.constant 0.000000e+00 : f32
    %315 = vector.broadcast %cst_79 : f32 to vector<32x16xf32>
    %316 = arith.select %311, %314, %315 : vector<32x16xi1>, vector<32x16xf32>
    %317 = tpu.concatenate %309, %316 in 1 : vector<32x64xf32>, vector<32x16xf32> -> vector<32x80xf32>
    %c4_i32_80 = arith.constant 4 : i32
    %318 = vector.broadcast %c4_i32_80 : i32 to vector<32x16xi32>
    %319 = arith.cmpi sge, %16, %318 : vector<32x16xi32>
    %320 = vector.extract_strided_slice %278 {offsets = [28, 0], sizes = [4, 16], strides = [1, 1]} : vector<32x16xf32> to vector<4x16xf32>
    %321 = vector.extract_strided_slice %278 {offsets = [0, 0], sizes = [28, 16], strides = [1, 1]} : vector<32x16xf32> to vector<28x16xf32>
    %322 = tpu.concatenate %320, %321 in 0 : vector<4x16xf32>, vector<28x16xf32> -> vector<32x16xf32>
    %cst_81 = arith.constant 0.000000e+00 : f32
    %323 = vector.broadcast %cst_81 : f32 to vector<32x16xf32>
    %324 = arith.select %319, %322, %323 : vector<32x16xi1>, vector<32x16xf32>
    %325 = tpu.concatenate %317, %324 in 1 : vector<32x80xf32>, vector<32x16xf32> -> vector<32x96xf32>
    %c2_i32_82 = arith.constant 2 : i32
    %326 = vector.broadcast %c2_i32_82 : i32 to vector<32x16xi32>
    %327 = arith.cmpi sge, %16, %326 : vector<32x16xi32>
    %328 = vector.extract_strided_slice %278 {offsets = [30, 0], sizes = [2, 16], strides = [1, 1]} : vector<32x16xf32> to vector<2x16xf32>
    %329 = vector.extract_strided_slice %278 {offsets = [0, 0], sizes = [30, 16], strides = [1, 1]} : vector<32x16xf32> to vector<30x16xf32>
    %330 = tpu.concatenate %328, %329 in 0 : vector<2x16xf32>, vector<30x16xf32> -> vector<32x16xf32>
    %cst_83 = arith.constant 0.000000e+00 : f32
    %331 = vector.broadcast %cst_83 : f32 to vector<32x16xf32>
    %332 = arith.select %327, %330, %331 : vector<32x16xi1>, vector<32x16xf32>
    %333 = tpu.concatenate %325, %332 in 1 : vector<32x96xf32>, vector<32x16xf32> -> vector<32x112xf32>
    %334 = tpu.concatenate %333, %278 in 1 : vector<32x112xf32>, vector<32x16xf32> -> vector<32x128xf32>
    %c3 = arith.constant 3 : index
    %c0_84 = arith.constant 0 : index
    %c0_85 = arith.constant 0 : index
    %335 = vector.load %arg1[%c3, %c0_84, %c0_85] : memref<16x16x192xf32, #tpu.memory_space<vmem>>, vector<1x16x192xf32>
    %336 = vector.shape_cast %335 : vector<1x16x192xf32> to vector<16x192xf32>
    %337 = vector.extract_strided_slice %336 {offsets = [0, 0], sizes = [16, 128], strides = [1, 1]} : vector<16x192xf32> to vector<16x128xf32>
    %cst_86 = arith.constant dense<0.000000e+00> : vector<32x16xf32>
    %338 = tpu.matmul %334, %337, %cst_86 {dimension_numbers = #tpu.dot_dimension_numbers<[1], [1], [0], [0], [0, 0, 1, 0], [], []>} : vector<32x128xf32>, vector<16x128xf32>, vector<32x16xf32> -> vector<32x16xf32>
    %c3_87 = arith.constant 3 : index
    %c0_88 = arith.constant 0 : index
    %339 = vector.load %arg2[%c3_87, %c0_88] : memref<16x16xf32, #tpu.memory_space<vmem>>, vector<1x16xf32>
    %340 = vector.broadcast %339 : vector<1x16xf32> to vector<32x16xf32>
    %341 = arith.addf %338, %340 : vector<32x16xf32>
    %342 = math.tanh %341 : vector<32x16xf32>
    %343 = arith.addf %342, %214 : vector<32x16xf32>
    %344 = math.tanh %343 : vector<32x16xf32>
    %c12_i32_89 = arith.constant 12 : i32
    %345 = vector.broadcast %c12_i32_89 : i32 to vector<32x16xi32>
    %346 = arith.cmpi sge, %16, %345 : vector<32x16xi32>
    %347 = vector.extract_strided_slice %344 {offsets = [20, 0], sizes = [12, 16], strides = [1, 1]} : vector<32x16xf32> to vector<12x16xf32>
    %348 = vector.extract_strided_slice %344 {offsets = [0, 0], sizes = [20, 16], strides = [1, 1]} : vector<32x16xf32> to vector<20x16xf32>
    %349 = tpu.concatenate %347, %348 in 0 : vector<12x16xf32>, vector<20x16xf32> -> vector<32x16xf32>
    %cst_90 = arith.constant 0.000000e+00 : f32
    %350 = vector.broadcast %cst_90 : f32 to vector<32x16xf32>
    %351 = arith.select %346, %349, %350 : vector<32x16xi1>, vector<32x16xf32>
    %c8_i32_91 = arith.constant 8 : i32
    %352 = vector.broadcast %c8_i32_91 : i32 to vector<32x16xi32>
    %353 = arith.cmpi sge, %16, %352 : vector<32x16xi32>
    %354 = vector.extract_strided_slice %344 {offsets = [24, 0], sizes = [8, 16], strides = [1, 1]} : vector<32x16xf32> to vector<8x16xf32>
    %355 = vector.extract_strided_slice %344 {offsets = [0, 0], sizes = [24, 16], strides = [1, 1]} : vector<32x16xf32> to vector<24x16xf32>
    %356 = tpu.concatenate %354, %355 in 0 : vector<8x16xf32>, vector<24x16xf32> -> vector<32x16xf32>
    %cst_92 = arith.constant 0.000000e+00 : f32
    %357 = vector.broadcast %cst_92 : f32 to vector<32x16xf32>
    %358 = arith.select %353, %356, %357 : vector<32x16xi1>, vector<32x16xf32>
    %359 = tpu.concatenate %351, %358 in 1 : vector<32x16xf32>, vector<32x16xf32> -> vector<32x32xf32>
    %c4_i32_93 = arith.constant 4 : i32
    %360 = vector.broadcast %c4_i32_93 : i32 to vector<32x16xi32>
    %361 = arith.cmpi sge, %16, %360 : vector<32x16xi32>
    %362 = vector.extract_strided_slice %344 {offsets = [28, 0], sizes = [4, 16], strides = [1, 1]} : vector<32x16xf32> to vector<4x16xf32>
    %363 = vector.extract_strided_slice %344 {offsets = [0, 0], sizes = [28, 16], strides = [1, 1]} : vector<32x16xf32> to vector<28x16xf32>
    %364 = tpu.concatenate %362, %363 in 0 : vector<4x16xf32>, vector<28x16xf32> -> vector<32x16xf32>
    %cst_94 = arith.constant 0.000000e+00 : f32
    %365 = vector.broadcast %cst_94 : f32 to vector<32x16xf32>
    %366 = arith.select %361, %364, %365 : vector<32x16xi1>, vector<32x16xf32>
    %367 = tpu.concatenate %359, %366 in 1 : vector<32x32xf32>, vector<32x16xf32> -> vector<32x48xf32>
    %368 = tpu.concatenate %367, %344 in 1 : vector<32x48xf32>, vector<32x16xf32> -> vector<32x64xf32>
    %c4 = arith.constant 4 : index
    %c0_95 = arith.constant 0 : index
    %c0_96 = arith.constant 0 : index
    %369 = vector.load %arg1[%c4, %c0_95, %c0_96] : memref<16x16x192xf32, #tpu.memory_space<vmem>>, vector<1x16x192xf32>
    %370 = vector.shape_cast %369 : vector<1x16x192xf32> to vector<16x192xf32>
    %371 = vector.extract_strided_slice %370 {offsets = [0, 0], sizes = [16, 64], strides = [1, 1]} : vector<16x192xf32> to vector<16x64xf32>
    %cst_97 = arith.constant dense<0.000000e+00> : vector<32x16xf32>
    %372 = tpu.matmul %368, %371, %cst_97 {dimension_numbers = #tpu.dot_dimension_numbers<[1], [1], [0], [0], [0, 0, 1, 0], [], []>} : vector<32x64xf32>, vector<16x64xf32>, vector<32x16xf32> -> vector<32x16xf32>
    %c4_98 = arith.constant 4 : index
    %c0_99 = arith.constant 0 : index
    %373 = vector.load %arg2[%c4_98, %c0_99] : memref<16x16xf32, #tpu.memory_space<vmem>>, vector<1x16xf32>
    %374 = vector.broadcast %373 : vector<1x16xf32> to vector<32x16xf32>
    %375 = arith.addf %372, %374 : vector<32x16xf32>
    %376 = math.tanh %375 : vector<32x16xf32>
    %c12_i32_100 = arith.constant 12 : i32
    %377 = vector.broadcast %c12_i32_100 : i32 to vector<32x16xi32>
    %378 = arith.cmpi sge, %16, %377 : vector<32x16xi32>
    %379 = vector.extract_strided_slice %376 {offsets = [20, 0], sizes = [12, 16], strides = [1, 1]} : vector<32x16xf32> to vector<12x16xf32>
    %380 = vector.extract_strided_slice %376 {offsets = [0, 0], sizes = [20, 16], strides = [1, 1]} : vector<32x16xf32> to vector<20x16xf32>
    %381 = tpu.concatenate %379, %380 in 0 : vector<12x16xf32>, vector<20x16xf32> -> vector<32x16xf32>
    %cst_101 = arith.constant 0.000000e+00 : f32
    %382 = vector.broadcast %cst_101 : f32 to vector<32x16xf32>
    %383 = arith.select %378, %381, %382 : vector<32x16xi1>, vector<32x16xf32>
    %c8_i32_102 = arith.constant 8 : i32
    %384 = vector.broadcast %c8_i32_102 : i32 to vector<32x16xi32>
    %385 = arith.cmpi sge, %16, %384 : vector<32x16xi32>
    %386 = vector.extract_strided_slice %376 {offsets = [24, 0], sizes = [8, 16], strides = [1, 1]} : vector<32x16xf32> to vector<8x16xf32>
    %387 = vector.extract_strided_slice %376 {offsets = [0, 0], sizes = [24, 16], strides = [1, 1]} : vector<32x16xf32> to vector<24x16xf32>
    %388 = tpu.concatenate %386, %387 in 0 : vector<8x16xf32>, vector<24x16xf32> -> vector<32x16xf32>
    %cst_103 = arith.constant 0.000000e+00 : f32
    %389 = vector.broadcast %cst_103 : f32 to vector<32x16xf32>
    %390 = arith.select %385, %388, %389 : vector<32x16xi1>, vector<32x16xf32>
    %391 = tpu.concatenate %383, %390 in 1 : vector<32x16xf32>, vector<32x16xf32> -> vector<32x32xf32>
    %c4_i32_104 = arith.constant 4 : i32
    %392 = vector.broadcast %c4_i32_104 : i32 to vector<32x16xi32>
    %393 = arith.cmpi sge, %16, %392 : vector<32x16xi32>
    %394 = vector.extract_strided_slice %376 {offsets = [28, 0], sizes = [4, 16], strides = [1, 1]} : vector<32x16xf32> to vector<4x16xf32>
    %395 = vector.extract_strided_slice %376 {offsets = [0, 0], sizes = [28, 16], strides = [1, 1]} : vector<32x16xf32> to vector<28x16xf32>
    %396 = tpu.concatenate %394, %395 in 0 : vector<4x16xf32>, vector<28x16xf32> -> vector<32x16xf32>
    %cst_105 = arith.constant 0.000000e+00 : f32
    %397 = vector.broadcast %cst_105 : f32 to vector<32x16xf32>
    %398 = arith.select %393, %396, %397 : vector<32x16xi1>, vector<32x16xf32>
    %399 = tpu.concatenate %391, %398 in 1 : vector<32x32xf32>, vector<32x16xf32> -> vector<32x48xf32>
    %400 = tpu.concatenate %399, %376 in 1 : vector<32x48xf32>, vector<32x16xf32> -> vector<32x64xf32>
    %c5 = arith.constant 5 : index
    %c0_106 = arith.constant 0 : index
    %c0_107 = arith.constant 0 : index
    %401 = vector.load %arg1[%c5, %c0_106, %c0_107] : memref<16x16x192xf32, #tpu.memory_space<vmem>>, vector<1x16x192xf32>
    %402 = vector.shape_cast %401 : vector<1x16x192xf32> to vector<16x192xf32>
    %403 = vector.extract_strided_slice %402 {offsets = [0, 0], sizes = [16, 64], strides = [1, 1]} : vector<16x192xf32> to vector<16x64xf32>
    %cst_108 = arith.constant dense<0.000000e+00> : vector<32x16xf32>
    %404 = tpu.matmul %400, %403, %cst_108 {dimension_numbers = #tpu.dot_dimension_numbers<[1], [1], [0], [0], [0, 0, 1, 0], [], []>} : vector<32x64xf32>, vector<16x64xf32>, vector<32x16xf32> -> vector<32x16xf32>
    %c5_109 = arith.constant 5 : index
    %c0_110 = arith.constant 0 : index
    %405 = vector.load %arg2[%c5_109, %c0_110] : memref<16x16xf32, #tpu.memory_space<vmem>>, vector<1x16xf32>
    %406 = vector.broadcast %405 : vector<1x16xf32> to vector<32x16xf32>
    %407 = arith.addf %404, %406 : vector<32x16xf32>
    %408 = math.tanh %407 : vector<32x16xf32>
    %409 = arith.addf %408, %344 : vector<32x16xf32>
    %410 = math.tanh %409 : vector<32x16xf32>
    %c8_i32_111 = arith.constant 8 : i32
    %411 = vector.broadcast %c8_i32_111 : i32 to vector<32x16xi32>
    %412 = arith.cmpi sge, %16, %411 : vector<32x16xi32>
    %413 = vector.extract_strided_slice %410 {offsets = [24, 0], sizes = [8, 16], strides = [1, 1]} : vector<32x16xf32> to vector<8x16xf32>
    %414 = vector.extract_strided_slice %410 {offsets = [0, 0], sizes = [24, 16], strides = [1, 1]} : vector<32x16xf32> to vector<24x16xf32>
    %415 = tpu.concatenate %413, %414 in 0 : vector<8x16xf32>, vector<24x16xf32> -> vector<32x16xf32>
    %cst_112 = arith.constant 0.000000e+00 : f32
    %416 = vector.broadcast %cst_112 : f32 to vector<32x16xf32>
    %417 = arith.select %412, %415, %416 : vector<32x16xi1>, vector<32x16xf32>
    %418 = tpu.concatenate %417, %410 in 1 : vector<32x16xf32>, vector<32x16xf32> -> vector<32x32xf32>
    %c6 = arith.constant 6 : index
    %c0_113 = arith.constant 0 : index
    %c0_114 = arith.constant 0 : index
    %419 = vector.load %arg1[%c6, %c0_113, %c0_114] : memref<16x16x192xf32, #tpu.memory_space<vmem>>, vector<1x16x192xf32>
    %420 = vector.shape_cast %419 : vector<1x16x192xf32> to vector<16x192xf32>
    %421 = vector.extract_strided_slice %420 {offsets = [0, 0], sizes = [16, 32], strides = [1, 1]} : vector<16x192xf32> to vector<16x32xf32>
    %cst_115 = arith.constant dense<0.000000e+00> : vector<32x16xf32>
    %422 = tpu.matmul %418, %421, %cst_115 {dimension_numbers = #tpu.dot_dimension_numbers<[1], [1], [0], [0], [0, 0, 1, 0], [], []>} : vector<32x32xf32>, vector<16x32xf32>, vector<32x16xf32> -> vector<32x16xf32>
    %c6_116 = arith.constant 6 : index
    %c0_117 = arith.constant 0 : index
    %423 = vector.load %arg2[%c6_116, %c0_117] : memref<16x16xf32, #tpu.memory_space<vmem>>, vector<1x16xf32>
    %424 = vector.broadcast %423 : vector<1x16xf32> to vector<32x16xf32>
    %425 = arith.addf %422, %424 : vector<32x16xf32>
    %426 = math.tanh %425 : vector<32x16xf32>
    %c8_i32_118 = arith.constant 8 : i32
    %427 = vector.broadcast %c8_i32_118 : i32 to vector<32x16xi32>
    %428 = arith.cmpi sge, %16, %427 : vector<32x16xi32>
    %429 = vector.extract_strided_slice %426 {offsets = [24, 0], sizes = [8, 16], strides = [1, 1]} : vector<32x16xf32> to vector<8x16xf32>
    %430 = vector.extract_strided_slice %426 {offsets = [0, 0], sizes = [24, 16], strides = [1, 1]} : vector<32x16xf32> to vector<24x16xf32>
    %431 = tpu.concatenate %429, %430 in 0 : vector<8x16xf32>, vector<24x16xf32> -> vector<32x16xf32>
    %cst_119 = arith.constant 0.000000e+00 : f32
    %432 = vector.broadcast %cst_119 : f32 to vector<32x16xf32>
    %433 = arith.select %428, %431, %432 : vector<32x16xi1>, vector<32x16xf32>
    %434 = tpu.concatenate %433, %426 in 1 : vector<32x16xf32>, vector<32x16xf32> -> vector<32x32xf32>
    %c7 = arith.constant 7 : index
    %c0_120 = arith.constant 0 : index
    %c0_121 = arith.constant 0 : index
    %435 = vector.load %arg1[%c7, %c0_120, %c0_121] : memref<16x16x192xf32, #tpu.memory_space<vmem>>, vector<1x16x192xf32>
    %436 = vector.shape_cast %435 : vector<1x16x192xf32> to vector<16x192xf32>
    %437 = vector.extract_strided_slice %436 {offsets = [0, 0], sizes = [16, 32], strides = [1, 1]} : vector<16x192xf32> to vector<16x32xf32>
    %cst_122 = arith.constant dense<0.000000e+00> : vector<32x16xf32>
    %438 = tpu.matmul %434, %437, %cst_122 {dimension_numbers = #tpu.dot_dimension_numbers<[1], [1], [0], [0], [0, 0, 1, 0], [], []>} : vector<32x32xf32>, vector<16x32xf32>, vector<32x16xf32> -> vector<32x16xf32>
    %c7_123 = arith.constant 7 : index
    %c0_124 = arith.constant 0 : index
    %439 = vector.load %arg2[%c7_123, %c0_124] : memref<16x16xf32, #tpu.memory_space<vmem>>, vector<1x16xf32>
    %440 = vector.broadcast %439 : vector<1x16xf32> to vector<32x16xf32>
    %441 = arith.addf %438, %440 : vector<32x16xf32>
    %442 = math.tanh %441 : vector<32x16xf32>
    %443 = arith.addf %442, %410 : vector<32x16xf32>
    %444 = math.tanh %443 : vector<32x16xf32>
    %c11_i32_125 = arith.constant 11 : i32
    %445 = vector.broadcast %c11_i32_125 : i32 to vector<32x16xi32>
    %446 = arith.cmpi sge, %16, %445 : vector<32x16xi32>
    %447 = vector.extract_strided_slice %444 {offsets = [21, 0], sizes = [11, 16], strides = [1, 1]} : vector<32x16xf32> to vector<11x16xf32>
    %448 = vector.extract_strided_slice %444 {offsets = [0, 0], sizes = [21, 16], strides = [1, 1]} : vector<32x16xf32> to vector<21x16xf32>
    %449 = tpu.concatenate %447, %448 in 0 : vector<11x16xf32>, vector<21x16xf32> -> vector<32x16xf32>
    %cst_126 = arith.constant 0.000000e+00 : f32
    %450 = vector.broadcast %cst_126 : f32 to vector<32x16xf32>
    %451 = arith.select %446, %449, %450 : vector<32x16xi1>, vector<32x16xf32>
    %c10_i32_127 = arith.constant 10 : i32
    %452 = vector.broadcast %c10_i32_127 : i32 to vector<32x16xi32>
    %453 = arith.cmpi sge, %16, %452 : vector<32x16xi32>
    %454 = vector.extract_strided_slice %444 {offsets = [22, 0], sizes = [10, 16], strides = [1, 1]} : vector<32x16xf32> to vector<10x16xf32>
    %455 = vector.extract_strided_slice %444 {offsets = [0, 0], sizes = [22, 16], strides = [1, 1]} : vector<32x16xf32> to vector<22x16xf32>
    %456 = tpu.concatenate %454, %455 in 0 : vector<10x16xf32>, vector<22x16xf32> -> vector<32x16xf32>
    %cst_128 = arith.constant 0.000000e+00 : f32
    %457 = vector.broadcast %cst_128 : f32 to vector<32x16xf32>
    %458 = arith.select %453, %456, %457 : vector<32x16xi1>, vector<32x16xf32>
    %459 = tpu.concatenate %451, %458 in 1 : vector<32x16xf32>, vector<32x16xf32> -> vector<32x32xf32>
    %c9_i32_129 = arith.constant 9 : i32
    %460 = vector.broadcast %c9_i32_129 : i32 to vector<32x16xi32>
    %461 = arith.cmpi sge, %16, %460 : vector<32x16xi32>
    %462 = vector.extract_strided_slice %444 {offsets = [23, 0], sizes = [9, 16], strides = [1, 1]} : vector<32x16xf32> to vector<9x16xf32>
    %463 = vector.extract_strided_slice %444 {offsets = [0, 0], sizes = [23, 16], strides = [1, 1]} : vector<32x16xf32> to vector<23x16xf32>
    %464 = tpu.concatenate %462, %463 in 0 : vector<9x16xf32>, vector<23x16xf32> -> vector<32x16xf32>
    %cst_130 = arith.constant 0.000000e+00 : f32
    %465 = vector.broadcast %cst_130 : f32 to vector<32x16xf32>
    %466 = arith.select %461, %464, %465 : vector<32x16xi1>, vector<32x16xf32>
    %467 = tpu.concatenate %459, %466 in 1 : vector<32x32xf32>, vector<32x16xf32> -> vector<32x48xf32>
    %c8_i32_131 = arith.constant 8 : i32
    %468 = vector.broadcast %c8_i32_131 : i32 to vector<32x16xi32>
    %469 = arith.cmpi sge, %16, %468 : vector<32x16xi32>
    %470 = vector.extract_strided_slice %444 {offsets = [24, 0], sizes = [8, 16], strides = [1, 1]} : vector<32x16xf32> to vector<8x16xf32>
    %471 = vector.extract_strided_slice %444 {offsets = [0, 0], sizes = [24, 16], strides = [1, 1]} : vector<32x16xf32> to vector<24x16xf32>
    %472 = tpu.concatenate %470, %471 in 0 : vector<8x16xf32>, vector<24x16xf32> -> vector<32x16xf32>
    %cst_132 = arith.constant 0.000000e+00 : f32
    %473 = vector.broadcast %cst_132 : f32 to vector<32x16xf32>
    %474 = arith.select %469, %472, %473 : vector<32x16xi1>, vector<32x16xf32>
    %475 = tpu.concatenate %467, %474 in 1 : vector<32x48xf32>, vector<32x16xf32> -> vector<32x64xf32>
    %c7_i32_133 = arith.constant 7 : i32
    %476 = vector.broadcast %c7_i32_133 : i32 to vector<32x16xi32>
    %477 = arith.cmpi sge, %16, %476 : vector<32x16xi32>
    %478 = vector.extract_strided_slice %444 {offsets = [25, 0], sizes = [7, 16], strides = [1, 1]} : vector<32x16xf32> to vector<7x16xf32>
    %479 = vector.extract_strided_slice %444 {offsets = [0, 0], sizes = [25, 16], strides = [1, 1]} : vector<32x16xf32> to vector<25x16xf32>
    %480 = tpu.concatenate %478, %479 in 0 : vector<7x16xf32>, vector<25x16xf32> -> vector<32x16xf32>
    %cst_134 = arith.constant 0.000000e+00 : f32
    %481 = vector.broadcast %cst_134 : f32 to vector<32x16xf32>
    %482 = arith.select %477, %480, %481 : vector<32x16xi1>, vector<32x16xf32>
    %483 = tpu.concatenate %475, %482 in 1 : vector<32x64xf32>, vector<32x16xf32> -> vector<32x80xf32>
    %c6_i32_135 = arith.constant 6 : i32
    %484 = vector.broadcast %c6_i32_135 : i32 to vector<32x16xi32>
    %485 = arith.cmpi sge, %16, %484 : vector<32x16xi32>
    %486 = vector.extract_strided_slice %444 {offsets = [26, 0], sizes = [6, 16], strides = [1, 1]} : vector<32x16xf32> to vector<6x16xf32>
    %487 = vector.extract_strided_slice %444 {offsets = [0, 0], sizes = [26, 16], strides = [1, 1]} : vector<32x16xf32> to vector<26x16xf32>
    %488 = tpu.concatenate %486, %487 in 0 : vector<6x16xf32>, vector<26x16xf32> -> vector<32x16xf32>
    %cst_136 = arith.constant 0.000000e+00 : f32
    %489 = vector.broadcast %cst_136 : f32 to vector<32x16xf32>
    %490 = arith.select %485, %488, %489 : vector<32x16xi1>, vector<32x16xf32>
    %491 = tpu.concatenate %483, %490 in 1 : vector<32x80xf32>, vector<32x16xf32> -> vector<32x96xf32>
    %c5_i32_137 = arith.constant 5 : i32
    %492 = vector.broadcast %c5_i32_137 : i32 to vector<32x16xi32>
    %493 = arith.cmpi sge, %16, %492 : vector<32x16xi32>
    %494 = vector.extract_strided_slice %444 {offsets = [27, 0], sizes = [5, 16], strides = [1, 1]} : vector<32x16xf32> to vector<5x16xf32>
    %495 = vector.extract_strided_slice %444 {offsets = [0, 0], sizes = [27, 16], strides = [1, 1]} : vector<32x16xf32> to vector<27x16xf32>
    %496 = tpu.concatenate %494, %495 in 0 : vector<5x16xf32>, vector<27x16xf32> -> vector<32x16xf32>
    %cst_138 = arith.constant 0.000000e+00 : f32
    %497 = vector.broadcast %cst_138 : f32 to vector<32x16xf32>
    %498 = arith.select %493, %496, %497 : vector<32x16xi1>, vector<32x16xf32>
    %499 = tpu.concatenate %491, %498 in 1 : vector<32x96xf32>, vector<32x16xf32> -> vector<32x112xf32>
    %c4_i32_139 = arith.constant 4 : i32
    %500 = vector.broadcast %c4_i32_139 : i32 to vector<32x16xi32>
    %501 = arith.cmpi sge, %16, %500 : vector<32x16xi32>
    %502 = vector.extract_strided_slice %444 {offsets = [28, 0], sizes = [4, 16], strides = [1, 1]} : vector<32x16xf32> to vector<4x16xf32>
    %503 = vector.extract_strided_slice %444 {offsets = [0, 0], sizes = [28, 16], strides = [1, 1]} : vector<32x16xf32> to vector<28x16xf32>
    %504 = tpu.concatenate %502, %503 in 0 : vector<4x16xf32>, vector<28x16xf32> -> vector<32x16xf32>
    %cst_140 = arith.constant 0.000000e+00 : f32
    %505 = vector.broadcast %cst_140 : f32 to vector<32x16xf32>
    %506 = arith.select %501, %504, %505 : vector<32x16xi1>, vector<32x16xf32>
    %507 = tpu.concatenate %499, %506 in 1 : vector<32x112xf32>, vector<32x16xf32> -> vector<32x128xf32>
    %c3_i32_141 = arith.constant 3 : i32
    %508 = vector.broadcast %c3_i32_141 : i32 to vector<32x16xi32>
    %509 = arith.cmpi sge, %16, %508 : vector<32x16xi32>
    %510 = vector.extract_strided_slice %444 {offsets = [29, 0], sizes = [3, 16], strides = [1, 1]} : vector<32x16xf32> to vector<3x16xf32>
    %511 = vector.extract_strided_slice %444 {offsets = [0, 0], sizes = [29, 16], strides = [1, 1]} : vector<32x16xf32> to vector<29x16xf32>
    %512 = tpu.concatenate %510, %511 in 0 : vector<3x16xf32>, vector<29x16xf32> -> vector<32x16xf32>
    %cst_142 = arith.constant 0.000000e+00 : f32
    %513 = vector.broadcast %cst_142 : f32 to vector<32x16xf32>
    %514 = arith.select %509, %512, %513 : vector<32x16xi1>, vector<32x16xf32>
    %515 = tpu.concatenate %507, %514 in 1 : vector<32x128xf32>, vector<32x16xf32> -> vector<32x144xf32>
    %c2_i32_143 = arith.constant 2 : i32
    %516 = vector.broadcast %c2_i32_143 : i32 to vector<32x16xi32>
    %517 = arith.cmpi sge, %16, %516 : vector<32x16xi32>
    %518 = vector.extract_strided_slice %444 {offsets = [30, 0], sizes = [2, 16], strides = [1, 1]} : vector<32x16xf32> to vector<2x16xf32>
    %519 = vector.extract_strided_slice %444 {offsets = [0, 0], sizes = [30, 16], strides = [1, 1]} : vector<32x16xf32> to vector<30x16xf32>
    %520 = tpu.concatenate %518, %519 in 0 : vector<2x16xf32>, vector<30x16xf32> -> vector<32x16xf32>
    %cst_144 = arith.constant 0.000000e+00 : f32
    %521 = vector.broadcast %cst_144 : f32 to vector<32x16xf32>
    %522 = arith.select %517, %520, %521 : vector<32x16xi1>, vector<32x16xf32>
    %523 = tpu.concatenate %515, %522 in 1 : vector<32x144xf32>, vector<32x16xf32> -> vector<32x160xf32>
    %c1_i32_145 = arith.constant 1 : i32
    %524 = vector.broadcast %c1_i32_145 : i32 to vector<32x16xi32>
    %525 = arith.cmpi sge, %16, %524 : vector<32x16xi32>
    %526 = vector.extract_strided_slice %444 {offsets = [31, 0], sizes = [1, 16], strides = [1, 1]} : vector<32x16xf32> to vector<1x16xf32>
    %527 = vector.extract_strided_slice %444 {offsets = [0, 0], sizes = [31, 16], strides = [1, 1]} : vector<32x16xf32> to vector<31x16xf32>
    %528 = tpu.concatenate %526, %527 in 0 : vector<1x16xf32>, vector<31x16xf32> -> vector<32x16xf32>
    %cst_146 = arith.constant 0.000000e+00 : f32
    %529 = vector.broadcast %cst_146 : f32 to vector<32x16xf32>
    %530 = arith.select %525, %528, %529 : vector<32x16xi1>, vector<32x16xf32>
    %531 = tpu.concatenate %523, %530 in 1 : vector<32x160xf32>, vector<32x16xf32> -> vector<32x176xf32>
    %532 = tpu.concatenate %531, %444 in 1 : vector<32x176xf32>, vector<32x16xf32> -> vector<32x192xf32>
    %c8 = arith.constant 8 : index
    %c0_147 = arith.constant 0 : index
    %c0_148 = arith.constant 0 : index
    %533 = vector.load %arg1[%c8, %c0_147, %c0_148] : memref<16x16x192xf32, #tpu.memory_space<vmem>>, vector<1x16x192xf32>
    %534 = vector.shape_cast %533 : vector<1x16x192xf32> to vector<16x192xf32>
    %cst_149 = arith.constant dense<0.000000e+00> : vector<32x16xf32>
    %535 = tpu.matmul %532, %534, %cst_149 {dimension_numbers = #tpu.dot_dimension_numbers<[1], [1], [0], [0], [0, 0, 1, 0], [], []>} : vector<32x192xf32>, vector<16x192xf32>, vector<32x16xf32> -> vector<32x16xf32>
    %c8_150 = arith.constant 8 : index
    %c0_151 = arith.constant 0 : index
    %536 = vector.load %arg2[%c8_150, %c0_151] : memref<16x16xf32, #tpu.memory_space<vmem>>, vector<1x16xf32>
    %537 = vector.broadcast %536 : vector<1x16xf32> to vector<32x16xf32>
    %538 = arith.addf %535, %537 : vector<32x16xf32>
    %539 = math.tanh %538 : vector<32x16xf32>
    %c11_i32_152 = arith.constant 11 : i32
    %540 = vector.broadcast %c11_i32_152 : i32 to vector<32x16xi32>
    %541 = arith.cmpi sge, %16, %540 : vector<32x16xi32>
    %542 = vector.extract_strided_slice %539 {offsets = [21, 0], sizes = [11, 16], strides = [1, 1]} : vector<32x16xf32> to vector<11x16xf32>
    %543 = vector.extract_strided_slice %539 {offsets = [0, 0], sizes = [21, 16], strides = [1, 1]} : vector<32x16xf32> to vector<21x16xf32>
    %544 = tpu.concatenate %542, %543 in 0 : vector<11x16xf32>, vector<21x16xf32> -> vector<32x16xf32>
    %cst_153 = arith.constant 0.000000e+00 : f32
    %545 = vector.broadcast %cst_153 : f32 to vector<32x16xf32>
    %546 = arith.select %541, %544, %545 : vector<32x16xi1>, vector<32x16xf32>
    %c10_i32_154 = arith.constant 10 : i32
    %547 = vector.broadcast %c10_i32_154 : i32 to vector<32x16xi32>
    %548 = arith.cmpi sge, %16, %547 : vector<32x16xi32>
    %549 = vector.extract_strided_slice %539 {offsets = [22, 0], sizes = [10, 16], strides = [1, 1]} : vector<32x16xf32> to vector<10x16xf32>
    %550 = vector.extract_strided_slice %539 {offsets = [0, 0], sizes = [22, 16], strides = [1, 1]} : vector<32x16xf32> to vector<22x16xf32>
    %551 = tpu.concatenate %549, %550 in 0 : vector<10x16xf32>, vector<22x16xf32> -> vector<32x16xf32>
    %cst_155 = arith.constant 0.000000e+00 : f32
    %552 = vector.broadcast %cst_155 : f32 to vector<32x16xf32>
    %553 = arith.select %548, %551, %552 : vector<32x16xi1>, vector<32x16xf32>
    %554 = tpu.concatenate %546, %553 in 1 : vector<32x16xf32>, vector<32x16xf32> -> vector<32x32xf32>
    %c9_i32_156 = arith.constant 9 : i32
    %555 = vector.broadcast %c9_i32_156 : i32 to vector<32x16xi32>
    %556 = arith.cmpi sge, %16, %555 : vector<32x16xi32>
    %557 = vector.extract_strided_slice %539 {offsets = [23, 0], sizes = [9, 16], strides = [1, 1]} : vector<32x16xf32> to vector<9x16xf32>
    %558 = vector.extract_strided_slice %539 {offsets = [0, 0], sizes = [23, 16], strides = [1, 1]} : vector<32x16xf32> to vector<23x16xf32>
    %559 = tpu.concatenate %557, %558 in 0 : vector<9x16xf32>, vector<23x16xf32> -> vector<32x16xf32>
    %cst_157 = arith.constant 0.000000e+00 : f32
    %560 = vector.broadcast %cst_157 : f32 to vector<32x16xf32>
    %561 = arith.select %556, %559, %560 : vector<32x16xi1>, vector<32x16xf32>
    %562 = tpu.concatenate %554, %561 in 1 : vector<32x32xf32>, vector<32x16xf32> -> vector<32x48xf32>
    %c8_i32_158 = arith.constant 8 : i32
    %563 = vector.broadcast %c8_i32_158 : i32 to vector<32x16xi32>
    %564 = arith.cmpi sge, %16, %563 : vector<32x16xi32>
    %565 = vector.extract_strided_slice %539 {offsets = [24, 0], sizes = [8, 16], strides = [1, 1]} : vector<32x16xf32> to vector<8x16xf32>
    %566 = vector.extract_strided_slice %539 {offsets = [0, 0], sizes = [24, 16], strides = [1, 1]} : vector<32x16xf32> to vector<24x16xf32>
    %567 = tpu.concatenate %565, %566 in 0 : vector<8x16xf32>, vector<24x16xf32> -> vector<32x16xf32>
    %cst_159 = arith.constant 0.000000e+00 : f32
    %568 = vector.broadcast %cst_159 : f32 to vector<32x16xf32>
    %569 = arith.select %564, %567, %568 : vector<32x16xi1>, vector<32x16xf32>
    %570 = tpu.concatenate %562, %569 in 1 : vector<32x48xf32>, vector<32x16xf32> -> vector<32x64xf32>
    %c7_i32_160 = arith.constant 7 : i32
    %571 = vector.broadcast %c7_i32_160 : i32 to vector<32x16xi32>
    %572 = arith.cmpi sge, %16, %571 : vector<32x16xi32>
    %573 = vector.extract_strided_slice %539 {offsets = [25, 0], sizes = [7, 16], strides = [1, 1]} : vector<32x16xf32> to vector<7x16xf32>
    %574 = vector.extract_strided_slice %539 {offsets = [0, 0], sizes = [25, 16], strides = [1, 1]} : vector<32x16xf32> to vector<25x16xf32>
    %575 = tpu.concatenate %573, %574 in 0 : vector<7x16xf32>, vector<25x16xf32> -> vector<32x16xf32>
    %cst_161 = arith.constant 0.000000e+00 : f32
    %576 = vector.broadcast %cst_161 : f32 to vector<32x16xf32>
    %577 = arith.select %572, %575, %576 : vector<32x16xi1>, vector<32x16xf32>
    %578 = tpu.concatenate %570, %577 in 1 : vector<32x64xf32>, vector<32x16xf32> -> vector<32x80xf32>
    %c6_i32_162 = arith.constant 6 : i32
    %579 = vector.broadcast %c6_i32_162 : i32 to vector<32x16xi32>
    %580 = arith.cmpi sge, %16, %579 : vector<32x16xi32>
    %581 = vector.extract_strided_slice %539 {offsets = [26, 0], sizes = [6, 16], strides = [1, 1]} : vector<32x16xf32> to vector<6x16xf32>
    %582 = vector.extract_strided_slice %539 {offsets = [0, 0], sizes = [26, 16], strides = [1, 1]} : vector<32x16xf32> to vector<26x16xf32>
    %583 = tpu.concatenate %581, %582 in 0 : vector<6x16xf32>, vector<26x16xf32> -> vector<32x16xf32>
    %cst_163 = arith.constant 0.000000e+00 : f32
    %584 = vector.broadcast %cst_163 : f32 to vector<32x16xf32>
    %585 = arith.select %580, %583, %584 : vector<32x16xi1>, vector<32x16xf32>
    %586 = tpu.concatenate %578, %585 in 1 : vector<32x80xf32>, vector<32x16xf32> -> vector<32x96xf32>
    %c5_i32_164 = arith.constant 5 : i32
    %587 = vector.broadcast %c5_i32_164 : i32 to vector<32x16xi32>
    %588 = arith.cmpi sge, %16, %587 : vector<32x16xi32>
    %589 = vector.extract_strided_slice %539 {offsets = [27, 0], sizes = [5, 16], strides = [1, 1]} : vector<32x16xf32> to vector<5x16xf32>
    %590 = vector.extract_strided_slice %539 {offsets = [0, 0], sizes = [27, 16], strides = [1, 1]} : vector<32x16xf32> to vector<27x16xf32>
    %591 = tpu.concatenate %589, %590 in 0 : vector<5x16xf32>, vector<27x16xf32> -> vector<32x16xf32>
    %cst_165 = arith.constant 0.000000e+00 : f32
    %592 = vector.broadcast %cst_165 : f32 to vector<32x16xf32>
    %593 = arith.select %588, %591, %592 : vector<32x16xi1>, vector<32x16xf32>
    %594 = tpu.concatenate %586, %593 in 1 : vector<32x96xf32>, vector<32x16xf32> -> vector<32x112xf32>
    %c4_i32_166 = arith.constant 4 : i32
    %595 = vector.broadcast %c4_i32_166 : i32 to vector<32x16xi32>
    %596 = arith.cmpi sge, %16, %595 : vector<32x16xi32>
    %597 = vector.extract_strided_slice %539 {offsets = [28, 0], sizes = [4, 16], strides = [1, 1]} : vector<32x16xf32> to vector<4x16xf32>
    %598 = vector.extract_strided_slice %539 {offsets = [0, 0], sizes = [28, 16], strides = [1, 1]} : vector<32x16xf32> to vector<28x16xf32>
    %599 = tpu.concatenate %597, %598 in 0 : vector<4x16xf32>, vector<28x16xf32> -> vector<32x16xf32>
    %cst_167 = arith.constant 0.000000e+00 : f32
    %600 = vector.broadcast %cst_167 : f32 to vector<32x16xf32>
    %601 = arith.select %596, %599, %600 : vector<32x16xi1>, vector<32x16xf32>
    %602 = tpu.concatenate %594, %601 in 1 : vector<32x112xf32>, vector<32x16xf32> -> vector<32x128xf32>
    %c3_i32_168 = arith.constant 3 : i32
    %603 = vector.broadcast %c3_i32_168 : i32 to vector<32x16xi32>
    %604 = arith.cmpi sge, %16, %603 : vector<32x16xi32>
    %605 = vector.extract_strided_slice %539 {offsets = [29, 0], sizes = [3, 16], strides = [1, 1]} : vector<32x16xf32> to vector<3x16xf32>
    %606 = vector.extract_strided_slice %539 {offsets = [0, 0], sizes = [29, 16], strides = [1, 1]} : vector<32x16xf32> to vector<29x16xf32>
    %607 = tpu.concatenate %605, %606 in 0 : vector<3x16xf32>, vector<29x16xf32> -> vector<32x16xf32>
    %cst_169 = arith.constant 0.000000e+00 : f32
    %608 = vector.broadcast %cst_169 : f32 to vector<32x16xf32>
    %609 = arith.select %604, %607, %608 : vector<32x16xi1>, vector<32x16xf32>
    %610 = tpu.concatenate %602, %609 in 1 : vector<32x128xf32>, vector<32x16xf32> -> vector<32x144xf32>
    %c2_i32_170 = arith.constant 2 : i32
    %611 = vector.broadcast %c2_i32_170 : i32 to vector<32x16xi32>
    %612 = arith.cmpi sge, %16, %611 : vector<32x16xi32>
    %613 = vector.extract_strided_slice %539 {offsets = [30, 0], sizes = [2, 16], strides = [1, 1]} : vector<32x16xf32> to vector<2x16xf32>
    %614 = vector.extract_strided_slice %539 {offsets = [0, 0], sizes = [30, 16], strides = [1, 1]} : vector<32x16xf32> to vector<30x16xf32>
    %615 = tpu.concatenate %613, %614 in 0 : vector<2x16xf32>, vector<30x16xf32> -> vector<32x16xf32>
    %cst_171 = arith.constant 0.000000e+00 : f32
    %616 = vector.broadcast %cst_171 : f32 to vector<32x16xf32>
    %617 = arith.select %612, %615, %616 : vector<32x16xi1>, vector<32x16xf32>
    %618 = tpu.concatenate %610, %617 in 1 : vector<32x144xf32>, vector<32x16xf32> -> vector<32x160xf32>
    %c1_i32_172 = arith.constant 1 : i32
    %619 = vector.broadcast %c1_i32_172 : i32 to vector<32x16xi32>
    %620 = arith.cmpi sge, %16, %619 : vector<32x16xi32>
    %621 = vector.extract_strided_slice %539 {offsets = [31, 0], sizes = [1, 16], strides = [1, 1]} : vector<32x16xf32> to vector<1x16xf32>
    %622 = vector.extract_strided_slice %539 {offsets = [0, 0], sizes = [31, 16], strides = [1, 1]} : vector<32x16xf32> to vector<31x16xf32>
    %623 = tpu.concatenate %621, %622 in 0 : vector<1x16xf32>, vector<31x16xf32> -> vector<32x16xf32>
    %cst_173 = arith.constant 0.000000e+00 : f32
    %624 = vector.broadcast %cst_173 : f32 to vector<32x16xf32>
    %625 = arith.select %620, %623, %624 : vector<32x16xi1>, vector<32x16xf32>
    %626 = tpu.concatenate %618, %625 in 1 : vector<32x160xf32>, vector<32x16xf32> -> vector<32x176xf32>
    %627 = tpu.concatenate %626, %539 in 1 : vector<32x176xf32>, vector<32x16xf32> -> vector<32x192xf32>
    %c9 = arith.constant 9 : index
    %c0_174 = arith.constant 0 : index
    %c0_175 = arith.constant 0 : index
    %628 = vector.load %arg1[%c9, %c0_174, %c0_175] : memref<16x16x192xf32, #tpu.memory_space<vmem>>, vector<1x16x192xf32>
    %629 = vector.shape_cast %628 : vector<1x16x192xf32> to vector<16x192xf32>
    %cst_176 = arith.constant dense<0.000000e+00> : vector<32x16xf32>
    %630 = tpu.matmul %627, %629, %cst_176 {dimension_numbers = #tpu.dot_dimension_numbers<[1], [1], [0], [0], [0, 0, 1, 0], [], []>} : vector<32x192xf32>, vector<16x192xf32>, vector<32x16xf32> -> vector<32x16xf32>
    %c9_177 = arith.constant 9 : index
    %c0_178 = arith.constant 0 : index
    %631 = vector.load %arg2[%c9_177, %c0_178] : memref<16x16xf32, #tpu.memory_space<vmem>>, vector<1x16xf32>
    %632 = vector.broadcast %631 : vector<1x16xf32> to vector<32x16xf32>
    %633 = arith.addf %630, %632 : vector<32x16xf32>
    %634 = math.tanh %633 : vector<32x16xf32>
    %635 = arith.addf %634, %444 : vector<32x16xf32>
    %636 = math.tanh %635 : vector<32x16xf32>
    %c14_i32_179 = arith.constant 14 : i32
    %637 = vector.broadcast %c14_i32_179 : i32 to vector<32x16xi32>
    %638 = arith.cmpi sge, %16, %637 : vector<32x16xi32>
    %639 = vector.extract_strided_slice %636 {offsets = [18, 0], sizes = [14, 16], strides = [1, 1]} : vector<32x16xf32> to vector<14x16xf32>
    %640 = vector.extract_strided_slice %636 {offsets = [0, 0], sizes = [18, 16], strides = [1, 1]} : vector<32x16xf32> to vector<18x16xf32>
    %641 = tpu.concatenate %639, %640 in 0 : vector<14x16xf32>, vector<18x16xf32> -> vector<32x16xf32>
    %cst_180 = arith.constant 0.000000e+00 : f32
    %642 = vector.broadcast %cst_180 : f32 to vector<32x16xf32>
    %643 = arith.select %638, %641, %642 : vector<32x16xi1>, vector<32x16xf32>
    %c12_i32_181 = arith.constant 12 : i32
    %644 = vector.broadcast %c12_i32_181 : i32 to vector<32x16xi32>
    %645 = arith.cmpi sge, %16, %644 : vector<32x16xi32>
    %646 = vector.extract_strided_slice %636 {offsets = [20, 0], sizes = [12, 16], strides = [1, 1]} : vector<32x16xf32> to vector<12x16xf32>
    %647 = vector.extract_strided_slice %636 {offsets = [0, 0], sizes = [20, 16], strides = [1, 1]} : vector<32x16xf32> to vector<20x16xf32>
    %648 = tpu.concatenate %646, %647 in 0 : vector<12x16xf32>, vector<20x16xf32> -> vector<32x16xf32>
    %cst_182 = arith.constant 0.000000e+00 : f32
    %649 = vector.broadcast %cst_182 : f32 to vector<32x16xf32>
    %650 = arith.select %645, %648, %649 : vector<32x16xi1>, vector<32x16xf32>
    %651 = tpu.concatenate %643, %650 in 1 : vector<32x16xf32>, vector<32x16xf32> -> vector<32x32xf32>
    %c10_i32_183 = arith.constant 10 : i32
    %652 = vector.broadcast %c10_i32_183 : i32 to vector<32x16xi32>
    %653 = arith.cmpi sge, %16, %652 : vector<32x16xi32>
    %654 = vector.extract_strided_slice %636 {offsets = [22, 0], sizes = [10, 16], strides = [1, 1]} : vector<32x16xf32> to vector<10x16xf32>
    %655 = vector.extract_strided_slice %636 {offsets = [0, 0], sizes = [22, 16], strides = [1, 1]} : vector<32x16xf32> to vector<22x16xf32>
    %656 = tpu.concatenate %654, %655 in 0 : vector<10x16xf32>, vector<22x16xf32> -> vector<32x16xf32>
    %cst_184 = arith.constant 0.000000e+00 : f32
    %657 = vector.broadcast %cst_184 : f32 to vector<32x16xf32>
    %658 = arith.select %653, %656, %657 : vector<32x16xi1>, vector<32x16xf32>
    %659 = tpu.concatenate %651, %658 in 1 : vector<32x32xf32>, vector<32x16xf32> -> vector<32x48xf32>
    %c8_i32_185 = arith.constant 8 : i32
    %660 = vector.broadcast %c8_i32_185 : i32 to vector<32x16xi32>
    %661 = arith.cmpi sge, %16, %660 : vector<32x16xi32>
    %662 = vector.extract_strided_slice %636 {offsets = [24, 0], sizes = [8, 16], strides = [1, 1]} : vector<32x16xf32> to vector<8x16xf32>
    %663 = vector.extract_strided_slice %636 {offsets = [0, 0], sizes = [24, 16], strides = [1, 1]} : vector<32x16xf32> to vector<24x16xf32>
    %664 = tpu.concatenate %662, %663 in 0 : vector<8x16xf32>, vector<24x16xf32> -> vector<32x16xf32>
    %cst_186 = arith.constant 0.000000e+00 : f32
    %665 = vector.broadcast %cst_186 : f32 to vector<32x16xf32>
    %666 = arith.select %661, %664, %665 : vector<32x16xi1>, vector<32x16xf32>
    %667 = tpu.concatenate %659, %666 in 1 : vector<32x48xf32>, vector<32x16xf32> -> vector<32x64xf32>
    %c6_i32_187 = arith.constant 6 : i32
    %668 = vector.broadcast %c6_i32_187 : i32 to vector<32x16xi32>
    %669 = arith.cmpi sge, %16, %668 : vector<32x16xi32>
    %670 = vector.extract_strided_slice %636 {offsets = [26, 0], sizes = [6, 16], strides = [1, 1]} : vector<32x16xf32> to vector<6x16xf32>
    %671 = vector.extract_strided_slice %636 {offsets = [0, 0], sizes = [26, 16], strides = [1, 1]} : vector<32x16xf32> to vector<26x16xf32>
    %672 = tpu.concatenate %670, %671 in 0 : vector<6x16xf32>, vector<26x16xf32> -> vector<32x16xf32>
    %cst_188 = arith.constant 0.000000e+00 : f32
    %673 = vector.broadcast %cst_188 : f32 to vector<32x16xf32>
    %674 = arith.select %669, %672, %673 : vector<32x16xi1>, vector<32x16xf32>
    %675 = tpu.concatenate %667, %674 in 1 : vector<32x64xf32>, vector<32x16xf32> -> vector<32x80xf32>
    %c4_i32_189 = arith.constant 4 : i32
    %676 = vector.broadcast %c4_i32_189 : i32 to vector<32x16xi32>
    %677 = arith.cmpi sge, %16, %676 : vector<32x16xi32>
    %678 = vector.extract_strided_slice %636 {offsets = [28, 0], sizes = [4, 16], strides = [1, 1]} : vector<32x16xf32> to vector<4x16xf32>
    %679 = vector.extract_strided_slice %636 {offsets = [0, 0], sizes = [28, 16], strides = [1, 1]} : vector<32x16xf32> to vector<28x16xf32>
    %680 = tpu.concatenate %678, %679 in 0 : vector<4x16xf32>, vector<28x16xf32> -> vector<32x16xf32>
    %cst_190 = arith.constant 0.000000e+00 : f32
    %681 = vector.broadcast %cst_190 : f32 to vector<32x16xf32>
    %682 = arith.select %677, %680, %681 : vector<32x16xi1>, vector<32x16xf32>
    %683 = tpu.concatenate %675, %682 in 1 : vector<32x80xf32>, vector<32x16xf32> -> vector<32x96xf32>
    %c2_i32_191 = arith.constant 2 : i32
    %684 = vector.broadcast %c2_i32_191 : i32 to vector<32x16xi32>
    %685 = arith.cmpi sge, %16, %684 : vector<32x16xi32>
    %686 = vector.extract_strided_slice %636 {offsets = [30, 0], sizes = [2, 16], strides = [1, 1]} : vector<32x16xf32> to vector<2x16xf32>
    %687 = vector.extract_strided_slice %636 {offsets = [0, 0], sizes = [30, 16], strides = [1, 1]} : vector<32x16xf32> to vector<30x16xf32>
    %688 = tpu.concatenate %686, %687 in 0 : vector<2x16xf32>, vector<30x16xf32> -> vector<32x16xf32>
    %cst_192 = arith.constant 0.000000e+00 : f32
    %689 = vector.broadcast %cst_192 : f32 to vector<32x16xf32>
    %690 = arith.select %685, %688, %689 : vector<32x16xi1>, vector<32x16xf32>
    %691 = tpu.concatenate %683, %690 in 1 : vector<32x96xf32>, vector<32x16xf32> -> vector<32x112xf32>
    %692 = tpu.concatenate %691, %636 in 1 : vector<32x112xf32>, vector<32x16xf32> -> vector<32x128xf32>
    %c10 = arith.constant 10 : index
    %c0_193 = arith.constant 0 : index
    %c0_194 = arith.constant 0 : index
    %693 = vector.load %arg1[%c10, %c0_193, %c0_194] : memref<16x16x192xf32, #tpu.memory_space<vmem>>, vector<1x16x192xf32>
    %694 = vector.shape_cast %693 : vector<1x16x192xf32> to vector<16x192xf32>
    %695 = vector.extract_strided_slice %694 {offsets = [0, 0], sizes = [16, 128], strides = [1, 1]} : vector<16x192xf32> to vector<16x128xf32>
    %cst_195 = arith.constant dense<0.000000e+00> : vector<32x16xf32>
    %696 = tpu.matmul %692, %695, %cst_195 {dimension_numbers = #tpu.dot_dimension_numbers<[1], [1], [0], [0], [0, 0, 1, 0], [], []>} : vector<32x128xf32>, vector<16x128xf32>, vector<32x16xf32> -> vector<32x16xf32>
    %c10_196 = arith.constant 10 : index
    %c0_197 = arith.constant 0 : index
    %697 = vector.load %arg2[%c10_196, %c0_197] : memref<16x16xf32, #tpu.memory_space<vmem>>, vector<1x16xf32>
    %698 = vector.broadcast %697 : vector<1x16xf32> to vector<32x16xf32>
    %699 = arith.addf %696, %698 : vector<32x16xf32>
    %700 = math.tanh %699 : vector<32x16xf32>
    %c14_i32_198 = arith.constant 14 : i32
    %701 = vector.broadcast %c14_i32_198 : i32 to vector<32x16xi32>
    %702 = arith.cmpi sge, %16, %701 : vector<32x16xi32>
    %703 = vector.extract_strided_slice %700 {offsets = [18, 0], sizes = [14, 16], strides = [1, 1]} : vector<32x16xf32> to vector<14x16xf32>
    %704 = vector.extract_strided_slice %700 {offsets = [0, 0], sizes = [18, 16], strides = [1, 1]} : vector<32x16xf32> to vector<18x16xf32>
    %705 = tpu.concatenate %703, %704 in 0 : vector<14x16xf32>, vector<18x16xf32> -> vector<32x16xf32>
    %cst_199 = arith.constant 0.000000e+00 : f32
    %706 = vector.broadcast %cst_199 : f32 to vector<32x16xf32>
    %707 = arith.select %702, %705, %706 : vector<32x16xi1>, vector<32x16xf32>
    %c12_i32_200 = arith.constant 12 : i32
    %708 = vector.broadcast %c12_i32_200 : i32 to vector<32x16xi32>
    %709 = arith.cmpi sge, %16, %708 : vector<32x16xi32>
    %710 = vector.extract_strided_slice %700 {offsets = [20, 0], sizes = [12, 16], strides = [1, 1]} : vector<32x16xf32> to vector<12x16xf32>
    %711 = vector.extract_strided_slice %700 {offsets = [0, 0], sizes = [20, 16], strides = [1, 1]} : vector<32x16xf32> to vector<20x16xf32>
    %712 = tpu.concatenate %710, %711 in 0 : vector<12x16xf32>, vector<20x16xf32> -> vector<32x16xf32>
    %cst_201 = arith.constant 0.000000e+00 : f32
    %713 = vector.broadcast %cst_201 : f32 to vector<32x16xf32>
    %714 = arith.select %709, %712, %713 : vector<32x16xi1>, vector<32x16xf32>
    %715 = tpu.concatenate %707, %714 in 1 : vector<32x16xf32>, vector<32x16xf32> -> vector<32x32xf32>
    %c10_i32_202 = arith.constant 10 : i32
    %716 = vector.broadcast %c10_i32_202 : i32 to vector<32x16xi32>
    %717 = arith.cmpi sge, %16, %716 : vector<32x16xi32>
    %718 = vector.extract_strided_slice %700 {offsets = [22, 0], sizes = [10, 16], strides = [1, 1]} : vector<32x16xf32> to vector<10x16xf32>
    %719 = vector.extract_strided_slice %700 {offsets = [0, 0], sizes = [22, 16], strides = [1, 1]} : vector<32x16xf32> to vector<22x16xf32>
    %720 = tpu.concatenate %718, %719 in 0 : vector<10x16xf32>, vector<22x16xf32> -> vector<32x16xf32>
    %cst_203 = arith.constant 0.000000e+00 : f32
    %721 = vector.broadcast %cst_203 : f32 to vector<32x16xf32>
    %722 = arith.select %717, %720, %721 : vector<32x16xi1>, vector<32x16xf32>
    %723 = tpu.concatenate %715, %722 in 1 : vector<32x32xf32>, vector<32x16xf32> -> vector<32x48xf32>
    %c8_i32_204 = arith.constant 8 : i32
    %724 = vector.broadcast %c8_i32_204 : i32 to vector<32x16xi32>
    %725 = arith.cmpi sge, %16, %724 : vector<32x16xi32>
    %726 = vector.extract_strided_slice %700 {offsets = [24, 0], sizes = [8, 16], strides = [1, 1]} : vector<32x16xf32> to vector<8x16xf32>
    %727 = vector.extract_strided_slice %700 {offsets = [0, 0], sizes = [24, 16], strides = [1, 1]} : vector<32x16xf32> to vector<24x16xf32>
    %728 = tpu.concatenate %726, %727 in 0 : vector<8x16xf32>, vector<24x16xf32> -> vector<32x16xf32>
    %cst_205 = arith.constant 0.000000e+00 : f32
    %729 = vector.broadcast %cst_205 : f32 to vector<32x16xf32>
    %730 = arith.select %725, %728, %729 : vector<32x16xi1>, vector<32x16xf32>
    %731 = tpu.concatenate %723, %730 in 1 : vector<32x48xf32>, vector<32x16xf32> -> vector<32x64xf32>
    %c6_i32_206 = arith.constant 6 : i32
    %732 = vector.broadcast %c6_i32_206 : i32 to vector<32x16xi32>
    %733 = arith.cmpi sge, %16, %732 : vector<32x16xi32>
    %734 = vector.extract_strided_slice %700 {offsets = [26, 0], sizes = [6, 16], strides = [1, 1]} : vector<32x16xf32> to vector<6x16xf32>
    %735 = vector.extract_strided_slice %700 {offsets = [0, 0], sizes = [26, 16], strides = [1, 1]} : vector<32x16xf32> to vector<26x16xf32>
    %736 = tpu.concatenate %734, %735 in 0 : vector<6x16xf32>, vector<26x16xf32> -> vector<32x16xf32>
    %cst_207 = arith.constant 0.000000e+00 : f32
    %737 = vector.broadcast %cst_207 : f32 to vector<32x16xf32>
    %738 = arith.select %733, %736, %737 : vector<32x16xi1>, vector<32x16xf32>
    %739 = tpu.concatenate %731, %738 in 1 : vector<32x64xf32>, vector<32x16xf32> -> vector<32x80xf32>
    %c4_i32_208 = arith.constant 4 : i32
    %740 = vector.broadcast %c4_i32_208 : i32 to vector<32x16xi32>
    %741 = arith.cmpi sge, %16, %740 : vector<32x16xi32>
    %742 = vector.extract_strided_slice %700 {offsets = [28, 0], sizes = [4, 16], strides = [1, 1]} : vector<32x16xf32> to vector<4x16xf32>
    %743 = vector.extract_strided_slice %700 {offsets = [0, 0], sizes = [28, 16], strides = [1, 1]} : vector<32x16xf32> to vector<28x16xf32>
    %744 = tpu.concatenate %742, %743 in 0 : vector<4x16xf32>, vector<28x16xf32> -> vector<32x16xf32>
    %cst_209 = arith.constant 0.000000e+00 : f32
    %745 = vector.broadcast %cst_209 : f32 to vector<32x16xf32>
    %746 = arith.select %741, %744, %745 : vector<32x16xi1>, vector<32x16xf32>
    %747 = tpu.concatenate %739, %746 in 1 : vector<32x80xf32>, vector<32x16xf32> -> vector<32x96xf32>
    %c2_i32_210 = arith.constant 2 : i32
    %748 = vector.broadcast %c2_i32_210 : i32 to vector<32x16xi32>
    %749 = arith.cmpi sge, %16, %748 : vector<32x16xi32>
    %750 = vector.extract_strided_slice %700 {offsets = [30, 0], sizes = [2, 16], strides = [1, 1]} : vector<32x16xf32> to vector<2x16xf32>
    %751 = vector.extract_strided_slice %700 {offsets = [0, 0], sizes = [30, 16], strides = [1, 1]} : vector<32x16xf32> to vector<30x16xf32>
    %752 = tpu.concatenate %750, %751 in 0 : vector<2x16xf32>, vector<30x16xf32> -> vector<32x16xf32>
    %cst_211 = arith.constant 0.000000e+00 : f32
    %753 = vector.broadcast %cst_211 : f32 to vector<32x16xf32>
    %754 = arith.select %749, %752, %753 : vector<32x16xi1>, vector<32x16xf32>
    %755 = tpu.concatenate %747, %754 in 1 : vector<32x96xf32>, vector<32x16xf32> -> vector<32x112xf32>
    %756 = tpu.concatenate %755, %700 in 1 : vector<32x112xf32>, vector<32x16xf32> -> vector<32x128xf32>
    %c11 = arith.constant 11 : index
    %c0_212 = arith.constant 0 : index
    %c0_213 = arith.constant 0 : index
    %757 = vector.load %arg1[%c11, %c0_212, %c0_213] : memref<16x16x192xf32, #tpu.memory_space<vmem>>, vector<1x16x192xf32>
    %758 = vector.shape_cast %757 : vector<1x16x192xf32> to vector<16x192xf32>
    %759 = vector.extract_strided_slice %758 {offsets = [0, 0], sizes = [16, 128], strides = [1, 1]} : vector<16x192xf32> to vector<16x128xf32>
    %cst_214 = arith.constant dense<0.000000e+00> : vector<32x16xf32>
    %760 = tpu.matmul %756, %759, %cst_214 {dimension_numbers = #tpu.dot_dimension_numbers<[1], [1], [0], [0], [0, 0, 1, 0], [], []>} : vector<32x128xf32>, vector<16x128xf32>, vector<32x16xf32> -> vector<32x16xf32>
    %c11_215 = arith.constant 11 : index
    %c0_216 = arith.constant 0 : index
    %761 = vector.load %arg2[%c11_215, %c0_216] : memref<16x16xf32, #tpu.memory_space<vmem>>, vector<1x16xf32>
    %762 = vector.broadcast %761 : vector<1x16xf32> to vector<32x16xf32>
    %763 = arith.addf %760, %762 : vector<32x16xf32>
    %764 = math.tanh %763 : vector<32x16xf32>
    %765 = arith.addf %764, %636 : vector<32x16xf32>
    %766 = math.tanh %765 : vector<32x16xf32>
    %c12_i32_217 = arith.constant 12 : i32
    %767 = vector.broadcast %c12_i32_217 : i32 to vector<32x16xi32>
    %768 = arith.cmpi sge, %16, %767 : vector<32x16xi32>
    %769 = vector.extract_strided_slice %766 {offsets = [20, 0], sizes = [12, 16], strides = [1, 1]} : vector<32x16xf32> to vector<12x16xf32>
    %770 = vector.extract_strided_slice %766 {offsets = [0, 0], sizes = [20, 16], strides = [1, 1]} : vector<32x16xf32> to vector<20x16xf32>
    %771 = tpu.concatenate %769, %770 in 0 : vector<12x16xf32>, vector<20x16xf32> -> vector<32x16xf32>
    %cst_218 = arith.constant 0.000000e+00 : f32
    %772 = vector.broadcast %cst_218 : f32 to vector<32x16xf32>
    %773 = arith.select %768, %771, %772 : vector<32x16xi1>, vector<32x16xf32>
    %c8_i32_219 = arith.constant 8 : i32
    %774 = vector.broadcast %c8_i32_219 : i32 to vector<32x16xi32>
    %775 = arith.cmpi sge, %16, %774 : vector<32x16xi32>
    %776 = vector.extract_strided_slice %766 {offsets = [24, 0], sizes = [8, 16], strides = [1, 1]} : vector<32x16xf32> to vector<8x16xf32>
    %777 = vector.extract_strided_slice %766 {offsets = [0, 0], sizes = [24, 16], strides = [1, 1]} : vector<32x16xf32> to vector<24x16xf32>
    %778 = tpu.concatenate %776, %777 in 0 : vector<8x16xf32>, vector<24x16xf32> -> vector<32x16xf32>
    %cst_220 = arith.constant 0.000000e+00 : f32
    %779 = vector.broadcast %cst_220 : f32 to vector<32x16xf32>
    %780 = arith.select %775, %778, %779 : vector<32x16xi1>, vector<32x16xf32>
    %781 = tpu.concatenate %773, %780 in 1 : vector<32x16xf32>, vector<32x16xf32> -> vector<32x32xf32>
    %c4_i32_221 = arith.constant 4 : i32
    %782 = vector.broadcast %c4_i32_221 : i32 to vector<32x16xi32>
    %783 = arith.cmpi sge, %16, %782 : vector<32x16xi32>
    %784 = vector.extract_strided_slice %766 {offsets = [28, 0], sizes = [4, 16], strides = [1, 1]} : vector<32x16xf32> to vector<4x16xf32>
    %785 = vector.extract_strided_slice %766 {offsets = [0, 0], sizes = [28, 16], strides = [1, 1]} : vector<32x16xf32> to vector<28x16xf32>
    %786 = tpu.concatenate %784, %785 in 0 : vector<4x16xf32>, vector<28x16xf32> -> vector<32x16xf32>
    %cst_222 = arith.constant 0.000000e+00 : f32
    %787 = vector.broadcast %cst_222 : f32 to vector<32x16xf32>
    %788 = arith.select %783, %786, %787 : vector<32x16xi1>, vector<32x16xf32>
    %789 = tpu.concatenate %781, %788 in 1 : vector<32x32xf32>, vector<32x16xf32> -> vector<32x48xf32>
    %790 = tpu.concatenate %789, %766 in 1 : vector<32x48xf32>, vector<32x16xf32> -> vector<32x64xf32>
    %c12 = arith.constant 12 : index
    %c0_223 = arith.constant 0 : index
    %c0_224 = arith.constant 0 : index
    %791 = vector.load %arg1[%c12, %c0_223, %c0_224] : memref<16x16x192xf32, #tpu.memory_space<vmem>>, vector<1x16x192xf32>
    %792 = vector.shape_cast %791 : vector<1x16x192xf32> to vector<16x192xf32>
    %793 = vector.extract_strided_slice %792 {offsets = [0, 0], sizes = [16, 64], strides = [1, 1]} : vector<16x192xf32> to vector<16x64xf32>
    %cst_225 = arith.constant dense<0.000000e+00> : vector<32x16xf32>
    %794 = tpu.matmul %790, %793, %cst_225 {dimension_numbers = #tpu.dot_dimension_numbers<[1], [1], [0], [0], [0, 0, 1, 0], [], []>} : vector<32x64xf32>, vector<16x64xf32>, vector<32x16xf32> -> vector<32x16xf32>
    %c12_226 = arith.constant 12 : index
    %c0_227 = arith.constant 0 : index
    %795 = vector.load %arg2[%c12_226, %c0_227] : memref<16x16xf32, #tpu.memory_space<vmem>>, vector<1x16xf32>
    %796 = vector.broadcast %795 : vector<1x16xf32> to vector<32x16xf32>
    %797 = arith.addf %794, %796 : vector<32x16xf32>
    %798 = math.tanh %797 : vector<32x16xf32>
    %c12_i32_228 = arith.constant 12 : i32
    %799 = vector.broadcast %c12_i32_228 : i32 to vector<32x16xi32>
    %800 = arith.cmpi sge, %16, %799 : vector<32x16xi32>
    %801 = vector.extract_strided_slice %798 {offsets = [20, 0], sizes = [12, 16], strides = [1, 1]} : vector<32x16xf32> to vector<12x16xf32>
    %802 = vector.extract_strided_slice %798 {offsets = [0, 0], sizes = [20, 16], strides = [1, 1]} : vector<32x16xf32> to vector<20x16xf32>
    %803 = tpu.concatenate %801, %802 in 0 : vector<12x16xf32>, vector<20x16xf32> -> vector<32x16xf32>
    %cst_229 = arith.constant 0.000000e+00 : f32
    %804 = vector.broadcast %cst_229 : f32 to vector<32x16xf32>
    %805 = arith.select %800, %803, %804 : vector<32x16xi1>, vector<32x16xf32>
    %c8_i32_230 = arith.constant 8 : i32
    %806 = vector.broadcast %c8_i32_230 : i32 to vector<32x16xi32>
    %807 = arith.cmpi sge, %16, %806 : vector<32x16xi32>
    %808 = vector.extract_strided_slice %798 {offsets = [24, 0], sizes = [8, 16], strides = [1, 1]} : vector<32x16xf32> to vector<8x16xf32>
    %809 = vector.extract_strided_slice %798 {offsets = [0, 0], sizes = [24, 16], strides = [1, 1]} : vector<32x16xf32> to vector<24x16xf32>
    %810 = tpu.concatenate %808, %809 in 0 : vector<8x16xf32>, vector<24x16xf32> -> vector<32x16xf32>
    %cst_231 = arith.constant 0.000000e+00 : f32
    %811 = vector.broadcast %cst_231 : f32 to vector<32x16xf32>
    %812 = arith.select %807, %810, %811 : vector<32x16xi1>, vector<32x16xf32>
    %813 = tpu.concatenate %805, %812 in 1 : vector<32x16xf32>, vector<32x16xf32> -> vector<32x32xf32>
    %c4_i32_232 = arith.constant 4 : i32
    %814 = vector.broadcast %c4_i32_232 : i32 to vector<32x16xi32>
    %815 = arith.cmpi sge, %16, %814 : vector<32x16xi32>
    %816 = vector.extract_strided_slice %798 {offsets = [28, 0], sizes = [4, 16], strides = [1, 1]} : vector<32x16xf32> to vector<4x16xf32>
    %817 = vector.extract_strided_slice %798 {offsets = [0, 0], sizes = [28, 16], strides = [1, 1]} : vector<32x16xf32> to vector<28x16xf32>
    %818 = tpu.concatenate %816, %817 in 0 : vector<4x16xf32>, vector<28x16xf32> -> vector<32x16xf32>
    %cst_233 = arith.constant 0.000000e+00 : f32
    %819 = vector.broadcast %cst_233 : f32 to vector<32x16xf32>
    %820 = arith.select %815, %818, %819 : vector<32x16xi1>, vector<32x16xf32>
    %821 = tpu.concatenate %813, %820 in 1 : vector<32x32xf32>, vector<32x16xf32> -> vector<32x48xf32>
    %822 = tpu.concatenate %821, %798 in 1 : vector<32x48xf32>, vector<32x16xf32> -> vector<32x64xf32>
    %c13 = arith.constant 13 : index
    %c0_234 = arith.constant 0 : index
    %c0_235 = arith.constant 0 : index
    %823 = vector.load %arg1[%c13, %c0_234, %c0_235] : memref<16x16x192xf32, #tpu.memory_space<vmem>>, vector<1x16x192xf32>
    %824 = vector.shape_cast %823 : vector<1x16x192xf32> to vector<16x192xf32>
    %825 = vector.extract_strided_slice %824 {offsets = [0, 0], sizes = [16, 64], strides = [1, 1]} : vector<16x192xf32> to vector<16x64xf32>
    %cst_236 = arith.constant dense<0.000000e+00> : vector<32x16xf32>
    %826 = tpu.matmul %822, %825, %cst_236 {dimension_numbers = #tpu.dot_dimension_numbers<[1], [1], [0], [0], [0, 0, 1, 0], [], []>} : vector<32x64xf32>, vector<16x64xf32>, vector<32x16xf32> -> vector<32x16xf32>
    %c13_237 = arith.constant 13 : index
    %c0_238 = arith.constant 0 : index
    %827 = vector.load %arg2[%c13_237, %c0_238] : memref<16x16xf32, #tpu.memory_space<vmem>>, vector<1x16xf32>
    %828 = vector.broadcast %827 : vector<1x16xf32> to vector<32x16xf32>
    %829 = arith.addf %826, %828 : vector<32x16xf32>
    %830 = math.tanh %829 : vector<32x16xf32>
    %831 = arith.addf %830, %766 : vector<32x16xf32>
    %832 = math.tanh %831 : vector<32x16xf32>
    %c8_i32_239 = arith.constant 8 : i32
    %833 = vector.broadcast %c8_i32_239 : i32 to vector<32x16xi32>
    %834 = arith.cmpi sge, %16, %833 : vector<32x16xi32>
    %835 = vector.extract_strided_slice %832 {offsets = [24, 0], sizes = [8, 16], strides = [1, 1]} : vector<32x16xf32> to vector<8x16xf32>
    %836 = vector.extract_strided_slice %832 {offsets = [0, 0], sizes = [24, 16], strides = [1, 1]} : vector<32x16xf32> to vector<24x16xf32>
    %837 = tpu.concatenate %835, %836 in 0 : vector<8x16xf32>, vector<24x16xf32> -> vector<32x16xf32>
    %cst_240 = arith.constant 0.000000e+00 : f32
    %838 = vector.broadcast %cst_240 : f32 to vector<32x16xf32>
    %839 = arith.select %834, %837, %838 : vector<32x16xi1>, vector<32x16xf32>
    %840 = tpu.concatenate %839, %832 in 1 : vector<32x16xf32>, vector<32x16xf32> -> vector<32x32xf32>
    %c14 = arith.constant 14 : index
    %c0_241 = arith.constant 0 : index
    %c0_242 = arith.constant 0 : index
    %841 = vector.load %arg1[%c14, %c0_241, %c0_242] : memref<16x16x192xf32, #tpu.memory_space<vmem>>, vector<1x16x192xf32>
    %842 = vector.shape_cast %841 : vector<1x16x192xf32> to vector<16x192xf32>
    %843 = vector.extract_strided_slice %842 {offsets = [0, 0], sizes = [16, 32], strides = [1, 1]} : vector<16x192xf32> to vector<16x32xf32>
    %cst_243 = arith.constant dense<0.000000e+00> : vector<32x16xf32>
    %844 = tpu.matmul %840, %843, %cst_243 {dimension_numbers = #tpu.dot_dimension_numbers<[1], [1], [0], [0], [0, 0, 1, 0], [], []>} : vector<32x32xf32>, vector<16x32xf32>, vector<32x16xf32> -> vector<32x16xf32>
    %c14_244 = arith.constant 14 : index
    %c0_245 = arith.constant 0 : index
    %845 = vector.load %arg2[%c14_244, %c0_245] : memref<16x16xf32, #tpu.memory_space<vmem>>, vector<1x16xf32>
    %846 = vector.broadcast %845 : vector<1x16xf32> to vector<32x16xf32>
    %847 = arith.addf %844, %846 : vector<32x16xf32>
    %848 = math.tanh %847 : vector<32x16xf32>
    %c8_i32_246 = arith.constant 8 : i32
    %849 = vector.broadcast %c8_i32_246 : i32 to vector<32x16xi32>
    %850 = arith.cmpi sge, %16, %849 : vector<32x16xi32>
    %851 = vector.extract_strided_slice %848 {offsets = [24, 0], sizes = [8, 16], strides = [1, 1]} : vector<32x16xf32> to vector<8x16xf32>
    %852 = vector.extract_strided_slice %848 {offsets = [0, 0], sizes = [24, 16], strides = [1, 1]} : vector<32x16xf32> to vector<24x16xf32>
    %853 = tpu.concatenate %851, %852 in 0 : vector<8x16xf32>, vector<24x16xf32> -> vector<32x16xf32>
    %cst_247 = arith.constant 0.000000e+00 : f32
    %854 = vector.broadcast %cst_247 : f32 to vector<32x16xf32>
    %855 = arith.select %850, %853, %854 : vector<32x16xi1>, vector<32x16xf32>
    %856 = tpu.concatenate %855, %848 in 1 : vector<32x16xf32>, vector<32x16xf32> -> vector<32x32xf32>
    %c15 = arith.constant 15 : index
    %c0_248 = arith.constant 0 : index
    %c0_249 = arith.constant 0 : index
    %857 = vector.load %arg1[%c15, %c0_248, %c0_249] : memref<16x16x192xf32, #tpu.memory_space<vmem>>, vector<1x16x192xf32>
    %858 = vector.shape_cast %857 : vector<1x16x192xf32> to vector<16x192xf32>
    %859 = vector.extract_strided_slice %858 {offsets = [0, 0], sizes = [16, 32], strides = [1, 1]} : vector<16x192xf32> to vector<16x32xf32>
    %cst_250 = arith.constant dense<0.000000e+00> : vector<32x16xf32>
    %860 = tpu.matmul %856, %859, %cst_250 {dimension_numbers = #tpu.dot_dimension_numbers<[1], [1], [0], [0], [0, 0, 1, 0], [], []>} : vector<32x32xf32>, vector<16x32xf32>, vector<32x16xf32> -> vector<32x16xf32>
    %c15_251 = arith.constant 15 : index
    %c0_252 = arith.constant 0 : index
    %861 = vector.load %arg2[%c15_251, %c0_252] : memref<16x16xf32, #tpu.memory_space<vmem>>, vector<1x16xf32>
    %862 = vector.broadcast %861 : vector<1x16xf32> to vector<32x16xf32>
    %863 = arith.addf %860, %862 : vector<32x16xf32>
    %864 = math.tanh %863 : vector<32x16xf32>
    %865 = arith.addf %864, %832 : vector<32x16xf32>
    %866 = math.tanh %865 : vector<32x16xf32>
    %c0_253 = arith.constant 0 : index
    %c0_254 = arith.constant 0 : index
    %867 = vector.load %arg5[%c0_253, %c0_254] : memref<16x4xf32, #tpu.memory_space<vmem>>, vector<16x4xf32>
    %cst_255 = arith.constant dense<0.000000e+00> : vector<32x4xf32>
    %868 = tpu.matmul %866, %867, %cst_255 {dimension_numbers = #tpu.dot_dimension_numbers<[1], [0], [0], [1], [0, 0, 1, 1], [], []>} : vector<32x16xf32>, vector<16x4xf32>, vector<32x4xf32> -> vector<32x4xf32>
    %cst_256 = arith.constant 6.28318548 : f32
    %869 = vector.broadcast %cst_256 : f32 to vector<32x4xf32>
    %870 = arith.mulf %869, %868 : vector<32x4xf32>
    %871 = math.cos %870 : vector<32x4xf32>
    %872 = math.sin %870 : vector<32x4xf32>
    %873 = tpu.concatenate %871, %872 in 1 : vector<32x4xf32>, vector<32x4xf32> -> vector<32x8xf32>
    %c0_257 = arith.constant 0 : index
    %c0_258 = arith.constant 0 : index
    %874 = vector.load %arg6[%c0_257, %c0_258] : memref<8x3xf32, #tpu.memory_space<vmem>>, vector<8x3xf32>
    %cst_259 = arith.constant dense<0.000000e+00> : vector<32x3xf32>
    %875 = tpu.matmul %873, %874, %cst_259 {dimension_numbers = #tpu.dot_dimension_numbers<[1], [0], [0], [1], [0, 0, 1, 1], [], []>} : vector<32x8xf32>, vector<8x3xf32>, vector<32x3xf32> -> vector<32x3xf32>
    %c0_260 = arith.constant 0 : index
    %c0_261 = arith.constant 0 : index
    %876 = vector.load %arg7[%c0_260, %c0_261] : memref<1x3xf32, #tpu.memory_space<vmem>>, vector<1x3xf32>
    %877 = vector.broadcast %876 : vector<1x3xf32> to vector<32x3xf32>
    %878 = arith.addf %875, %877 : vector<32x3xf32>
    %c0_262 = arith.constant 0 : index
    %c0_263 = arith.constant 0 : index
    %879 = vector.load %arg8[%c0_262, %c0_263] : memref<32x3xf32, #tpu.memory_space<vmem>>, vector<32x3xf32>
    tpu.vector_store %arg8[%c0_262, %c0_263], %878 {strides = array<i32>} : memref<32x3xf32, #tpu.memory_space<vmem>>, vector<32x3xf32>,
    return
  }
}

</mosaic_0001>

<llo_original>
// kernel: tpu_custom_call.1
$region0: #{tpu_custom_call.1}
  #allocation0 [shape = 'u32[]', space=smem, size = 0x4, offset = 0x4, fixed_abs, tag = 'smem constant byte address 0x4 - core index']
  #allocation1 [shape = 'u32[72,128]{1,0:T(1,128)}', space=vmem, size = 0x9000, scoped, tag = 'internal scratch']
  %s0 = inlined_call_operand.vmem [shape: f32[32,16], index: 0, kind: input, shape index: {}]
  %s1 = inlined_call_operand.hbm [shape: f32[16,16,192], index: 1, kind: input, shape index: {}]
  %s2 = inlined_call_operand.vmem [shape: f32[16,16], index: 2, kind: input, shape index: {}]
  %s3 = inlined_call_operand.vmem [shape: f32[16,16], index: 3, kind: input, shape index: {}]
  %s4 = inlined_call_operand.vmem [shape: f32[1,16], index: 4, kind: input, shape index: {}]
  %s5 = inlined_call_operand.vmem [shape: f32[16,4], index: 5, kind: input, shape index: {}]
  %s6 = inlined_call_operand.vmem [shape: f32[8,3], index: 6, kind: input, shape index: {}]
  %s7 = inlined_call_operand.vmem [shape: f32[1,3], index: 7, kind: input, shape index: {}]
  %s8 = inlined_call_operand.vmem [shape: f32[32,3], index: 8, kind: output, shape index: {}]
  %s9 = sld [smem:[#allocation0]]
  $region46: #{tpu_custom_call.1} parent=0
    _
  %s11 = ssub.s32 1, %s9
  %s12 = scalar_select 0, %s11, %s9
  $region1: #{tpu_custom_call.1} parent=0
    #allocation2 [shape = 'u8[262144]{0}', space=vmem, size = 0x40000, scoped, tag = 'input window, operand 1, single buffered']
    #allocation3 [shape = 's32[1]{0}', space=sflag, size = 0x4, scoped, tag = 'scoped memory for tpu_custom_call.1']
    %13 = vsyncpa [#allocation3], 0
    // Predicated region
    $region2: #{tpu_custom_call.1} parent=1 // pred_check
      _
    $region3: #{tpu_custom_call.1} parent=1 // pred_check_branch
      %15 = sbr.rel (0) target = $region5
    $region4: #{tpu_custom_call.1} parent=1 // pred_region
      _
    $region5: #{tpu_custom_call.1} parent=1 // pred_fallthru
      _
    // Predicated region
    $region6: #{tpu_custom_call.1} parent=1 // pred_check
      _
    $region7: #{tpu_custom_call.1} parent=1 // pred_check_branch
      %17 = sbr.rel (0) target = $region9
    $region8: #{tpu_custom_call.1} parent=1 // pred_region
      %19 = vsyncadd [#allocation3], 0
      %s20 = sshll.u32 %s1, 4
      %s21 = int_to_ptr.hbm [resolvable:$true] %s20
      %s22 = sshll.u32 [#allocation2], 4
      %s23 = int_to_ptr.vmem [resolvable:$true] %s22
      %28 = dma.hbm_to_vmem [thread:$0]  %s21, 8192, %s23, [#allocation3], 256, 256, 16
    $region9: #{tpu_custom_call.1} parent=1 // pred_fallthru
      _
    // Predicated region
    $region10: #{tpu_custom_call.1} parent=1 // pred_check
      _
    $region11: #{tpu_custom_call.1} parent=1 // pred_check_branch
      %30 = sbr.rel (0) target = $region13
    $region12: #{tpu_custom_call.1} parent=1 // pred_region
      _
    $region13: #{tpu_custom_call.1} parent=1 // pred_fallthru
      _
    // Predicated region
    $region14: #{tpu_custom_call.1} parent=1 // pred_check
      _
    $region15: #{tpu_custom_call.1} parent=1 // pred_check_branch
      %32 = sbr.rel (0) target = $region17
    $region16: #{tpu_custom_call.1} parent=1 // pred_region
      _
    $region17: #{tpu_custom_call.1} parent=1 // pred_fallthru
      _
    // Predicated region
    $region18: #{tpu_custom_call.1} parent=1 // pred_check
      _
    $region19: #{tpu_custom_call.1} parent=1 // pred_check_branch
      %34 = sbr.rel (0) target = $region21
    $region20: #{tpu_custom_call.1} parent=1 // pred_region
      _
    $region21: #{tpu_custom_call.1} parent=1 // pred_fallthru
      _
    // Predicated region
    $region22: #{tpu_custom_call.1} parent=1 // pred_check
      _
    $region23: #{tpu_custom_call.1} parent=1 // pred_check_branch
      %36 = sbr.rel (0) target = $region25
    $region24: #{tpu_custom_call.1} parent=1 // pred_region
      _
    $region25: #{tpu_custom_call.1} parent=1 // pred_fallthru
      _
    // Predicated region
    $region26: #{tpu_custom_call.1} parent=1 // pred_check
      _
    $region27: #{tpu_custom_call.1} parent=1 // pred_check_branch
      %38 = sbr.rel (0) target = $region29
    $region28: #{tpu_custom_call.1} parent=1 // pred_region
      _
    $region29: #{tpu_custom_call.1} parent=1 // pred_fallthru
      _
    // Predicated region
    $region30: #{tpu_custom_call.1} parent=1 // pred_check
      _
    $region31: #{tpu_custom_call.1} parent=1 // pred_check_branch
      %40 = sbr.rel (0) target = $region33
    $region32: #{tpu_custom_call.1} parent=1 // pred_region
      _
    $region33: #{tpu_custom_call.1} parent=1 // pred_fallthru
      _
    // Predicated region
    $region34: #{tpu_custom_call.1} parent=1 // pred_check
      _
    $region35: #{tpu_custom_call.1} parent=1 // pred_check_branch
      %42 = sbr.rel (0) target = $region37
    $region36: #{tpu_custom_call.1} parent=1 // pred_region
      %44 = dma.done [#allocation3], 8192
    $region37: #{tpu_custom_call.1} parent=1 // pred_fallthru
      _
    %v45 = vlaneseq
    %v46 = vshrl.u32 %v45, 7
    %v47 = vadd.s32 %v46, 8
    %v48 = vadd.s32 %v46, 16
    %v49 = vadd.s32 %v46, 24
    %vm50 = vcmp.lt.s32.totalorder %v46, 0
    %v51 = vsub.s32 0, %v46
    %v52 = vsel %vm50, %v51, %v46
    %v53 = vshrl.u32 %v52, 4
    %v54 = vand.u32 %v52, 15
    %v55 = vsub.s32 0, %v54
    %v56 = vsel %vm50, %v55, %v54
    %vm57 = vcmp.lt.s32.totalorder %v47, 0
    %v58 = vsub.s32 0, %v47
    %v59 = vsel %vm57, %v58, %v47
    %v60 = vshrl.u32 %v59, 4
    %v61 = vand.u32 %v59, 15
    %v62 = vsub.s32 0, %v61
    %v63 = vsel %vm57, %v62, %v61
    %vm64 = vcmp.lt.s32.totalorder %v48, 0
    %v65 = vsub.s32 0, %v48
    %v66 = vsel %vm64, %v65, %v48
    %v67 = vshrl.u32 %v66, 4
    %v68 = vand.u32 %v66, 15
    %v69 = vsub.s32 0, %v68
    %v70 = vsel %vm64, %v69, %v68
    %vm71 = vcmp.lt.s32.totalorder %v49, 0
    %v72 = vsub.s32 0, %v49
    %v73 = vsel %vm71, %v72, %v49
    %v74 = vshrl.u32 %v73, 4
    %v75 = vand.u32 %v73, 15
    %v76 = vsub.s32 0, %v75
    %v77 = vsel %vm71, %v76, %v75
    %vm78 = vcmp.ne.s32.totalorder %v56, 0
    %vm79 = vcmp.ne.s32.totalorder %v63, 0
    %vm80 = vcmp.ne.s32.totalorder %v70, 0
    %vm81 = vcmp.ne.s32.totalorder %v77, 0
    %vm82 = vcmp.lt.s32.totalorder %v56, 0
    %vm83 = vcmp.lt.s32.totalorder %v63, 0
    %vm84 = vcmp.lt.s32.totalorder %v70, 0
    %vm85 = vcmp.lt.s32.totalorder %v77, 0
    %vm86 = vmand %vm82, %vm78
    %vm87 = vmand %vm83, %vm79
    %vm88 = vmand %vm84, %vm80
    %vm89 = vmand %vm85, %vm81
    %v90 = vadd.s32 %v56, 16
    %v91 = vadd.s32 %v63, 16
    %v92 = vadd.s32 %v70, 16
    %v93 = vadd.s32 %v77, 16
    %v94 = vsel %vm86, %v90, %v56
    %v95 = vsel %vm87, %v91, %v63
    %v96 = vsel %vm88, %v92, %v70
    %v97 = vsel %vm89, %v93, %v77
    %v98 = vld [vmem:[%s0] sm:$0xff]
    %v99 = vld [vmem:[%s0 + $0x8] sm:$0xff]
    %v100 = vld [vmem:[%s0 + $0x10] sm:$0xff]
    %v101 = vld [vmem:[%s0 + $0x18] sm:$0xff]
    %v102 = vld [vmem:[%s3] sm:$0xff]
    %v103 = vld [vmem:[%s3 + $0x8] sm:$0xff]
    %v104 = vld [vmem:[%s4] sm:$0x1]
    %v106 = vperm.slane %v104, 0
    %vm108 = vcmask 130048
    %v110 = vsel %vm108, %v98, 0
    %v113 = vsel %vm108, %v99, 0
    %v116 = vsel %vm108, %v100, 0
    %v119 = vsel %vm108, %v101, 0
    %121 = vmatpush.msra.mxu0 0.0
    %122 = vmatpush.msra.mxu0 0.0
    %123 = vmatpush.msra.mxu0 0.0
    %124 = vmatpush.msra.mxu0 0.0
    %125 = vmatpush.msra.mxu0 0.0
    %126 = vmatpush.msra.mxu0 0.0
    %127 = vmatpush.msra.mxu0 0.0
    %128 = vmatpush.msra.mxu0 0.0
    %129 = vmatpush.msra.mxu0 0.0
    %130 = vmatpush.msra.mxu0 0.0
    %131 = vmatpush.msra.mxu0 0.0
    %132 = vmatpush.msra.mxu0 0.0
    %133 = vmatpush.msra.mxu0 0.0
    %134 = vmatpush.msra.mxu0 0.0
    %135 = vmatpush.msra.mxu0 %v103
    %136 = vmatpush.msra.mxu0 %v102
    %137 = vmatmul.f32.gmra.mxu0 %v110
    %v138 = vpop.f32.mrf.mxu0
    %v139 = vadd.f32 %v106, %v138
    %140 = vmatmul.f32.gmra.mxu0 %v113
    %v141 = vpop.f32.mrf.mxu0
    %v142 = vadd.f32 %v106, %v141
    %143 = vmatmul.f32.gmra.mxu0 %v116
    %v144 = vpop.f32.mrf.mxu0
    %v145 = vadd.f32 %v106, %v144
    %146 = vmatmul.f32.gmra.mxu0 %v119
    %v147 = vpop.f32.mrf.mxu0
    %v148 = vadd.f32 %v106, %v147
    %149 = vdwg.mxu0
    %vm150 = vcmp.ge.s32.totalorder %v94, 11
    %vm151 = vcmp.ge.s32.totalorder %v95, 11
    %vm152 = vcmp.ge.s32.totalorder %v96, 11
    %vm153 = vcmp.ge.s32.totalorder %v97, 11
    %vm154 = vcmask 1042432
    %v155 = vrot.slane %v100, 5
    %v156 = vrot.slane %v101, 5
    %v157 = vsel %vm154, %v155, %v156
    %v160 = vrot.slane %v98, 5
    %v161 = vrot.slane %v99, 5
    %v162 = vsel %vm154, %v160, %v161
    %v163 = vsel %vm154, %v161, %v155
    %v167 = vsel %vm154, %v156, %v160
    %v168 = vsel %vm150, %v157, 0.0
    %v169 = vsel %vm151, %v167, 0.0
    %v170 = vsel %vm152, %v162, 0.0
    %v171 = vsel %vm153, %v163, 0.0
    %vm172 = vcmp.ge.s32.totalorder %v94, 10
    %vm173 = vcmp.ge.s32.totalorder %v95, 10
    %vm174 = vcmp.ge.s32.totalorder %v96, 10
    %vm175 = vcmp.ge.s32.totalorder %v97, 10
    %vm176 = vcmask 1041408
    %v177 = vrot.slane %v100, 6
    %v178 = vrot.slane %v101, 6
    %v179 = vsel %vm176, %v177, %v178
    %v182 = vrot.slane %v98, 6
    %v183 = vrot.slane %v99, 6
    %v184 = vsel %vm176, %v182, %v183
    %v185 = vsel %vm176, %v183, %v177
    %v189 = vsel %vm176, %v178, %v182
    %v190 = vsel %vm172, %v179, 0.0
    %v191 = vsel %vm173, %v189, 0.0
    %v192 = vsel %vm174, %v184, 0.0
    %v193 = vsel %vm175, %v185, 0.0
    %198 = vrot.lane.b32.xlu0 %v190, 16
    %v199 = vpop.permute.xlu0 %198
    %200 = vrot.lane.b32.xlu0 %v191, 16
    %v201 = vpop.permute.xlu0 %200
    %202 = vrot.lane.b32.xlu0 %v192, 16
    %v203 = vpop.permute.xlu0 %202
    %204 = vrot.lane.b32.xlu0 %v193, 16
    %v205 = vpop.permute.xlu0 %204
    %v210 = vsel %vm108, %v168, %v199
    %v211 = vsel %vm108, %v169, %v201
    %v212 = vsel %vm108, %v170, %v203
    %v213 = vsel %vm108, %v171, %v205
    %vm214 = vcmp.ge.s32.totalorder %v94, 9
    %vm215 = vcmp.ge.s32.totalorder %v95, 9
    %vm216 = vcmp.ge.s32.totalorder %v96, 9
    %vm217 = vcmp.ge.s32.totalorder %v97, 9
    %vm218 = vcmask 1040384
    %v219 = vrot.slane %v100, 7
    %v220 = vrot.slane %v101, 7
    %v221 = vsel %vm218, %v219, %v220
    %v224 = vrot.slane %v98, 7
    %v225 = vrot.slane %v99, 7
    %v226 = vsel %vm218, %v224, %v225
    %v227 = vsel %vm218, %v225, %v219
    %v231 = vsel %vm218, %v220, %v224
    %v232 = vsel %vm214, %v221, 0.0
    %v233 = vsel %vm215, %v231, 0.0
    %v234 = vsel %vm216, %v226, 0.0
    %v235 = vsel %vm217, %v227, 0.0
    %240 = vrot.lane.b32.xlu0 %v232, 32
    %v241 = vpop.permute.xlu0 %240
    %242 = vrot.lane.b32.xlu0 %v233, 32
    %v243 = vpop.permute.xlu0 %242
    %244 = vrot.lane.b32.xlu0 %v234, 32
    %v245 = vpop.permute.xlu0 %244
    %246 = vrot.lane.b32.xlu0 %v235, 32
    %v247 = vpop.permute.xlu0 %246
    %vm252 = vcmask 261120
    %v253 = vsel %vm252, %v210, %v241
    %v254 = vsel %vm252, %v211, %v243
    %v255 = vsel %vm252, %v212, %v245
    %v256 = vsel %vm252, %v213, %v247
    %vm257 = vcmp.ge.s32.totalorder %v94, 8
    %vm258 = vcmp.ge.s32.totalorder %v95, 8
    %vm259 = vcmp.ge.s32.totalorder %v96, 8
    %vm260 = vcmp.ge.s32.totalorder %v97, 8
    %v261 = vsel %vm257, %v101, 0.0
    %v262 = vsel %vm258, %v98, 0.0
    %v263 = vsel %vm259, %v99, 0.0
    %v264 = vsel %vm260, %v100, 0.0
    %269 = vrot.lane.b32.xlu0 %v261, 48
    %v270 = vpop.permute.xlu0 %269
    %271 = vrot.lane.b32.xlu0 %v262, 48
    %v272 = vpop.permute.xlu0 %271
    %273 = vrot.lane.b32.xlu0 %v263, 48
    %v274 = vpop.permute.xlu0 %273
    %275 = vrot.lane.b32.xlu0 %v264, 48
    %v276 = vpop.permute.xlu0 %275
    %vm281 = vcmask 392192
    %v282 = vsel %vm281, %v253, %v270
    %v283 = vsel %vm281, %v254, %v272
    %v284 = vsel %vm281, %v255, %v274
    %v285 = vsel %vm281, %v256, %v276
    %vm286 = vcmp.ge.s32.totalorder %v94, 7
    %vm287 = vcmp.ge.s32.totalorder %v95, 7
    %vm288 = vcmp.ge.s32.totalorder %v96, 7
    %vm289 = vcmp.ge.s32.totalorder %v97, 7
    %v290 = vrot.slane %v101, 1
    %vm292 = vcmask 1046528
    %v293 = vrot.slane %v98, 1
    %v294 = vrot.slane %v99, 1
    %v295 = vsel %vm292, %v293, %v294
    %v296 = vrot.slane %v100, 1
    %v297 = vsel %vm292, %v294, %v296
    %v298 = vsel %vm292, %v296, %v290
    %v303 = vsel %vm292, %v290, %v293
    %v304 = vsel %vm286, %v303, 0.0
    %v305 = vsel %vm287, %v295, 0.0
    %v306 = vsel %vm288, %v297, 0.0
    %v307 = vsel %vm289, %v298, 0.0
    %312 = vrot.lane.b32.xlu0 %v304, 64
    %v313 = vpop.permute.xlu0 %312
    %314 = vrot.lane.b32.xlu0 %v305, 64
    %v315 = vpop.permute.xlu0 %314
    %316 = vrot.lane.b32.xlu0 %v306, 64
    %v317 = vpop.permute.xlu0 %316
    %318 = vrot.lane.b32.xlu0 %v307, 64
    %v319 = vpop.permute.xlu0 %318
    %vm324 = vcmask 523264
    %v325 = vsel %vm324, %v282, %v313
    %v326 = vsel %vm324, %v283, %v315
    %v327 = vsel %vm324, %v284, %v317
    %v328 = vsel %vm324, %v285, %v319
    %vm329 = vcmp.ge.s32.totalorder %v94, 6
    %vm330 = vcmp.ge.s32.totalorder %v95, 6
    %vm331 = vcmp.ge.s32.totalorder %v96, 6
    %vm332 = vcmp.ge.s32.totalorder %v97, 6
    %v333 = vrot.slane %v101, 2
    %vm335 = vcmask 1045504
    %v336 = vrot.slane %v98, 2
    %v337 = vrot.slane %v99, 2
    %v338 = vsel %vm335, %v336, %v337
    %v339 = vrot.slane %v100, 2
    %v340 = vsel %vm335, %v337, %v339
    %v341 = vsel %vm335, %v339, %v333
    %v346 = vsel %vm335, %v333, %v336
    %v347 = vsel %vm329, %v346, 0.0
    %v348 = vsel %vm330, %v338, 0.0
    %v349 = vsel %vm331, %v340, 0.0
    %v350 = vsel %vm332, %v341, 0.0
    %355 = vrot.lane.b32.xlu0 %v347, 80
    %v356 = vpop.permute.xlu0 %355
    %357 = vrot.lane.b32.xlu0 %v348, 80
    %v358 = vpop.permute.xlu0 %357
    %359 = vrot.lane.b32.xlu0 %v349, 80
    %v360 = vpop.permute.xlu0 %359
    %361 = vrot.lane.b32.xlu0 %v350, 80
    %v362 = vpop.permute.xlu0 %361
    %vm367 = vcmask 654336
    %v368 = vsel %vm367, %v325, %v356
    %v369 = vsel %vm367, %v326, %v358
    %v370 = vsel %vm367, %v327, %v360
    %v371 = vsel %vm367, %v328, %v362
    %vm372 = vcmp.ge.s32.totalorder %v94, 5
    %vm373 = vcmp.ge.s32.totalorder %v95, 5
    %vm374 = vcmp.ge.s32.totalorder %v96, 5
    %vm375 = vcmp.ge.s32.totalorder %v97, 5
    %v376 = vrot.slane %v101, 3
    %vm378 = vcmask 1044480
    %v379 = vrot.slane %v98, 3
    %v380 = vrot.slane %v99, 3
    %v381 = vsel %vm378, %v379, %v380
    %v382 = vrot.slane %v100, 3
    %v383 = vsel %vm378, %v380, %v382
    %v384 = vsel %vm378, %v382, %v376
    %v389 = vsel %vm378, %v376, %v379
    %v390 = vsel %vm372, %v389, 0.0
    %v391 = vsel %vm373, %v381, 0.0
    %v392 = vsel %vm374, %v383, 0.0
    %v393 = vsel %vm375, %v384, 0.0
    %398 = vrot.lane.b32.xlu0 %v390, 96
    %v399 = vpop.permute.xlu0 %398
    %400 = vrot.lane.b32.xlu0 %v391, 96
    %v401 = vpop.permute.xlu0 %400
    %402 = vrot.lane.b32.xlu0 %v392, 96
    %v403 = vpop.permute.xlu0 %402
    %404 = vrot.lane.b32.xlu0 %v393, 96
    %v405 = vpop.permute.xlu0 %404
    %vm410 = vcmask 785408
    %v411 = vsel %vm410, %v368, %v399
    %v412 = vsel %vm410, %v369, %v401
    %v413 = vsel %vm410, %v370, %v403
    %v414 = vsel %vm410, %v371, %v405
    %vm415 = vcmp.ge.s32.totalorder %v94, 4
    %vm416 = vcmp.ge.s32.totalorder %v95, 4
    %vm417 = vcmp.ge.s32.totalorder %v96, 4
    %vm418 = vcmp.ge.s32.totalorder %v97, 4
    %v419 = vrot.slane %v101, 4
    %vm421 = vcmask 1043456
    %v422 = vrot.slane %v98, 4
    %v423 = vrot.slane %v99, 4
    %v424 = vsel %vm421, %v422, %v423
    %v425 = vrot.slane %v100, 4
    %v426 = vsel %vm421, %v423, %v425
    %v427 = vsel %vm421, %v425, %v419
    %v432 = vsel %vm421, %v419, %v422
    %v433 = vsel %vm415, %v432, 0.0
    %v434 = vsel %vm416, %v424, 0.0
    %v435 = vsel %vm417, %v426, 0.0
    %v436 = vsel %vm418, %v427, 0.0
    %441 = vrot.lane.b32.xlu0 %v433, 112
    %v442 = vpop.permute.xlu0 %441
    %443 = vrot.lane.b32.xlu0 %v434, 112
    %v444 = vpop.permute.xlu0 %443
    %445 = vrot.lane.b32.xlu0 %v435, 112
    %v446 = vpop.permute.xlu0 %445
    %447 = vrot.lane.b32.xlu0 %v436, 112
    %v448 = vpop.permute.xlu0 %447
    %vm453 = vcmask 916480
    %v454 = vsel %vm453, %v411, %v442
    %v455 = vsel %vm453, %v412, %v444
    %v456 = vsel %vm453, %v413, %v446
    %v457 = vsel %vm453, %v414, %v448
    %vm458 = vcmp.ge.s32.totalorder %v94, 3
    %vm459 = vcmp.ge.s32.totalorder %v95, 3
    %vm460 = vcmp.ge.s32.totalorder %v96, 3
    %vm461 = vcmp.ge.s32.totalorder %v97, 3
    %v462 = vsel %vm458, %v167, 0.0
    %v463 = vsel %vm459, %v162, 0.0
    %v464 = vsel %vm460, %v163, 0.0
    %v465 = vsel %vm461, %v157, 0.0
    %vm466 = vcmp.ge.s32.totalorder %v94, 2
    %vm467 = vcmp.ge.s32.totalorder %v95, 2
    %vm468 = vcmp.ge.s32.totalorder %v96, 2
    %vm469 = vcmp.ge.s32.totalorder %v97, 2
    %v470 = vsel %vm466, %v189, 0.0
    %v471 = vsel %vm467, %v184, 0.0
    %v472 = vsel %vm468, %v185, 0.0
    %v473 = vsel %vm469, %v179, 0.0
    %478 = vrot.lane.b32.xlu0 %v470, 16
    %v479 = vpop.permute.xlu0 %478
    %480 = vrot.lane.b32.xlu0 %v471, 16
    %v481 = vpop.permute.xlu0 %480
    %482 = vrot.lane.b32.xlu0 %v472, 16
    %v483 = vpop.permute.xlu0 %482
    %484 = vrot.lane.b32.xlu0 %v473, 16
    %v485 = vpop.permute.xlu0 %484
    %v490 = vsel %vm108, %v462, %v479
    %v491 = vsel %vm108, %v463, %v481
    %v492 = vsel %vm108, %v464, %v483
    %v493 = vsel %vm108, %v465, %v485
    %vm494 = vcmp.ge.s32.totalorder %v94, 1
    %vm495 = vcmp.ge.s32.totalorder %v95, 1
    %vm496 = vcmp.ge.s32.totalorder %v96, 1
    %vm497 = vcmp.ge.s32.totalorder %v97, 1
    %v498 = vsel %vm494, %v231, 0.0
    %v499 = vsel %vm495, %v226, 0.0
    %v500 = vsel %vm496, %v227, 0.0
    %v501 = vsel %vm497, %v221, 0.0
    %506 = vrot.lane.b32.xlu0 %v498, 32
    %v507 = vpop.permute.xlu0 %506
    %508 = vrot.lane.b32.xlu0 %v499, 32
    %v509 = vpop.permute.xlu0 %508
    %510 = vrot.lane.b32.xlu0 %v500, 32
    %v511 = vpop.permute.xlu0 %510
    %512 = vrot.lane.b32.xlu0 %v501, 32
    %v513 = vpop.permute.xlu0 %512
    %v518 = vsel %vm252, %v490, %v507
    %v519 = vsel %vm252, %v491, %v509
    %v520 = vsel %vm252, %v492, %v511
    %v521 = vsel %vm252, %v493, %v513
    %522 = vrot.lane.b32.xlu0 %v98, 48
    %v523 = vpop.permute.xlu0 %522
    %524 = vrot.lane.b32.xlu0 %v99, 48
    %v525 = vpop.permute.xlu0 %524
    %526 = vrot.lane.b32.xlu0 %v100, 48
    %v527 = vpop.permute.xlu0 %526
    %528 = vrot.lane.b32.xlu0 %v101, 48
    %v529 = vpop.permute.xlu0 %528
    %v534 = vsel %vm281, %v518, %v523
    %v535 = vsel %vm281, %v519, %v525
    %v536 = vsel %vm281, %v520, %v527
    %v537 = vsel %vm281, %v521, %v529
    %v538 = vld [vmem:[#allocation2] sm:$0xff]
    %v539 = vld [vmem:[#allocation2 + $0x8] sm:$0xff]
    %v540 = vld [vmem:[#allocation2 + $0x10] sm:$0xff]
    %v541 = vld [vmem:[#allocation2 + $0x18] sm:$0xff]
    %v542 = vld [vmem:[%s2] sm:$0x1]
    %v543 = vperm.slane %v542, 0
    %v545 = vsel %vm324, %v534, 0
    %v548 = vsel %vm324, %v535, 0
    %v551 = vsel %vm324, %v536, 0
    %v554 = vsel %vm324, %v537, 0
    %v557 = vsel %vm324, %v539, 0
    %v560 = vsel %vm324, %v541, 0
    %562 = vmatpush.xpose.msra.mxu0 0.0
    %563 = vmatpush.xpose.msra.mxu0 0.0
    %564 = vmatpush.xpose.msra.mxu0 0.0
    %565 = vmatpush.xpose.msra.mxu0 0.0
    %566 = vmatpush.xpose.msra.mxu0 0.0
    %567 = vmatpush.xpose.msra.mxu0 0.0
    %568 = vmatpush.xpose.msra.mxu0 0.0
    %569 = vmatpush.xpose.msra.mxu0 0.0
    %570 = vmatpush.xpose.msra.mxu0 0.0
    %571 = vmatpush.xpose.msra.mxu0 0.0
    %572 = vmatpush.xpose.msra.mxu0 0.0
    %573 = vmatpush.xpose.msra.mxu0 0.0
    %574 = vmatpush.xpose.msra.mxu0 0.0
    %575 = vmatpush.xpose.msra.mxu0 0.0
    %576 = vmatpush.xpose.msra.mxu0 %v540
    %577 = vmatpush.xpose.msra.mxu0 %v538
    %578 = vmatmul.f32.gmra.mxu0 %v454
    %v579 = vpop.f32.mrf.mxu0
    %v580 = vadd.f32 %v543, %v579
    %581 = vmatmul.f32.gmra.mxu0 %v455
    %v582 = vpop.f32.mrf.mxu0
    %v583 = vadd.f32 %v543, %v582
    %584 = vmatmul.f32.gmra.mxu0 %v456
    %v585 = vpop.f32.mrf.mxu0
    %v586 = vadd.f32 %v543, %v585
    %587 = vmatmul.f32.gmra.mxu0 %v457
    %v588 = vpop.f32.mrf.mxu0
    %v589 = vadd.f32 %v543, %v588
    %590 = vdwg.mxu0
    %591 = vmatpush.xpose.msra.mxu0 0.0
    %592 = vmatpush.xpose.msra.mxu0 0.0
    %593 = vmatpush.xpose.msra.mxu0 0.0
    %594 = vmatpush.xpose.msra.mxu0 0.0
    %595 = vmatpush.xpose.msra.mxu0 0.0
    %596 = vmatpush.xpose.msra.mxu0 0.0
    %597 = vmatpush.xpose.msra.mxu0 0.0
    %598 = vmatpush.xpose.msra.mxu0 0.0
    %599 = vmatpush.xpose.msra.mxu0 0.0
    %600 = vmatpush.xpose.msra.mxu0 0.0
    %601 = vmatpush.xpose.msra.mxu0 0.0
    %602 = vmatpush.xpose.msra.mxu0 0.0
    %603 = vmatpush.xpose.msra.mxu0 0.0
    %604 = vmatpush.xpose.msra.mxu0 0.0
    %605 = vmatpush.xpose.msra.mxu0 %v560
    %606 = vmatpush.xpose.msra.mxu0 %v557
    %607 = vmatmul.f32.gmra.mxu0 %v545
    %v608 = vpop.f32.mrf.mxu0
    %v609 = vadd.f32 %v580, %v608
    %610 = vmatmul.f32.gmra.mxu0 %v548
    %v611 = vpop.f32.mrf.mxu0
    %v612 = vadd.f32 %v583, %v611
    %613 = vmatmul.f32.gmra.mxu0 %v551
    %v614 = vpop.f32.mrf.mxu0
    %v615 = vadd.f32 %v586, %v614
    %616 = vmatmul.f32.gmra.mxu0 %v554
    %v617 = vpop.f32.mrf.mxu0
    %v618 = vadd.f32 %v589, %v617
    %619 = vdwg.mxu0
    %v620 = vtanh.pop %v609
    %v621 = vtanh.pop %v612
    %v622 = vtanh.pop %v615
    %v623 = vtanh.pop %v618
    %v626 = vrot.slane %v622, 5
    %v627 = vrot.slane %v623, 5
    %v628 = vsel %vm154, %v626, %v627
    %v633 = vrot.slane %v620, 5
    %v634 = vrot.slane %v621, 5
    %v635 = vsel %vm154, %v633, %v634
    %v636 = vsel %vm154, %v634, %v626
    %v640 = vsel %vm154, %v627, %v633
    %v641 = vsel %vm150, %v628, 0.0
    %v642 = vsel %vm151, %v640, 0.0
    %v643 = vsel %vm152, %v635, 0.0
    %v644 = vsel %vm153, %v636, 0.0
    %v645 = vrot.slane %v622, 6
    %v646 = vrot.slane %v623, 6
    %v647 = vsel %vm176, %v645, %v646
    %v650 = vrot.slane %v620, 6
    %v651 = vrot.slane %v621, 6
    %v652 = vsel %vm176, %v650, %v651
    %v653 = vsel %vm176, %v651, %v645
    %v657 = vsel %vm176, %v646, %v650
    %v658 = vsel %vm172, %v647, 0.0
    %v659 = vsel %vm173, %v657, 0.0
    %v660 = vsel %vm174, %v652, 0.0
    %v661 = vsel %vm175, %v653, 0.0
    %666 = vrot.lane.b32.xlu0 %v658, 16
    %v667 = vpop.permute.xlu0 %666
    %668 = vrot.lane.b32.xlu0 %v659, 16
    %v669 = vpop.permute.xlu0 %668
    %670 = vrot.lane.b32.xlu0 %v660, 16
    %v671 = vpop.permute.xlu0 %670
    %672 = vrot.lane.b32.xlu0 %v661, 16
    %v673 = vpop.permute.xlu0 %672
    %v678 = vsel %vm108, %v641, %v667
    %v679 = vsel %vm108, %v642, %v669
    %v680 = vsel %vm108, %v643, %v671
    %v681 = vsel %vm108, %v644, %v673
    %v682 = vrot.slane %v622, 7
    %v683 = vrot.slane %v623, 7
    %v684 = vsel %vm218, %v682, %v683
    %v687 = vrot.slane %v620, 7
    %v688 = vrot.slane %v621, 7
    %v689 = vsel %vm218, %v687, %v688
    %v690 = vsel %vm218, %v688, %v682
    %v694 = vsel %vm218, %v683, %v687
    %v695 = vsel %vm214, %v684, 0.0
    %v696 = vsel %vm215, %v694, 0.0
    %v697 = vsel %vm216, %v689, 0.0
    %v698 = vsel %vm217, %v690, 0.0
    %703 = vrot.lane.b32.xlu0 %v695, 32
    %v704 = vpop.permute.xlu0 %703
    %705 = vrot.lane.b32.xlu0 %v696, 32
    %v706 = vpop.permute.xlu0 %705
    %707 = vrot.lane.b32.xlu0 %v697, 32
    %v708 = vpop.permute.xlu0 %707
    %709 = vrot.lane.b32.xlu0 %v698, 32
    %v710 = vpop.permute.xlu0 %709
    %v715 = vsel %vm252, %v678, %v704
    %v716 = vsel %vm252, %v679, %v706
    %v717 = vsel %vm252, %v680, %v708
    %v718 = vsel %vm252, %v681, %v710
    %v719 = vsel %vm257, %v623, 0.0
    %v720 = vsel %vm258, %v620, 0.0
    %v721 = vsel %vm259, %v621, 0.0
    %v722 = vsel %vm260, %v622, 0.0
    %727 = vrot.lane.b32.xlu0 %v719, 48
    %v728 = vpop.permute.xlu0 %727
    %729 = vrot.lane.b32.xlu0 %v720, 48
    %v730 = vpop.permute.xlu0 %729
    %731 = vrot.lane.b32.xlu0 %v721, 48
    %v732 = vpop.permute.xlu0 %731
    %733 = vrot.lane.b32.xlu0 %v722, 48
    %v734 = vpop.permute.xlu0 %733
    %v739 = vsel %vm281, %v715, %v728
    %v740 = vsel %vm281, %v716, %v730
    %v741 = vsel %vm281, %v717, %v732
    %v742 = vsel %vm281, %v718, %v734
    %v743 = vrot.slane %v623, 1
    %v745 = vrot.slane %v620, 1
    %v746 = vrot.slane %v621, 1
    %v747 = vsel %vm292, %v745, %v746
    %v748 = vrot.slane %v622, 1
    %v749 = vsel %vm292, %v746, %v748
    %v750 = vsel %vm292, %v748, %v743
    %v755 = vsel %vm292, %v743, %v745
    %v756 = vsel %vm286, %v755, 0.0
    %v757 = vsel %vm287, %v747, 0.0
    %v758 = vsel %vm288, %v749, 0.0
    %v759 = vsel %vm289, %v750, 0.0
    %764 = vrot.lane.b32.xlu0 %v756, 64
    %v765 = vpop.permute.xlu0 %764
    %766 = vrot.lane.b32.xlu0 %v757, 64
    %v767 = vpop.permute.xlu0 %766
    %768 = vrot.lane.b32.xlu0 %v758, 64
    %v769 = vpop.permute.xlu0 %768
    %770 = vrot.lane.b32.xlu0 %v759, 64
    %v771 = vpop.permute.xlu0 %770
    %v776 = vsel %vm324, %v739, %v765
    %v777 = vsel %vm324, %v740, %v767
    %v778 = vsel %vm324, %v741, %v769
    %v779 = vsel %vm324, %v742, %v771
    %v780 = vrot.slane %v623, 2
    %v782 = vrot.slane %v620, 2
    %v783 = vrot.slane %v621, 2
    %v784 = vsel %vm335, %v782, %v783
    %v785 = vrot.slane %v622, 2
    %v786 = vsel %vm335, %v783, %v785
    %v787 = vsel %vm335, %v785, %v780
    %v792 = vsel %vm335, %v780, %v782
    %v793 = vsel %vm329, %v792, 0.0
    %v794 = vsel %vm330, %v784, 0.0
    %v795 = vsel %vm331, %v786, 0.0
    %v796 = vsel %vm332, %v787, 0.0
    %801 = vrot.lane.b32.xlu0 %v793, 80
    %v802 = vpop.permute.xlu0 %801
    %803 = vrot.lane.b32.xlu0 %v794, 80
    %v804 = vpop.permute.xlu0 %803
    %805 = vrot.lane.b32.xlu0 %v795, 80
    %v806 = vpop.permute.xlu0 %805
    %807 = vrot.lane.b32.xlu0 %v796, 80
    %v808 = vpop.permute.xlu0 %807
    %v813 = vsel %vm367, %v776, %v802
    %v814 = vsel %vm367, %v777, %v804
    %v815 = vsel %vm367, %v778, %v806
    %v816 = vsel %vm367, %v779, %v808
    %v817 = vrot.slane %v623, 3
    %v819 = vrot.slane %v620, 3
    %v820 = vrot.slane %v621, 3
    %v821 = vsel %vm378, %v819, %v820
    %v822 = vrot.slane %v622, 3
    %v823 = vsel %vm378, %v820, %v822
    %v824 = vsel %vm378, %v822, %v817
    %v829 = vsel %vm378, %v817, %v819
    %v830 = vsel %vm372, %v829, 0.0
    %v831 = vsel %vm373, %v821, 0.0
    %v832 = vsel %vm374, %v823, 0.0
    %v833 = vsel %vm375, %v824, 0.0
    %838 = vrot.lane.b32.xlu0 %v830, 96
    %v839 = vpop.permute.xlu0 %838
    %840 = vrot.lane.b32.xlu0 %v831, 96
    %v841 = vpop.permute.xlu0 %840
    %842 = vrot.lane.b32.xlu0 %v832, 96
    %v843 = vpop.permute.xlu0 %842
    %844 = vrot.lane.b32.xlu0 %v833, 96
    %v845 = vpop.permute.xlu0 %844
    %v850 = vsel %vm410, %v813, %v839
    %v851 = vsel %vm410, %v814, %v841
    %v852 = vsel %vm410, %v815, %v843
    %v853 = vsel %vm410, %v816, %v845
    %v854 = vrot.slane %v623, 4
    %v856 = vrot.slane %v620, 4
    %v857 = vrot.slane %v621, 4
    %v858 = vsel %vm421, %v856, %v857
    %v859 = vrot.slane %v622, 4
    %v860 = vsel %vm421, %v857, %v859
    %v861 = vsel %vm421, %v859, %v854
    %v866 = vsel %vm421, %v854, %v856
    %v867 = vsel %vm415, %v866, 0.0
    %v868 = vsel %vm416, %v858, 0.0
    %v869 = vsel %vm417, %v860, 0.0
    %v870 = vsel %vm418, %v861, 0.0
    %875 = vrot.lane.b32.xlu0 %v867, 112
    %v876 = vpop.permute.xlu0 %875
    %877 = vrot.lane.b32.xlu0 %v868, 112
    %v878 = vpop.permute.xlu0 %877
    %879 = vrot.lane.b32.xlu0 %v869, 112
    %v880 = vpop.permute.xlu0 %879
    %881 = vrot.lane.b32.xlu0 %v870, 112
    %v882 = vpop.permute.xlu0 %881
    %v887 = vsel %vm453, %v850, %v876
    %v888 = vsel %vm453, %v851, %v878
    %v889 = vsel %vm453, %v852, %v880
    %v890 = vsel %vm453, %v853, %v882
    %v891 = vsel %vm458, %v640, 0.0
    %v892 = vsel %vm459, %v635, 0.0
    %v893 = vsel %vm460, %v636, 0.0
    %v894 = vsel %vm461, %v628, 0.0
    %v895 = vsel %vm466, %v657, 0.0
    %v896 = vsel %vm467, %v652, 0.0
    %v897 = vsel %vm468, %v653, 0.0
    %v898 = vsel %vm469, %v647, 0.0
    %903 = vrot.lane.b32.xlu0 %v895, 16
    %v904 = vpop.permute.xlu0 %903
    %905 = vrot.lane.b32.xlu0 %v896, 16
    %v906 = vpop.permute.xlu0 %905
    %907 = vrot.lane.b32.xlu0 %v897, 16
    %v908 = vpop.permute.xlu0 %907
    %909 = vrot.lane.b32.xlu0 %v898, 16
    %v910 = vpop.permute.xlu0 %909
    %v915 = vsel %vm108, %v891, %v904
    %v916 = vsel %vm108, %v892, %v906
    %v917 = vsel %vm108, %v893, %v908
    %v918 = vsel %vm108, %v894, %v910
    %v919 = vsel %vm494, %v694, 0.0
    %v920 = vsel %vm495, %v689, 0.0
    %v921 = vsel %vm496, %v690, 0.0
    %v922 = vsel %vm497, %v684, 0.0
    %927 = vrot.lane.b32.xlu0 %v919, 32
    %v928 = vpop.permute.xlu0 %927
    %929 = vrot.lane.b32.xlu0 %v920, 32
    %v930 = vpop.permute.xlu0 %929
    %931 = vrot.lane.b32.xlu0 %v921, 32
    %v932 = vpop.permute.xlu0 %931
    %933 = vrot.lane.b32.xlu0 %v922, 32
    %v934 = vpop.permute.xlu0 %933
    %v939 = vsel %vm252, %v915, %v928
    %v940 = vsel %vm252, %v916, %v930
    %v941 = vsel %vm252, %v917, %v932
    %v942 = vsel %vm252, %v918, %v934
    %943 = vrot.lane.b32.xlu0 %v620, 48
    %v944 = vpop.permute.xlu0 %943
    %945 = vrot.lane.b32.xlu0 %v621, 48
    %v946 = vpop.permute.xlu0 %945
    %947 = vrot.lane.b32.xlu0 %v622, 48
    %v948 = vpop.permute.xlu0 %947
    %949 = vrot.lane.b32.xlu0 %v623, 48
    %v950 = vpop.permute.xlu0 %949
    %v955 = vsel %vm281, %v939, %v944
    %v956 = vsel %vm281, %v940, %v946
    %v957 = vsel %vm281, %v941, %v948
    %v958 = vsel %vm281, %v942, %v950
    %s959 = scalar_lea.vmem [#allocation2], 32
    %v960 = vld [vmem:[%s959] sm:$0xff]
    %v961 = vld [vmem:[%s959 + $0x8] sm:$0xff]
    %v962 = vld [vmem:[%s959 + $0x10] sm:$0xff]
    %v963 = vld [vmem:[%s959 + $0x18] sm:$0xff]
    %v964 = vld [vmem:[%s2 + $0x1] sm:$0x1]
    %v965 = vperm.slane %v964, 0
    %v967 = vsel %vm324, %v955, 0
    %v970 = vsel %vm324, %v956, 0
    %v973 = vsel %vm324, %v957, 0
    %v976 = vsel %vm324, %v958, 0
    %v979 = vsel %vm324, %v961, 0
    %v982 = vsel %vm324, %v963, 0
    %984 = vmatpush.xpose.msra.mxu0 0.0
    %985 = vmatpush.xpose.msra.mxu0 0.0
    %986 = vmatpush.xpose.msra.mxu0 0.0
    %987 = vmatpush.xpose.msra.mxu0 0.0
    %988 = vmatpush.xpose.msra.mxu0 0.0
    %989 = vmatpush.xpose.msra.mxu0 0.0
    %990 = vmatpush.xpose.msra.mxu0 0.0
    %991 = vmatpush.xpose.msra.mxu0 0.0
    %992 = vmatpush.xpose.msra.mxu0 0.0
    %993 = vmatpush.xpose.msra.mxu0 0.0
    %994 = vmatpush.xpose.msra.mxu0 0.0
    %995 = vmatpush.xpose.msra.mxu0 0.0
    %996 = vmatpush.xpose.msra.mxu0 0.0
    %997 = vmatpush.xpose.msra.mxu0 0.0
    %998 = vmatpush.xpose.msra.mxu0 %v962
    %999 = vmatpush.xpose.msra.mxu0 %v960
    %1000 = vmatmul.f32.gmra.mxu0 %v887
    %v1001 = vpop.f32.mrf.mxu0
    %v1002 = vadd.f32 %v965, %v1001
    %1003 = vmatmul.f32.gmra.mxu0 %v888
    %v1004 = vpop.f32.mrf.mxu0
    %v1005 = vadd.f32 %v965, %v1004
    %1006 = vmatmul.f32.gmra.mxu0 %v889
    %v1007 = vpop.f32.mrf.mxu0
    %v1008 = vadd.f32 %v965, %v1007
    %1009 = vmatmul.f32.gmra.mxu0 %v890
    %v1010 = vpop.f32.mrf.mxu0
    %v1011 = vadd.f32 %v965, %v1010
    %1012 = vdwg.mxu0
    %1013 = vmatpush.xpose.msra.mxu0 0.0
    %1014 = vmatpush.xpose.msra.mxu0 0.0
    %1015 = vmatpush.xpose.msra.mxu0 0.0
    %1016 = vmatpush.xpose.msra.mxu0 0.0
    %1017 = vmatpush.xpose.msra.mxu0 0.0
    %1018 = vmatpush.xpose.msra.mxu0 0.0
    %1019 = vmatpush.xpose.msra.mxu0 0.0
    %1020 = vmatpush.xpose.msra.mxu0 0.0
    %1021 = vmatpush.xpose.msra.mxu0 0.0
    %1022 = vmatpush.xpose.msra.mxu0 0.0
    %1023 = vmatpush.xpose.msra.mxu0 0.0
    %1024 = vmatpush.xpose.msra.mxu0 0.0
    %1025 = vmatpush.xpose.msra.mxu0 0.0
    %1026 = vmatpush.xpose.msra.mxu0 0.0
    %1027 = vmatpush.xpose.msra.mxu0 %v982
    %1028 = vmatpush.xpose.msra.mxu0 %v979
    %1029 = vmatmul.f32.gmra.mxu0 %v967
    %v1030 = vpop.f32.mrf.mxu0
    %v1031 = vadd.f32 %v1002, %v1030
    %1032 = vmatmul.f32.gmra.mxu0 %v970
    %v1033 = vpop.f32.mrf.mxu0
    %v1034 = vadd.f32 %v1005, %v1033
    %1035 = vmatmul.f32.gmra.mxu0 %v973
    %v1036 = vpop.f32.mrf.mxu0
    %v1037 = vadd.f32 %v1008, %v1036
    %1038 = vmatmul.f32.gmra.mxu0 %v976
    %v1039 = vpop.f32.mrf.mxu0
    %v1040 = vadd.f32 %v1011, %v1039
    %1041 = vdwg.mxu0
    %v1042 = vtanh.pop %v1031
    %v1043 = vtanh.pop %v1034
    %v1044 = vtanh.pop %v1037
    %v1045 = vtanh.pop %v1040
    %v1046 = vadd.f32 %v1042, %v139
    %v1047 = vadd.f32 %v1043, %v142
    %v1048 = vadd.f32 %v1044, %v145
    %v1049 = vadd.f32 %v1045, %v148
    %v1050 = vtanh.pop %v1046
    %v1051 = vtanh.pop %v1047
    %v1052 = vtanh.pop %v1048
    %v1053 = vtanh.pop %v1049
    %vm1054 = vcmp.ge.s32.totalorder %v94, 14
    %vm1055 = vcmp.ge.s32.totalorder %v95, 14
    %vm1056 = vcmp.ge.s32.totalorder %v96, 14
    %vm1057 = vcmp.ge.s32.totalorder %v97, 14
    %v1060 = vrot.slane %v1052, 2
    %v1061 = vrot.slane %v1053, 2
    %v1062 = vsel %vm335, %v1060, %v1061
    %v1067 = vrot.slane %v1050, 2
    %v1068 = vrot.slane %v1051, 2
    %v1069 = vsel %vm335, %v1067, %v1068
    %v1070 = vsel %vm335, %v1068, %v1060
    %v1074 = vsel %vm335, %v1061, %v1067
    %v1075 = vsel %vm1054, %v1062, 0.0
    %v1076 = vsel %vm1055, %v1074, 0.0
    %v1077 = vsel %vm1056, %v1069, 0.0
    %v1078 = vsel %vm1057, %v1070, 0.0
    %vm1079 = vcmp.ge.s32.totalorder %v94, 12
    %vm1080 = vcmp.ge.s32.totalorder %v95, 12
    %vm1081 = vcmp.ge.s32.totalorder %v96, 12
    %vm1082 = vcmp.ge.s32.totalorder %v97, 12
    %v1083 = vrot.slane %v1052, 4
    %v1084 = vrot.slane %v1053, 4
    %v1085 = vsel %vm421, %v1083, %v1084
    %v1088 = vrot.slane %v1050, 4
    %v1089 = vrot.slane %v1051, 4
    %v1090 = vsel %vm421, %v1088, %v1089
    %v1091 = vsel %vm421, %v1089, %v1083
    %v1095 = vsel %vm421, %v1084, %v1088
    %v1096 = vsel %vm1079, %v1085, 0.0
    %v1097 = vsel %vm1080, %v1095, 0.0
    %v1098 = vsel %vm1081, %v1090, 0.0
    %v1099 = vsel %vm1082, %v1091, 0.0
    %1104 = vrot.lane.b32.xlu0 %v1096, 16
    %v1105 = vpop.permute.xlu0 %1104
    %1106 = vrot.lane.b32.xlu0 %v1097, 16
    %v1107 = vpop.permute.xlu0 %1106
    %1108 = vrot.lane.b32.xlu0 %v1098, 16
    %v1109 = vpop.permute.xlu0 %1108
    %1110 = vrot.lane.b32.xlu0 %v1099, 16
    %v1111 = vpop.permute.xlu0 %1110
    %v1116 = vsel %vm108, %v1075, %v1105
    %v1117 = vsel %vm108, %v1076, %v1107
    %v1118 = vsel %vm108, %v1077, %v1109
    %v1119 = vsel %vm108, %v1078, %v1111
    %v1120 = vrot.slane %v1052, 6
    %v1121 = vrot.slane %v1053, 6
    %v1122 = vsel %vm176, %v1120, %v1121
    %v1125 = vrot.slane %v1050, 6
    %v1126 = vrot.slane %v1051, 6
    %v1127 = vsel %vm176, %v1125, %v1126
    %v1128 = vsel %vm176, %v1126, %v1120
    %v1132 = vsel %vm176, %v1121, %v1125
    %v1133 = vsel %vm172, %v1122, 0.0
    %v1134 = vsel %vm173, %v1132, 0.0
    %v1135 = vsel %vm174, %v1127, 0.0
    %v1136 = vsel %vm175, %v1128, 0.0
    %1141 = vrot.lane.b32.xlu0 %v1133, 32
    %v1142 = vpop.permute.xlu0 %1141
    %1143 = vrot.lane.b32.xlu0 %v1134, 32
    %v1144 = vpop.permute.xlu0 %1143
    %1145 = vrot.lane.b32.xlu0 %v1135, 32
    %v1146 = vpop.permute.xlu0 %1145
    %1147 = vrot.lane.b32.xlu0 %v1136, 32
    %v1148 = vpop.permute.xlu0 %1147
    %v1153 = vsel %vm252, %v1116, %v1142
    %v1154 = vsel %vm252, %v1117, %v1144
    %v1155 = vsel %vm252, %v1118, %v1146
    %v1156 = vsel %vm252, %v1119, %v1148
    %v1157 = vsel %vm257, %v1053, 0.0
    %v1158 = vsel %vm258, %v1050, 0.0
    %v1159 = vsel %vm259, %v1051, 0.0
    %v1160 = vsel %vm260, %v1052, 0.0
    %1165 = vrot.lane.b32.xlu0 %v1157, 48
    %v1166 = vpop.permute.xlu0 %1165
    %1167 = vrot.lane.b32.xlu0 %v1158, 48
    %v1168 = vpop.permute.xlu0 %1167
    %1169 = vrot.lane.b32.xlu0 %v1159, 48
    %v1170 = vpop.permute.xlu0 %1169
    %1171 = vrot.lane.b32.xlu0 %v1160, 48
    %v1172 = vpop.permute.xlu0 %1171
    %v1177 = vsel %vm281, %v1153, %v1166
    %v1178 = vsel %vm281, %v1154, %v1168
    %v1179 = vsel %vm281, %v1155, %v1170
    %v1180 = vsel %vm281, %v1156, %v1172
    %v1181 = vsel %vm329, %v1074, 0.0
    %v1182 = vsel %vm330, %v1069, 0.0
    %v1183 = vsel %vm331, %v1070, 0.0
    %v1184 = vsel %vm332, %v1062, 0.0
    %1189 = vrot.lane.b32.xlu0 %v1181, 64
    %v1190 = vpop.permute.xlu0 %1189
    %1191 = vrot.lane.b32.xlu0 %v1182, 64
    %v1192 = vpop.permute.xlu0 %1191
    %1193 = vrot.lane.b32.xlu0 %v1183, 64
    %v1194 = vpop.permute.xlu0 %1193
    %1195 = vrot.lane.b32.xlu0 %v1184, 64
    %v1196 = vpop.permute.xlu0 %1195
    %v1201 = vsel %vm324, %v1177, %v1190
    %v1202 = vsel %vm324, %v1178, %v1192
    %v1203 = vsel %vm324, %v1179, %v1194
    %v1204 = vsel %vm324, %v1180, %v1196
    %v1205 = vsel %vm415, %v1095, 0.0
    %v1206 = vsel %vm416, %v1090, 0.0
    %v1207 = vsel %vm417, %v1091, 0.0
    %v1208 = vsel %vm418, %v1085, 0.0
    %1213 = vrot.lane.b32.xlu0 %v1205, 80
    %v1214 = vpop.permute.xlu0 %1213
    %1215 = vrot.lane.b32.xlu0 %v1206, 80
    %v1216 = vpop.permute.xlu0 %1215
    %1217 = vrot.lane.b32.xlu0 %v1207, 80
    %v1218 = vpop.permute.xlu0 %1217
    %1219 = vrot.lane.b32.xlu0 %v1208, 80
    %v1220 = vpop.permute.xlu0 %1219
    %v1225 = vsel %vm367, %v1201, %v1214
    %v1226 = vsel %vm367, %v1202, %v1216
    %v1227 = vsel %vm367, %v1203, %v1218
    %v1228 = vsel %vm367, %v1204, %v1220
    %v1229 = vsel %vm466, %v1132, 0.0
    %v1230 = vsel %vm467, %v1127, 0.0
    %v1231 = vsel %vm468, %v1128, 0.0
    %v1232 = vsel %vm469, %v1122, 0.0
    %1237 = vrot.lane.b32.xlu0 %v1229, 96
    %v1238 = vpop.permute.xlu0 %1237
    %1239 = vrot.lane.b32.xlu0 %v1230, 96
    %v1240 = vpop.permute.xlu0 %1239
    %1241 = vrot.lane.b32.xlu0 %v1231, 96
    %v1242 = vpop.permute.xlu0 %1241
    %1243 = vrot.lane.b32.xlu0 %v1232, 96
    %v1244 = vpop.permute.xlu0 %1243
    %v1249 = vsel %vm410, %v1225, %v1238
    %v1250 = vsel %vm410, %v1226, %v1240
    %v1251 = vsel %vm410, %v1227, %v1242
    %v1252 = vsel %vm410, %v1228, %v1244
    %1253 = vrot.lane.b32.xlu0 %v1050, 112
    %v1254 = vpop.permute.xlu0 %1253
    %1255 = vrot.lane.b32.xlu0 %v1051, 112
    %v1256 = vpop.permute.xlu0 %1255
    %1257 = vrot.lane.b32.xlu0 %v1052, 112
    %v1258 = vpop.permute.xlu0 %1257
    %1259 = vrot.lane.b32.xlu0 %v1053, 112
    %v1260 = vpop.permute.xlu0 %1259
    %v1265 = vsel %vm453, %v1249, %v1254
    %v1266 = vsel %vm453, %v1250, %v1256
    %v1267 = vsel %vm453, %v1251, %v1258
    %v1268 = vsel %vm453, %v1252, %v1260
    %s1269 = scalar_lea.vmem [#allocation2], 64
    %v1270 = vld [vmem:[%s1269] sm:$0xff]
    %v1271 = vld [vmem:[%s1269 + $0x10] sm:$0xff]
    %v1272 = vld [vmem:[%s2 + $0x2] sm:$0x1]
    %v1273 = vperm.slane %v1272, 0
    %1274 = vmatpush.xpose.msra.mxu0 0.0
    %1275 = vmatpush.xpose.msra.mxu0 0.0
    %1276 = vmatpush.xpose.msra.mxu0 0.0
    %1277 = vmatpush.xpose.msra.mxu0 0.0
    %1278 = vmatpush.xpose.msra.mxu0 0.0
    %1279 = vmatpush.xpose.msra.mxu0 0.0
    %1280 = vmatpush.xpose.msra.mxu0 0.0
    %1281 = vmatpush.xpose.msra.mxu0 0.0
    %1282 = vmatpush.xpose.msra.mxu0 0.0
    %1283 = vmatpush.xpose.msra.mxu0 0.0
    %1284 = vmatpush.xpose.msra.mxu0 0.0
    %1285 = vmatpush.xpose.msra.mxu0 0.0
    %1286 = vmatpush.xpose.msra.mxu0 0.0
    %1287 = vmatpush.xpose.msra.mxu0 0.0
    %1288 = vmatpush.xpose.msra.mxu0 %v1271
    %1289 = vmatpush.xpose.msra.mxu0 %v1270
    %1290 = vmatmul.f32.gmra.mxu0 %v1265
    %v1291 = vpop.f32.mrf.mxu0
    %v1292 = vadd.f32 %v1273, %v1291
    %1293 = vmatmul.f32.gmra.mxu0 %v1266
    %v1294 = vpop.f32.mrf.mxu0
    %v1295 = vadd.f32 %v1273, %v1294
    %1296 = vmatmul.f32.gmra.mxu0 %v1267
    %v1297 = vpop.f32.mrf.mxu0
    %v1298 = vadd.f32 %v1273, %v1297
    %1299 = vmatmul.f32.gmra.mxu0 %v1268
    %v1300 = vpop.f32.mrf.mxu0
    %v1301 = vadd.f32 %v1273, %v1300
    %1302 = vdwg.mxu0
    %v1303 = vtanh.pop %v1292
    %v1304 = vtanh.pop %v1295
    %v1305 = vtanh.pop %v1298
    %v1306 = vtanh.pop %v1301
    %v1309 = vrot.slane %v1305, 2
    %v1310 = vrot.slane %v1306, 2
    %v1311 = vsel %vm335, %v1309, %v1310
    %v1316 = vrot.slane %v1303, 2
    %v1317 = vrot.slane %v1304, 2
    %v1318 = vsel %vm335, %v1316, %v1317
    %v1319 = vsel %vm335, %v1317, %v1309
    %v1323 = vsel %vm335, %v1310, %v1316
    %v1324 = vsel %vm1054, %v1311, 0.0
    %v1325 = vsel %vm1055, %v1323, 0.0
    %v1326 = vsel %vm1056, %v1318, 0.0
    %v1327 = vsel %vm1057, %v1319, 0.0
    %v1328 = vrot.slane %v1305, 4
    %v1329 = vrot.slane %v1306, 4
    %v1330 = vsel %vm421, %v1328, %v1329
    %v1333 = vrot.slane %v1303, 4
    %v1334 = vrot.slane %v1304, 4
    %v1335 = vsel %vm421, %v1333, %v1334
    %v1336 = vsel %vm421, %v1334, %v1328
    %v1340 = vsel %vm421, %v1329, %v1333
    %v1341 = vsel %vm1079, %v1330, 0.0
    %v1342 = vsel %vm1080, %v1340, 0.0
    %v1343 = vsel %vm1081, %v1335, 0.0
    %v1344 = vsel %vm1082, %v1336, 0.0
    %1349 = vrot.lane.b32.xlu0 %v1341, 16
    %v1350 = vpop.permute.xlu0 %1349
    %1351 = vrot.lane.b32.xlu0 %v1342, 16
    %v1352 = vpop.permute.xlu0 %1351
    %1353 = vrot.lane.b32.xlu0 %v1343, 16
    %v1354 = vpop.permute.xlu0 %1353
    %1355 = vrot.lane.b32.xlu0 %v1344, 16
    %v1356 = vpop.permute.xlu0 %1355
    %v1361 = vsel %vm108, %v1324, %v1350
    %v1362 = vsel %vm108, %v1325, %v1352
    %v1363 = vsel %vm108, %v1326, %v1354
    %v1364 = vsel %vm108, %v1327, %v1356
    %v1365 = vrot.slane %v1305, 6
    %v1366 = vrot.slane %v1306, 6
    %v1367 = vsel %vm176, %v1365, %v1366
    %v1370 = vrot.slane %v1303, 6
    %v1371 = vrot.slane %v1304, 6
    %v1372 = vsel %vm176, %v1370, %v1371
    %v1373 = vsel %vm176, %v1371, %v1365
    %v1377 = vsel %vm176, %v1366, %v1370
    %v1378 = vsel %vm172, %v1367, 0.0
    %v1379 = vsel %vm173, %v1377, 0.0
    %v1380 = vsel %vm174, %v1372, 0.0
    %v1381 = vsel %vm175, %v1373, 0.0
    %1386 = vrot.lane.b32.xlu0 %v1378, 32
    %v1387 = vpop.permute.xlu0 %1386
    %1388 = vrot.lane.b32.xlu0 %v1379, 32
    %v1389 = vpop.permute.xlu0 %1388
    %1390 = vrot.lane.b32.xlu0 %v1380, 32
    %v1391 = vpop.permute.xlu0 %1390
    %1392 = vrot.lane.b32.xlu0 %v1381, 32
    %v1393 = vpop.permute.xlu0 %1392
    %v1398 = vsel %vm252, %v1361, %v1387
    %v1399 = vsel %vm252, %v1362, %v1389
    %v1400 = vsel %vm252, %v1363, %v1391
    %v1401 = vsel %vm252, %v1364, %v1393
    %v1402 = vsel %vm257, %v1306, 0.0
    %v1403 = vsel %vm258, %v1303, 0.0
    %v1404 = vsel %vm259, %v1304, 0.0
    %v1405 = vsel %vm260, %v1305, 0.0
    %1410 = vrot.lane.b32.xlu0 %v1402, 48
    %v1411 = vpop.permute.xlu0 %1410
    %1412 = vrot.lane.b32.xlu0 %v1403, 48
    %v1413 = vpop.permute.xlu0 %1412
    %1414 = vrot.lane.b32.xlu0 %v1404, 48
    %v1415 = vpop.permute.xlu0 %1414
    %1416 = vrot.lane.b32.xlu0 %v1405, 48
    %v1417 = vpop.permute.xlu0 %1416
    %v1422 = vsel %vm281, %v1398, %v1411
    %v1423 = vsel %vm281, %v1399, %v1413
    %v1424 = vsel %vm281, %v1400, %v1415
    %v1425 = vsel %vm281, %v1401, %v1417
    %v1426 = vsel %vm329, %v1323, 0.0
    %v1427 = vsel %vm330, %v1318, 0.0
    %v1428 = vsel %vm331, %v1319, 0.0
    %v1429 = vsel %vm332, %v1311, 0.0
    %1434 = vrot.lane.b32.xlu0 %v1426, 64
    %v1435 = vpop.permute.xlu0 %1434
    %1436 = vrot.lane.b32.xlu0 %v1427, 64
    %v1437 = vpop.permute.xlu0 %1436
    %1438 = vrot.lane.b32.xlu0 %v1428, 64
    %v1439 = vpop.permute.xlu0 %1438
    %1440 = vrot.lane.b32.xlu0 %v1429, 64
    %v1441 = vpop.permute.xlu0 %1440
    %v1446 = vsel %vm324, %v1422, %v1435
    %v1447 = vsel %vm324, %v1423, %v1437
    %v1448 = vsel %vm324, %v1424, %v1439
    %v1449 = vsel %vm324, %v1425, %v1441
    %v1450 = vsel %vm415, %v1340, 0.0
    %v1451 = vsel %vm416, %v1335, 0.0
    %v1452 = vsel %vm417, %v1336, 0.0
    %v1453 = vsel %vm418, %v1330, 0.0
    %1458 = vrot.lane.b32.xlu0 %v1450, 80
    %v1459 = vpop.permute.xlu0 %1458
    %1460 = vrot.lane.b32.xlu0 %v1451, 80
    %v1461 = vpop.permute.xlu0 %1460
    %1462 = vrot.lane.b32.xlu0 %v1452, 80
    %v1463 = vpop.permute.xlu0 %1462
    %1464 = vrot.lane.b32.xlu0 %v1453, 80
    %v1465 = vpop.permute.xlu0 %1464
    %v1470 = vsel %vm367, %v1446, %v1459
    %v1471 = vsel %vm367, %v1447, %v1461
    %v1472 = vsel %vm367, %v1448, %v1463
    %v1473 = vsel %vm367, %v1449, %v1465
    %v1474 = vsel %vm466, %v1377, 0.0
    %v1475 = vsel %vm467, %v1372, 0.0
    %v1476 = vsel %vm468, %v1373, 0.0
    %v1477 = vsel %vm469, %v1367, 0.0
    %1482 = vrot.lane.b32.xlu0 %v1474, 96
    %v1483 = vpop.permute.xlu0 %1482
    %1484 = vrot.lane.b32.xlu0 %v1475, 96
    %v1485 = vpop.permute.xlu0 %1484
    %1486 = vrot.lane.b32.xlu0 %v1476, 96
    %v1487 = vpop.permute.xlu0 %1486
    %1488 = vrot.lane.b32.xlu0 %v1477, 96
    %v1489 = vpop.permute.xlu0 %1488
    %v1494 = vsel %vm410, %v1470, %v1483
    %v1495 = vsel %vm410, %v1471, %v1485
    %v1496 = vsel %vm410, %v1472, %v1487
    %v1497 = vsel %vm410, %v1473, %v1489
    %1498 = vrot.lane.b32.xlu0 %v1303, 112
    %v1499 = vpop.permute.xlu0 %1498
    %1500 = vrot.lane.b32.xlu0 %v1304, 112
    %v1501 = vpop.permute.xlu0 %1500
    %1502 = vrot.lane.b32.xlu0 %v1305, 112
    %v1503 = vpop.permute.xlu0 %1502
    %1504 = vrot.lane.b32.xlu0 %v1306, 112
    %v1505 = vpop.permute.xlu0 %1504
    %v1510 = vsel %vm453, %v1494, %v1499
    %v1511 = vsel %vm453, %v1495, %v1501
    %v1512 = vsel %vm453, %v1496, %v1503
    %v1513 = vsel %vm453, %v1497, %v1505
    %s1514 = scalar_lea.vmem [#allocation2], 96
    %v1515 = vld [vmem:[%s1514] sm:$0xff]
    %v1516 = vld [vmem:[%s1514 + $0x10] sm:$0xff]
    %v1517 = vld [vmem:[%s2 + $0x3] sm:$0x1]
    %v1518 = vperm.slane %v1517, 0
    %1519 = vmatpush.xpose.msra.mxu0 0.0
    %1520 = vmatpush.xpose.msra.mxu0 0.0
    %1521 = vmatpush.xpose.msra.mxu0 0.0
    %1522 = vmatpush.xpose.msra.mxu0 0.0
    %1523 = vmatpush.xpose.msra.mxu0 0.0
    %1524 = vmatpush.xpose.msra.mxu0 0.0
    %1525 = vmatpush.xpose.msra.mxu0 0.0
    %1526 = vmatpush.xpose.msra.mxu0 0.0
    %1527 = vmatpush.xpose.msra.mxu0 0.0
    %1528 = vmatpush.xpose.msra.mxu0 0.0
    %1529 = vmatpush.xpose.msra.mxu0 0.0
    %1530 = vmatpush.xpose.msra.mxu0 0.0
    %1531 = vmatpush.xpose.msra.mxu0 0.0
    %1532 = vmatpush.xpose.msra.mxu0 0.0
    %1533 = vmatpush.xpose.msra.mxu0 %v1516
    %1534 = vmatpush.xpose.msra.mxu0 %v1515
    %1535 = vmatmul.f32.gmra.mxu0 %v1510
    %v1536 = vpop.f32.mrf.mxu0
    %v1537 = vadd.f32 %v1518, %v1536
    %1538 = vmatmul.f32.gmra.mxu0 %v1511
    %v1539 = vpop.f32.mrf.mxu0
    %v1540 = vadd.f32 %v1518, %v1539
    %1541 = vmatmul.f32.gmra.mxu0 %v1512
    %v1542 = vpop.f32.mrf.mxu0
    %v1543 = vadd.f32 %v1518, %v1542
    %1544 = vmatmul.f32.gmra.mxu0 %v1513
    %v1545 = vpop.f32.mrf.mxu0
    %v1546 = vadd.f32 %v1518, %v1545
    %1547 = vdwg.mxu0
    %v1548 = vtanh.pop %v1537
    %v1549 = vtanh.pop %v1540
    %v1550 = vtanh.pop %v1543
    %v1551 = vtanh.pop %v1546
    %v1552 = vadd.f32 %v1548, %v1050
    %v1553 = vadd.f32 %v1549, %v1051
    %v1554 = vadd.f32 %v1550, %v1052
    %v1555 = vadd.f32 %v1551, %v1053
    %v1556 = vtanh.pop %v1552
    %v1557 = vtanh.pop %v1553
    %v1558 = vtanh.pop %v1554
    %v1559 = vtanh.pop %v1555
    %v1562 = vrot.slane %v1558, 4
    %v1563 = vrot.slane %v1559, 4
    %v1564 = vsel %vm421, %v1562, %v1563
    %v1569 = vrot.slane %v1556, 4
    %v1570 = vrot.slane %v1557, 4
    %v1571 = vsel %vm421, %v1569, %v1570
    %v1572 = vsel %vm421, %v1570, %v1562
    %v1576 = vsel %vm421, %v1563, %v1569
    %v1577 = vsel %vm1079, %v1564, 0.0
    %v1578 = vsel %vm1080, %v1576, 0.0
    %v1579 = vsel %vm1081, %v1571, 0.0
    %v1580 = vsel %vm1082, %v1572, 0.0
    %v1581 = vsel %vm257, %v1559, 0.0
    %v1582 = vsel %vm258, %v1556, 0.0
    %v1583 = vsel %vm259, %v1557, 0.0
    %v1584 = vsel %vm260, %v1558, 0.0
    %1589 = vrot.lane.b32.xlu0 %v1581, 16
    %v1590 = vpop.permute.xlu0 %1589
    %1591 = vrot.lane.b32.xlu0 %v1582, 16
    %v1592 = vpop.permute.xlu0 %1591
    %1593 = vrot.lane.b32.xlu0 %v1583, 16
    %v1594 = vpop.permute.xlu0 %1593
    %1595 = vrot.lane.b32.xlu0 %v1584, 16
    %v1596 = vpop.permute.xlu0 %1595
    %v1601 = vsel %vm108, %v1577, %v1590
    %v1602 = vsel %vm108, %v1578, %v1592
    %v1603 = vsel %vm108, %v1579, %v1594
    %v1604 = vsel %vm108, %v1580, %v1596
    %v1605 = vsel %vm415, %v1576, 0.0
    %v1606 = vsel %vm416, %v1571, 0.0
    %v1607 = vsel %vm417, %v1572, 0.0
    %v1608 = vsel %vm418, %v1564, 0.0
    %1613 = vrot.lane.b32.xlu0 %v1605, 32
    %v1614 = vpop.permute.xlu0 %1613
    %1615 = vrot.lane.b32.xlu0 %v1606, 32
    %v1616 = vpop.permute.xlu0 %1615
    %1617 = vrot.lane.b32.xlu0 %v1607, 32
    %v1618 = vpop.permute.xlu0 %1617
    %1619 = vrot.lane.b32.xlu0 %v1608, 32
    %v1620 = vpop.permute.xlu0 %1619
    %v1625 = vsel %vm252, %v1601, %v1614
    %v1626 = vsel %vm252, %v1602, %v1616
    %v1627 = vsel %vm252, %v1603, %v1618
    %v1628 = vsel %vm252, %v1604, %v1620
    %1629 = vrot.lane.b32.xlu0 %v1556, 48
    %v1630 = vpop.permute.xlu0 %1629
    %1631 = vrot.lane.b32.xlu0 %v1557, 48
    %v1632 = vpop.permute.xlu0 %1631
    %1633 = vrot.lane.b32.xlu0 %v1558, 48
    %v1634 = vpop.permute.xlu0 %1633
    %1635 = vrot.lane.b32.xlu0 %v1559, 48
    %v1636 = vpop.permute.xlu0 %1635
    %v1641 = vsel %vm281, %v1625, %v1630
    %v1642 = vsel %vm281, %v1626, %v1632
    %v1643 = vsel %vm281, %v1627, %v1634
    %v1644 = vsel %vm281, %v1628, %v1636
    %s1645 = scalar_lea.vmem [#allocation2], 128
    %v1646 = vld [vmem:[%s1645] sm:$0xff]
    %v1647 = vld [vmem:[%s1645 + $0x10] sm:$0xff]
    %v1648 = vld [vmem:[%s2 + $0x4] sm:$0x1]
    %v1649 = vperm.slane %v1648, 0
    %v1651 = vsel %vm324, %v1641, 0
    %v1654 = vsel %vm324, %v1642, 0
    %v1657 = vsel %vm324, %v1643, 0
    %v1660 = vsel %vm324, %v1644, 0
    %v1663 = vsel %vm324, %v1646, 0
    %v1666 = vsel %vm324, %v1647, 0
    %1668 = vmatpush.xpose.msra.mxu0 0.0
    %1669 = vmatpush.xpose.msra.mxu0 0.0
    %1670 = vmatpush.xpose.msra.mxu0 0.0
    %1671 = vmatpush.xpose.msra.mxu0 0.0
    %1672 = vmatpush.xpose.msra.mxu0 0.0
    %1673 = vmatpush.xpose.msra.mxu0 0.0
    %1674 = vmatpush.xpose.msra.mxu0 0.0
    %1675 = vmatpush.xpose.msra.mxu0 0.0
    %1676 = vmatpush.xpose.msra.mxu0 0.0
    %1677 = vmatpush.xpose.msra.mxu0 0.0
    %1678 = vmatpush.xpose.msra.mxu0 0.0
    %1679 = vmatpush.xpose.msra.mxu0 0.0
    %1680 = vmatpush.xpose.msra.mxu0 0.0
    %1681 = vmatpush.xpose.msra.mxu0 0.0
    %1682 = vmatpush.xpose.msra.mxu0 %v1666
    %1683 = vmatpush.xpose.msra.mxu0 %v1663
    %1684 = vmatmul.f32.gmra.mxu0 %v1651
    %v1685 = vpop.f32.mrf.mxu0
    %v1686 = vadd.f32 %v1649, %v1685
    %1687 = vmatmul.f32.gmra.mxu0 %v1654
    %v1688 = vpop.f32.mrf.mxu0
    %v1689 = vadd.f32 %v1649, %v1688
    %1690 = vmatmul.f32.gmra.mxu0 %v1657
    %v1691 = vpop.f32.mrf.mxu0
    %v1692 = vadd.f32 %v1649, %v1691
    %1693 = vmatmul.f32.gmra.mxu0 %v1660
    %v1694 = vpop.f32.mrf.mxu0
    %v1695 = vadd.f32 %v1649, %v1694
    %1696 = vdwg.mxu0
    %v1697 = vtanh.pop %v1686
    %v1698 = vtanh.pop %v1689
    %v1699 = vtanh.pop %v1692
    %v1700 = vtanh.pop %v1695
    %v1703 = vrot.slane %v1699, 4
    %v1704 = vrot.slane %v1700, 4
    %v1705 = vsel %vm421, %v1703, %v1704
    %v1710 = vrot.slane %v1697, 4
    %v1711 = vrot.slane %v1698, 4
    %v1712 = vsel %vm421, %v1710, %v1711
    %v1713 = vsel %vm421, %v1711, %v1703
    %v1717 = vsel %vm421, %v1704, %v1710
    %v1718 = vsel %vm1079, %v1705, 0.0
    %v1719 = vsel %vm1080, %v1717, 0.0
    %v1720 = vsel %vm1081, %v1712, 0.0
    %v1721 = vsel %vm1082, %v1713, 0.0
    %v1722 = vsel %vm257, %v1700, 0.0
    %v1723 = vsel %vm258, %v1697, 0.0
    %v1724 = vsel %vm259, %v1698, 0.0
    %v1725 = vsel %vm260, %v1699, 0.0
    %1730 = vrot.lane.b32.xlu0 %v1722, 16
    %v1731 = vpop.permute.xlu0 %1730
    %1732 = vrot.lane.b32.xlu0 %v1723, 16
    %v1733 = vpop.permute.xlu0 %1732
    %1734 = vrot.lane.b32.xlu0 %v1724, 16
    %v1735 = vpop.permute.xlu0 %1734
    %1736 = vrot.lane.b32.xlu0 %v1725, 16
    %v1737 = vpop.permute.xlu0 %1736
    %v1742 = vsel %vm108, %v1718, %v1731
    %v1743 = vsel %vm108, %v1719, %v1733
    %v1744 = vsel %vm108, %v1720, %v1735
    %v1745 = vsel %vm108, %v1721, %v1737
    %v1746 = vsel %vm415, %v1717, 0.0
    %v1747 = vsel %vm416, %v1712, 0.0
    %v1748 = vsel %vm417, %v1713, 0.0
    %v1749 = vsel %vm418, %v1705, 0.0
    %1754 = vrot.lane.b32.xlu0 %v1746, 32
    %v1755 = vpop.permute.xlu0 %1754
    %1756 = vrot.lane.b32.xlu0 %v1747, 32
    %v1757 = vpop.permute.xlu0 %1756
    %1758 = vrot.lane.b32.xlu0 %v1748, 32
    %v1759 = vpop.permute.xlu0 %1758
    %1760 = vrot.lane.b32.xlu0 %v1749, 32
    %v1761 = vpop.permute.xlu0 %1760
    %v1766 = vsel %vm252, %v1742, %v1755
    %v1767 = vsel %vm252, %v1743, %v1757
    %v1768 = vsel %vm252, %v1744, %v1759
    %v1769 = vsel %vm252, %v1745, %v1761
    %1770 = vrot.lane.b32.xlu0 %v1697, 48
    %v1771 = vpop.permute.xlu0 %1770
    %1772 = vrot.lane.b32.xlu0 %v1698, 48
    %v1773 = vpop.permute.xlu0 %1772
    %1774 = vrot.lane.b32.xlu0 %v1699, 48
    %v1775 = vpop.permute.xlu0 %1774
    %1776 = vrot.lane.b32.xlu0 %v1700, 48
    %v1777 = vpop.permute.xlu0 %1776
    %v1782 = vsel %vm281, %v1766, %v1771
    %v1783 = vsel %vm281, %v1767, %v1773
    %v1784 = vsel %vm281, %v1768, %v1775
    %v1785 = vsel %vm281, %v1769, %v1777
    %s1786 = scalar_lea.vmem [#allocation2], 160
    %v1787 = vld [vmem:[%s1786] sm:$0xff]
    %v1788 = vld [vmem:[%s1786 + $0x10] sm:$0xff]
    %v1789 = vld [vmem:[%s2 + $0x5] sm:$0x1]
    %v1790 = vperm.slane %v1789, 0
    %v1792 = vsel %vm324, %v1782, 0
    %v1795 = vsel %vm324, %v1783, 0
    %v1798 = vsel %vm324, %v1784, 0
    %v1801 = vsel %vm324, %v1785, 0
    %v1804 = vsel %vm324, %v1787, 0
    %v1807 = vsel %vm324, %v1788, 0
    %1809 = vmatpush.xpose.msra.mxu0 0.0
    %1810 = vmatpush.xpose.msra.mxu0 0.0
    %1811 = vmatpush.xpose.msra.mxu0 0.0
    %1812 = vmatpush.xpose.msra.mxu0 0.0
    %1813 = vmatpush.xpose.msra.mxu0 0.0
    %1814 = vmatpush.xpose.msra.mxu0 0.0
    %1815 = vmatpush.xpose.msra.mxu0 0.0
    %1816 = vmatpush.xpose.msra.mxu0 0.0
    %1817 = vmatpush.xpose.msra.mxu0 0.0
    %1818 = vmatpush.xpose.msra.mxu0 0.0
    %1819 = vmatpush.xpose.msra.mxu0 0.0
    %1820 = vmatpush.xpose.msra.mxu0 0.0
    %1821 = vmatpush.xpose.msra.mxu0 0.0
    %1822 = vmatpush.xpose.msra.mxu0 0.0
    %1823 = vmatpush.xpose.msra.mxu0 %v1807
    %1824 = vmatpush.xpose.msra.mxu0 %v1804
    %1825 = vmatmul.f32.gmra.mxu0 %v1792
    %v1826 = vpop.f32.mrf.mxu0
    %v1827 = vadd.f32 %v1790, %v1826
    %1828 = vmatmul.f32.gmra.mxu0 %v1795
    %v1829 = vpop.f32.mrf.mxu0
    %v1830 = vadd.f32 %v1790, %v1829
    %1831 = vmatmul.f32.gmra.mxu0 %v1798
    %v1832 = vpop.f32.mrf.mxu0
    %v1833 = vadd.f32 %v1790, %v1832
    %1834 = vmatmul.f32.gmra.mxu0 %v1801
    %v1835 = vpop.f32.mrf.mxu0
    %v1836 = vadd.f32 %v1790, %v1835
    %1837 = vdwg.mxu0
    %v1838 = vtanh.pop %v1827
    %v1839 = vtanh.pop %v1830
    %v1840 = vtanh.pop %v1833
    %v1841 = vtanh.pop %v1836
    %v1842 = vadd.f32 %v1838, %v1556
    %v1843 = vadd.f32 %v1839, %v1557
    %v1844 = vadd.f32 %v1840, %v1558
    %v1845 = vadd.f32 %v1841, %v1559
    %v1846 = vtanh.pop %v1842
    %v1847 = vtanh.pop %v1843
    %v1848 = vtanh.pop %v1844
    %v1849 = vtanh.pop %v1845
    %v1850 = vsel %vm257, %v1849, 0.0
    %v1851 = vsel %vm258, %v1846, 0.0
    %v1852 = vsel %vm259, %v1847, 0.0
    %v1853 = vsel %vm260, %v1848, 0.0
    %1858 = vrot.lane.b32.xlu0 %v1846, 16
    %v1859 = vpop.permute.xlu0 %1858
    %1860 = vrot.lane.b32.xlu0 %v1847, 16
    %v1861 = vpop.permute.xlu0 %1860
    %1862 = vrot.lane.b32.xlu0 %v1848, 16
    %v1863 = vpop.permute.xlu0 %1862
    %1864 = vrot.lane.b32.xlu0 %v1849, 16
    %v1865 = vpop.permute.xlu0 %1864
    %v1870 = vsel %vm108, %v1850, %v1859
    %v1871 = vsel %vm108, %v1851, %v1861
    %v1872 = vsel %vm108, %v1852, %v1863
    %v1873 = vsel %vm108, %v1853, %v1865
    %s1874 = scalar_lea.vmem [#allocation2], 192
    %v1875 = vld [vmem:[%s1874] sm:$0xff]
    %v1876 = vld [vmem:[%s1874 + $0x10] sm:$0xff]
    %v1877 = vld [vmem:[%s2 + $0x6] sm:$0x1]
    %v1878 = vperm.slane %v1877, 0
    %v1880 = vsel %vm252, %v1870, 0
    %v1883 = vsel %vm252, %v1871, 0
    %v1886 = vsel %vm252, %v1872, 0
    %v1889 = vsel %vm252, %v1873, 0
    %v1892 = vsel %vm252, %v1875, 0
    %v1895 = vsel %vm252, %v1876, 0
    %1897 = vmatpush.xpose.msra.mxu0 0.0
    %1898 = vmatpush.xpose.msra.mxu0 0.0
    %1899 = vmatpush.xpose.msra.mxu0 0.0
    %1900 = vmatpush.xpose.msra.mxu0 0.0
    %1901 = vmatpush.xpose.msra.mxu0 0.0
    %1902 = vmatpush.xpose.msra.mxu0 0.0
    %1903 = vmatpush.xpose.msra.mxu0 0.0
    %1904 = vmatpush.xpose.msra.mxu0 0.0
    %1905 = vmatpush.xpose.msra.mxu0 0.0
    %1906 = vmatpush.xpose.msra.mxu0 0.0
    %1907 = vmatpush.xpose.msra.mxu0 0.0
    %1908 = vmatpush.xpose.msra.mxu0 0.0
    %1909 = vmatpush.xpose.msra.mxu0 0.0
    %1910 = vmatpush.xpose.msra.mxu0 0.0
    %1911 = vmatpush.xpose.msra.mxu0 %v1895
    %1912 = vmatpush.xpose.msra.mxu0 %v1892
    %1913 = vmatmul.f32.gmra.mxu0 %v1880
    %v1914 = vpop.f32.mrf.mxu0
    %v1915 = vadd.f32 %v1878, %v1914
    %1916 = vmatmul.f32.gmra.mxu0 %v1883
    %v1917 = vpop.f32.mrf.mxu0
    %v1918 = vadd.f32 %v1878, %v1917
    %1919 = vmatmul.f32.gmra.mxu0 %v1886
    %v1920 = vpop.f32.mrf.mxu0
    %v1921 = vadd.f32 %v1878, %v1920
    %1922 = vmatmul.f32.gmra.mxu0 %v1889
    %v1923 = vpop.f32.mrf.mxu0
    %v1924 = vadd.f32 %v1878, %v1923
    %1925 = vdwg.mxu0
    %v1926 = vtanh.pop %v1915
    %v1927 = vtanh.pop %v1918
    %v1928 = vtanh.pop %v1921
    %v1929 = vtanh.pop %v1924
    %v1930 = vsel %vm257, %v1929, 0.0
    %v1931 = vsel %vm258, %v1926, 0.0
    %v1932 = vsel %vm259, %v1927, 0.0
    %v1933 = vsel %vm260, %v1928, 0.0
    %1938 = vrot.lane.b32.xlu0 %v1926, 16
    %v1939 = vpop.permute.xlu0 %1938
    %1940 = vrot.lane.b32.xlu0 %v1927, 16
    %v1941 = vpop.permute.xlu0 %1940
    %1942 = vrot.lane.b32.xlu0 %v1928, 16
    %v1943 = vpop.permute.xlu0 %1942
    %1944 = vrot.lane.b32.xlu0 %v1929, 16
    %v1945 = vpop.permute.xlu0 %1944
    %v1950 = vsel %vm108, %v1930, %v1939
    %v1951 = vsel %vm108, %v1931, %v1941
    %v1952 = vsel %vm108, %v1932, %v1943
    %v1953 = vsel %vm108, %v1933, %v1945
    %s1954 = scalar_lea.vmem [#allocation2], 224
    %v1955 = vld [vmem:[%s1954] sm:$0xff]
    %v1956 = vld [vmem:[%s1954 + $0x10] sm:$0xff]
    %v1957 = vld [vmem:[%s2 + $0x7] sm:$0x1]
    %v1958 = vperm.slane %v1957, 0
    %v1960 = vsel %vm252, %v1950, 0
    %v1963 = vsel %vm252, %v1951, 0
    %v1966 = vsel %vm252, %v1952, 0
    %v1969 = vsel %vm252, %v1953, 0
    %v1972 = vsel %vm252, %v1955, 0
    %v1975 = vsel %vm252, %v1956, 0
    %1977 = vmatpush.xpose.msra.mxu0 0.0
    %1978 = vmatpush.xpose.msra.mxu0 0.0
    %1979 = vmatpush.xpose.msra.mxu0 0.0
    %1980 = vmatpush.xpose.msra.mxu0 0.0
    %1981 = vmatpush.xpose.msra.mxu0 0.0
    %1982 = vmatpush.xpose.msra.mxu0 0.0
    %1983 = vmatpush.xpose.msra.mxu0 0.0
    %1984 = vmatpush.xpose.msra.mxu0 0.0
    %1985 = vmatpush.xpose.msra.mxu0 0.0
    %1986 = vmatpush.xpose.msra.mxu0 0.0
    %1987 = vmatpush.xpose.msra.mxu0 0.0
    %1988 = vmatpush.xpose.msra.mxu0 0.0
    %1989 = vmatpush.xpose.msra.mxu0 0.0
    %1990 = vmatpush.xpose.msra.mxu0 0.0
    %1991 = vmatpush.xpose.msra.mxu0 %v1975
    %1992 = vmatpush.xpose.msra.mxu0 %v1972
    %1993 = vmatmul.f32.gmra.mxu0 %v1960
    %v1994 = vpop.f32.mrf.mxu0
    %v1995 = vadd.f32 %v1958, %v1994
    %1996 = vmatmul.f32.gmra.mxu0 %v1963
    %v1997 = vpop.f32.mrf.mxu0
    %v1998 = vadd.f32 %v1958, %v1997
    %1999 = vmatmul.f32.gmra.mxu0 %v1966
    %v2000 = vpop.f32.mrf.mxu0
    %v2001 = vadd.f32 %v1958, %v2000
    %2002 = vmatmul.f32.gmra.mxu0 %v1969
    %v2003 = vpop.f32.mrf.mxu0
    %v2004 = vadd.f32 %v1958, %v2003
    %2005 = vdwg.mxu0
    %v2006 = vtanh.pop %v1995
    %v2007 = vtanh.pop %v1998
    %v2008 = vtanh.pop %v2001
    %v2009 = vtanh.pop %v2004
    %v2010 = vadd.f32 %v2006, %v1846
    %v2011 = vadd.f32 %v2007, %v1847
    %v2012 = vadd.f32 %v2008, %v1848
    %v2013 = vadd.f32 %v2009, %v1849
    %v2014 = vtanh.pop %v2010
    %v2015 = vtanh.pop %v2011
    %v2016 = vtanh.pop %v2012
    %v2017 = vtanh.pop %v2013
    %v2020 = vrot.slane %v2016, 5
    %v2021 = vrot.slane %v2017, 5
    %v2022 = vsel %vm154, %v2020, %v2021
    %v2027 = vrot.slane %v2014, 5
    %v2028 = vrot.slane %v2015, 5
    %v2029 = vsel %vm154, %v2027, %v2028
    %v2030 = vsel %vm154, %v2028, %v2020
    %v2034 = vsel %vm154, %v2021, %v2027
    %v2035 = vsel %vm150, %v2022, 0.0
    %v2036 = vsel %vm151, %v2034, 0.0
    %v2037 = vsel %vm152, %v2029, 0.0
    %v2038 = vsel %vm153, %v2030, 0.0
    %v2039 = vrot.slane %v2016, 6
    %v2040 = vrot.slane %v2017, 6
    %v2041 = vsel %vm176, %v2039, %v2040
    %v2044 = vrot.slane %v2014, 6
    %v2045 = vrot.slane %v2015, 6
    %v2046 = vsel %vm176, %v2044, %v2045
    %v2047 = vsel %vm176, %v2045, %v2039
    %v2051 = vsel %vm176, %v2040, %v2044
    %v2052 = vsel %vm172, %v2041, 0.0
    %v2053 = vsel %vm173, %v2051, 0.0
    %v2054 = vsel %vm174, %v2046, 0.0
    %v2055 = vsel %vm175, %v2047, 0.0
    %2060 = vrot.lane.b32.xlu0 %v2052, 16
    %v2061 = vpop.permute.xlu0 %2060
    %2062 = vrot.lane.b32.xlu0 %v2053, 16
    %v2063 = vpop.permute.xlu0 %2062
    %2064 = vrot.lane.b32.xlu0 %v2054, 16
    %v2065 = vpop.permute.xlu0 %2064
    %2066 = vrot.lane.b32.xlu0 %v2055, 16
    %v2067 = vpop.permute.xlu0 %2066
    %v2072 = vsel %vm108, %v2035, %v2061
    %v2073 = vsel %vm108, %v2036, %v2063
    %v2074 = vsel %vm108, %v2037, %v2065
    %v2075 = vsel %vm108, %v2038, %v2067
    %v2076 = vrot.slane %v2016, 7
    %v2077 = vrot.slane %v2017, 7
    %v2078 = vsel %vm218, %v2076, %v2077
    %v2081 = vrot.slane %v2014, 7
    %v2082 = vrot.slane %v2015, 7
    %v2083 = vsel %vm218, %v2081, %v2082
    %v2084 = vsel %vm218, %v2082, %v2076
    %v2088 = vsel %vm218, %v2077, %v2081
    %v2089 = vsel %vm214, %v2078, 0.0
    %v2090 = vsel %vm215, %v2088, 0.0
    %v2091 = vsel %vm216, %v2083, 0.0
    %v2092 = vsel %vm217, %v2084, 0.0
    %2097 = vrot.lane.b32.xlu0 %v2089, 32
    %v2098 = vpop.permute.xlu0 %2097
    %2099 = vrot.lane.b32.xlu0 %v2090, 32
    %v2100 = vpop.permute.xlu0 %2099
    %2101 = vrot.lane.b32.xlu0 %v2091, 32
    %v2102 = vpop.permute.xlu0 %2101
    %2103 = vrot.lane.b32.xlu0 %v2092, 32
    %v2104 = vpop.permute.xlu0 %2103
    %v2109 = vsel %vm252, %v2072, %v2098
    %v2110 = vsel %vm252, %v2073, %v2100
    %v2111 = vsel %vm252, %v2074, %v2102
    %v2112 = vsel %vm252, %v2075, %v2104
    %v2113 = vsel %vm257, %v2017, 0.0
    %v2114 = vsel %vm258, %v2014, 0.0
    %v2115 = vsel %vm259, %v2015, 0.0
    %v2116 = vsel %vm260, %v2016, 0.0
    %2121 = vrot.lane.b32.xlu0 %v2113, 48
    %v2122 = vpop.permute.xlu0 %2121
    %2123 = vrot.lane.b32.xlu0 %v2114, 48
    %v2124 = vpop.permute.xlu0 %2123
    %2125 = vrot.lane.b32.xlu0 %v2115, 48
    %v2126 = vpop.permute.xlu0 %2125
    %2127 = vrot.lane.b32.xlu0 %v2116, 48
    %v2128 = vpop.permute.xlu0 %2127
    %v2133 = vsel %vm281, %v2109, %v2122
    %v2134 = vsel %vm281, %v2110, %v2124
    %v2135 = vsel %vm281, %v2111, %v2126
    %v2136 = vsel %vm281, %v2112, %v2128
    %v2137 = vrot.slane %v2017, 1
    %v2139 = vrot.slane %v2014, 1
    %v2140 = vrot.slane %v2015, 1
    %v2141 = vsel %vm292, %v2139, %v2140
    %v2142 = vrot.slane %v2016, 1
    %v2143 = vsel %vm292, %v2140, %v2142
    %v2144 = vsel %vm292, %v2142, %v2137
    %v2149 = vsel %vm292, %v2137, %v2139
    %v2150 = vsel %vm286, %v2149, 0.0
    %v2151 = vsel %vm287, %v2141, 0.0
    %v2152 = vsel %vm288, %v2143, 0.0
    %v2153 = vsel %vm289, %v2144, 0.0
    %2158 = vrot.lane.b32.xlu0 %v2150, 64
    %v2159 = vpop.permute.xlu0 %2158
    %2160 = vrot.lane.b32.xlu0 %v2151, 64
    %v2161 = vpop.permute.xlu0 %2160
    %2162 = vrot.lane.b32.xlu0 %v2152, 64
    %v2163 = vpop.permute.xlu0 %2162
    %2164 = vrot.lane.b32.xlu0 %v2153, 64
    %v2165 = vpop.permute.xlu0 %2164
    %v2170 = vsel %vm324, %v2133, %v2159
    %v2171 = vsel %vm324, %v2134, %v2161
    %v2172 = vsel %vm324, %v2135, %v2163
    %v2173 = vsel %vm324, %v2136, %v2165
    %v2174 = vrot.slane %v2017, 2
    %v2176 = vrot.slane %v2014, 2
    %v2177 = vrot.slane %v2015, 2
    %v2178 = vsel %vm335, %v2176, %v2177
    %v2179 = vrot.slane %v2016, 2
    %v2180 = vsel %vm335, %v2177, %v2179
    %v2181 = vsel %vm335, %v2179, %v2174
    %v2186 = vsel %vm335, %v2174, %v2176
    %v2187 = vsel %vm329, %v2186, 0.0
    %v2188 = vsel %vm330, %v2178, 0.0
    %v2189 = vsel %vm331, %v2180, 0.0
    %v2190 = vsel %vm332, %v2181, 0.0
    %2195 = vrot.lane.b32.xlu0 %v2187, 80
    %v2196 = vpop.permute.xlu0 %2195
    %2197 = vrot.lane.b32.xlu0 %v2188, 80
    %v2198 = vpop.permute.xlu0 %2197
    %2199 = vrot.lane.b32.xlu0 %v2189, 80
    %v2200 = vpop.permute.xlu0 %2199
    %2201 = vrot.lane.b32.xlu0 %v2190, 80
    %v2202 = vpop.permute.xlu0 %2201
    %v2207 = vsel %vm367, %v2170, %v2196
    %v2208 = vsel %vm367, %v2171, %v2198
    %v2209 = vsel %vm367, %v2172, %v2200
    %v2210 = vsel %vm367, %v2173, %v2202
    %v2211 = vrot.slane %v2017, 3
    %v2213 = vrot.slane %v2014, 3
    %v2214 = vrot.slane %v2015, 3
    %v2215 = vsel %vm378, %v2213, %v2214
    %v2216 = vrot.slane %v2016, 3
    %v2217 = vsel %vm378, %v2214, %v2216
    %v2218 = vsel %vm378, %v2216, %v2211
    %v2223 = vsel %vm378, %v2211, %v2213
    %v2224 = vsel %vm372, %v2223, 0.0
    %v2225 = vsel %vm373, %v2215, 0.0
    %v2226 = vsel %vm374, %v2217, 0.0
    %v2227 = vsel %vm375, %v2218, 0.0
    %2232 = vrot.lane.b32.xlu0 %v2224, 96
    %v2233 = vpop.permute.xlu0 %2232
    %2234 = vrot.lane.b32.xlu0 %v2225, 96
    %v2235 = vpop.permute.xlu0 %2234
    %2236 = vrot.lane.b32.xlu0 %v2226, 96
    %v2237 = vpop.permute.xlu0 %2236
    %2238 = vrot.lane.b32.xlu0 %v2227, 96
    %v2239 = vpop.permute.xlu0 %2238
    %v2244 = vsel %vm410, %v2207, %v2233
    %v2245 = vsel %vm410, %v2208, %v2235
    %v2246 = vsel %vm410, %v2209, %v2237
    %v2247 = vsel %vm410, %v2210, %v2239
    %v2248 = vrot.slane %v2017, 4
    %v2250 = vrot.slane %v2014, 4
    %v2251 = vrot.slane %v2015, 4
    %v2252 = vsel %vm421, %v2250, %v2251
    %v2253 = vrot.slane %v2016, 4
    %v2254 = vsel %vm421, %v2251, %v2253
    %v2255 = vsel %vm421, %v2253, %v2248
    %v2260 = vsel %vm421, %v2248, %v2250
    %v2261 = vsel %vm415, %v2260, 0.0
    %v2262 = vsel %vm416, %v2252, 0.0
    %v2263 = vsel %vm417, %v2254, 0.0
    %v2264 = vsel %vm418, %v2255, 0.0
    %2269 = vrot.lane.b32.xlu0 %v2261, 112
    %v2270 = vpop.permute.xlu0 %2269
    %2271 = vrot.lane.b32.xlu0 %v2262, 112
    %v2272 = vpop.permute.xlu0 %2271
    %2273 = vrot.lane.b32.xlu0 %v2263, 112
    %v2274 = vpop.permute.xlu0 %2273
    %2275 = vrot.lane.b32.xlu0 %v2264, 112
    %v2276 = vpop.permute.xlu0 %2275
    %v2281 = vsel %vm453, %v2244, %v2270
    %v2282 = vsel %vm453, %v2245, %v2272
    %v2283 = vsel %vm453, %v2246, %v2274
    %v2284 = vsel %vm453, %v2247, %v2276
    %v2285 = vsel %vm458, %v2034, 0.0
    %v2286 = vsel %vm459, %v2029, 0.0
    %v2287 = vsel %vm460, %v2030, 0.0
    %v2288 = vsel %vm461, %v2022, 0.0
    %v2289 = vsel %vm466, %v2051, 0.0
    %v2290 = vsel %vm467, %v2046, 0.0
    %v2291 = vsel %vm468, %v2047, 0.0
    %v2292 = vsel %vm469, %v2041, 0.0
    %2297 = vrot.lane.b32.xlu0 %v2289, 16
    %v2298 = vpop.permute.xlu0 %2297
    %2299 = vrot.lane.b32.xlu0 %v2290, 16
    %v2300 = vpop.permute.xlu0 %2299
    %2301 = vrot.lane.b32.xlu0 %v2291, 16
    %v2302 = vpop.permute.xlu0 %2301
    %2303 = vrot.lane.b32.xlu0 %v2292, 16
    %v2304 = vpop.permute.xlu0 %2303
    %v2309 = vsel %vm108, %v2285, %v2298
    %v2310 = vsel %vm108, %v2286, %v2300
    %v2311 = vsel %vm108, %v2287, %v2302
    %v2312 = vsel %vm108, %v2288, %v2304
    %v2313 = vsel %vm494, %v2088, 0.0
    %v2314 = vsel %vm495, %v2083, 0.0
    %v2315 = vsel %vm496, %v2084, 0.0
    %v2316 = vsel %vm497, %v2078, 0.0
    %2321 = vrot.lane.b32.xlu0 %v2313, 32
    %v2322 = vpop.permute.xlu0 %2321
    %2323 = vrot.lane.b32.xlu0 %v2314, 32
    %v2324 = vpop.permute.xlu0 %2323
    %2325 = vrot.lane.b32.xlu0 %v2315, 32
    %v2326 = vpop.permute.xlu0 %2325
    %2327 = vrot.lane.b32.xlu0 %v2316, 32
    %v2328 = vpop.permute.xlu0 %2327
    %v2333 = vsel %vm252, %v2309, %v2322
    %v2334 = vsel %vm252, %v2310, %v2324
    %v2335 = vsel %vm252, %v2311, %v2326
    %v2336 = vsel %vm252, %v2312, %v2328
    %2337 = vrot.lane.b32.xlu0 %v2014, 48
    %v2338 = vpop.permute.xlu0 %2337
    %2339 = vrot.lane.b32.xlu0 %v2015, 48
    %v2340 = vpop.permute.xlu0 %2339
    %2341 = vrot.lane.b32.xlu0 %v2016, 48
    %v2342 = vpop.permute.xlu0 %2341
    %2343 = vrot.lane.b32.xlu0 %v2017, 48
    %v2344 = vpop.permute.xlu0 %2343
    %v2349 = vsel %vm281, %v2333, %v2338
    %v2350 = vsel %vm281, %v2334, %v2340
    %v2351 = vsel %vm281, %v2335, %v2342
    %v2352 = vsel %vm281, %v2336, %v2344
    %s2353 = scalar_lea.vmem [#allocation2], 256
    %v2354 = vld [vmem:[%s2353] sm:$0xff]
    %v2355 = vld [vmem:[%s2353 + $0x8] sm:$0xff]
    %v2356 = vld [vmem:[%s2353 + $0x10] sm:$0xff]
    %v2357 = vld [vmem:[%s2353 + $0x18] sm:$0xff]
    %v2358 = vld [vmem:[%s2 + $0x8] sm:$0x1]
    %v2359 = vperm.slane %v2358, 0
    %v2361 = vsel %vm324, %v2349, 0
    %v2364 = vsel %vm324, %v2350, 0
    %v2367 = vsel %vm324, %v2351, 0
    %v2370 = vsel %vm324, %v2352, 0
    %v2373 = vsel %vm324, %v2355, 0
    %v2376 = vsel %vm324, %v2357, 0
    %2378 = vmatpush.xpose.msra.mxu0 0.0
    %2379 = vmatpush.xpose.msra.mxu0 0.0
    %2380 = vmatpush.xpose.msra.mxu0 0.0
    %2381 = vmatpush.xpose.msra.mxu0 0.0
    %2382 = vmatpush.xpose.msra.mxu0 0.0
    %2383 = vmatpush.xpose.msra.mxu0 0.0
    %2384 = vmatpush.xpose.msra.mxu0 0.0
    %2385 = vmatpush.xpose.msra.mxu0 0.0
    %2386 = vmatpush.xpose.msra.mxu0 0.0
    %2387 = vmatpush.xpose.msra.mxu0 0.0
    %2388 = vmatpush.xpose.msra.mxu0 0.0
    %2389 = vmatpush.xpose.msra.mxu0 0.0
    %2390 = vmatpush.xpose.msra.mxu0 0.0
    %2391 = vmatpush.xpose.msra.mxu0 0.0
    %2392 = vmatpush.xpose.msra.mxu0 %v2356
    %2393 = vmatpush.xpose.msra.mxu0 %v2354
    %2394 = vmatmul.f32.gmra.mxu0 %v2281
    %v2395 = vpop.f32.mrf.mxu0
    %v2396 = vadd.f32 %v2359, %v2395
    %2397 = vmatmul.f32.gmra.mxu0 %v2282
    %v2398 = vpop.f32.mrf.mxu0
    %v2399 = vadd.f32 %v2359, %v2398
    %2400 = vmatmul.f32.gmra.mxu0 %v2283
    %v2401 = vpop.f32.mrf.mxu0
    %v2402 = vadd.f32 %v2359, %v2401
    %2403 = vmatmul.f32.gmra.mxu0 %v2284
    %v2404 = vpop.f32.mrf.mxu0
    %v2405 = vadd.f32 %v2359, %v2404
    %2406 = vdwg.mxu0
    %2407 = vmatpush.xpose.msra.mxu0 0.0
    %2408 = vmatpush.xpose.msra.mxu0 0.0
    %2409 = vmatpush.xpose.msra.mxu0 0.0
    %2410 = vmatpush.xpose.msra.mxu0 0.0
    %2411 = vmatpush.xpose.msra.mxu0 0.0
    %2412 = vmatpush.xpose.msra.mxu0 0.0
    %2413 = vmatpush.xpose.msra.mxu0 0.0
    %2414 = vmatpush.xpose.msra.mxu0 0.0
    %2415 = vmatpush.xpose.msra.mxu0 0.0
    %2416 = vmatpush.xpose.msra.mxu0 0.0
    %2417 = vmatpush.xpose.msra.mxu0 0.0
    %2418 = vmatpush.xpose.msra.mxu0 0.0
    %2419 = vmatpush.xpose.msra.mxu0 0.0
    %2420 = vmatpush.xpose.msra.mxu0 0.0
    %2421 = vmatpush.xpose.msra.mxu0 %v2376
    %2422 = vmatpush.xpose.msra.mxu0 %v2373
    %2423 = vmatmul.f32.gmra.mxu0 %v2361
    %v2424 = vpop.f32.mrf.mxu0
    %v2425 = vadd.f32 %v2396, %v2424
    %2426 = vmatmul.f32.gmra.mxu0 %v2364
    %v2427 = vpop.f32.mrf.mxu0
    %v2428 = vadd.f32 %v2399, %v2427
    %2429 = vmatmul.f32.gmra.mxu0 %v2367
    %v2430 = vpop.f32.mrf.mxu0
    %v2431 = vadd.f32 %v2402, %v2430
    %2432 = vmatmul.f32.gmra.mxu0 %v2370
    %v2433 = vpop.f32.mrf.mxu0
    %v2434 = vadd.f32 %v2405, %v2433
    %2435 = vdwg.mxu0
    %v2436 = vtanh.pop %v2425
    %v2437 = vtanh.pop %v2428
    %v2438 = vtanh.pop %v2431
    %v2439 = vtanh.pop %v2434
    %v2442 = vrot.slane %v2438, 5
    %v2443 = vrot.slane %v2439, 5
    %v2444 = vsel %vm154, %v2442, %v2443
    %v2449 = vrot.slane %v2436, 5
    %v2450 = vrot.slane %v2437, 5
    %v2451 = vsel %vm154, %v2449, %v2450
    %v2452 = vsel %vm154, %v2450, %v2442
    %v2456 = vsel %vm154, %v2443, %v2449
    %v2457 = vsel %vm150, %v2444, 0.0
    %v2458 = vsel %vm151, %v2456, 0.0
    %v2459 = vsel %vm152, %v2451, 0.0
    %v2460 = vsel %vm153, %v2452, 0.0
    %v2461 = vrot.slane %v2438, 6
    %v2462 = vrot.slane %v2439, 6
    %v2463 = vsel %vm176, %v2461, %v2462
    %v2466 = vrot.slane %v2436, 6
    %v2467 = vrot.slane %v2437, 6
    %v2468 = vsel %vm176, %v2466, %v2467
    %v2469 = vsel %vm176, %v2467, %v2461
    %v2473 = vsel %vm176, %v2462, %v2466
    %v2474 = vsel %vm172, %v2463, 0.0
    %v2475 = vsel %vm173, %v2473, 0.0
    %v2476 = vsel %vm174, %v2468, 0.0
    %v2477 = vsel %vm175, %v2469, 0.0
    %2482 = vrot.lane.b32.xlu0 %v2474, 16
    %v2483 = vpop.permute.xlu0 %2482
    %2484 = vrot.lane.b32.xlu0 %v2475, 16
    %v2485 = vpop.permute.xlu0 %2484
    %2486 = vrot.lane.b32.xlu0 %v2476, 16
    %v2487 = vpop.permute.xlu0 %2486
    %2488 = vrot.lane.b32.xlu0 %v2477, 16
    %v2489 = vpop.permute.xlu0 %2488
    %v2494 = vsel %vm108, %v2457, %v2483
    %v2495 = vsel %vm108, %v2458, %v2485
    %v2496 = vsel %vm108, %v2459, %v2487
    %v2497 = vsel %vm108, %v2460, %v2489
    %v2498 = vrot.slane %v2438, 7
    %v2499 = vrot.slane %v2439, 7
    %v2500 = vsel %vm218, %v2498, %v2499
    %v2503 = vrot.slane %v2436, 7
    %v2504 = vrot.slane %v2437, 7
    %v2505 = vsel %vm218, %v2503, %v2504
    %v2506 = vsel %vm218, %v2504, %v2498
    %v2510 = vsel %vm218, %v2499, %v2503
    %v2511 = vsel %vm214, %v2500, 0.0
    %v2512 = vsel %vm215, %v2510, 0.0
    %v2513 = vsel %vm216, %v2505, 0.0
    %v2514 = vsel %vm217, %v2506, 0.0
    %2519 = vrot.lane.b32.xlu0 %v2511, 32
    %v2520 = vpop.permute.xlu0 %2519
    %2521 = vrot.lane.b32.xlu0 %v2512, 32
    %v2522 = vpop.permute.xlu0 %2521
    %2523 = vrot.lane.b32.xlu0 %v2513, 32
    %v2524 = vpop.permute.xlu0 %2523
    %2525 = vrot.lane.b32.xlu0 %v2514, 32
    %v2526 = vpop.permute.xlu0 %2525
    %v2531 = vsel %vm252, %v2494, %v2520
    %v2532 = vsel %vm252, %v2495, %v2522
    %v2533 = vsel %vm252, %v2496, %v2524
    %v2534 = vsel %vm252, %v2497, %v2526
    %v2535 = vsel %vm257, %v2439, 0.0
    %v2536 = vsel %vm258, %v2436, 0.0
    %v2537 = vsel %vm259, %v2437, 0.0
    %v2538 = vsel %vm260, %v2438, 0.0
    %2543 = vrot.lane.b32.xlu0 %v2535, 48
    %v2544 = vpop.permute.xlu0 %2543
    %2545 = vrot.lane.b32.xlu0 %v2536, 48
    %v2546 = vpop.permute.xlu0 %2545
    %2547 = vrot.lane.b32.xlu0 %v2537, 48
    %v2548 = vpop.permute.xlu0 %2547
    %2549 = vrot.lane.b32.xlu0 %v2538, 48
    %v2550 = vpop.permute.xlu0 %2549
    %v2555 = vsel %vm281, %v2531, %v2544
    %v2556 = vsel %vm281, %v2532, %v2546
    %v2557 = vsel %vm281, %v2533, %v2548
    %v2558 = vsel %vm281, %v2534, %v2550
    %v2559 = vrot.slane %v2439, 1
    %v2561 = vrot.slane %v2436, 1
    %v2562 = vrot.slane %v2437, 1
    %v2563 = vsel %vm292, %v2561, %v2562
    %v2564 = vrot.slane %v2438, 1
    %v2565 = vsel %vm292, %v2562, %v2564
    %v2566 = vsel %vm292, %v2564, %v2559
    %v2571 = vsel %vm292, %v2559, %v2561
    %v2572 = vsel %vm286, %v2571, 0.0
    %v2573 = vsel %vm287, %v2563, 0.0
    %v2574 = vsel %vm288, %v2565, 0.0
    %v2575 = vsel %vm289, %v2566, 0.0
    %2580 = vrot.lane.b32.xlu0 %v2572, 64
    %v2581 = vpop.permute.xlu0 %2580
    %2582 = vrot.lane.b32.xlu0 %v2573, 64
    %v2583 = vpop.permute.xlu0 %2582
    %2584 = vrot.lane.b32.xlu0 %v2574, 64
    %v2585 = vpop.permute.xlu0 %2584
    %2586 = vrot.lane.b32.xlu0 %v2575, 64
    %v2587 = vpop.permute.xlu0 %2586
    %v2592 = vsel %vm324, %v2555, %v2581
    %v2593 = vsel %vm324, %v2556, %v2583
    %v2594 = vsel %vm324, %v2557, %v2585
    %v2595 = vsel %vm324, %v2558, %v2587
    %v2596 = vrot.slane %v2439, 2
    %v2598 = vrot.slane %v2436, 2
    %v2599 = vrot.slane %v2437, 2
    %v2600 = vsel %vm335, %v2598, %v2599
    %v2601 = vrot.slane %v2438, 2
    %v2602 = vsel %vm335, %v2599, %v2601
    %v2603 = vsel %vm335, %v2601, %v2596
    %v2608 = vsel %vm335, %v2596, %v2598
    %v2609 = vsel %vm329, %v2608, 0.0
    %v2610 = vsel %vm330, %v2600, 0.0
    %v2611 = vsel %vm331, %v2602, 0.0
    %v2612 = vsel %vm332, %v2603, 0.0
    %2617 = vrot.lane.b32.xlu0 %v2609, 80
    %v2618 = vpop.permute.xlu0 %2617
    %2619 = vrot.lane.b32.xlu0 %v2610, 80
    %v2620 = vpop.permute.xlu0 %2619
    %2621 = vrot.lane.b32.xlu0 %v2611, 80
    %v2622 = vpop.permute.xlu0 %2621
    %2623 = vrot.lane.b32.xlu0 %v2612, 80
    %v2624 = vpop.permute.xlu0 %2623
    %v2629 = vsel %vm367, %v2592, %v2618
    %v2630 = vsel %vm367, %v2593, %v2620
    %v2631 = vsel %vm367, %v2594, %v2622
    %v2632 = vsel %vm367, %v2595, %v2624
    %v2633 = vrot.slane %v2439, 3
    %v2635 = vrot.slane %v2436, 3
    %v2636 = vrot.slane %v2437, 3
    %v2637 = vsel %vm378, %v2635, %v2636
    %v2638 = vrot.slane %v2438, 3
    %v2639 = vsel %vm378, %v2636, %v2638
    %v2640 = vsel %vm378, %v2638, %v2633
    %v2645 = vsel %vm378, %v2633, %v2635
    %v2646 = vsel %vm372, %v2645, 0.0
    %v2647 = vsel %vm373, %v2637, 0.0
    %v2648 = vsel %vm374, %v2639, 0.0
    %v2649 = vsel %vm375, %v2640, 0.0
    %2654 = vrot.lane.b32.xlu0 %v2646, 96
    %v2655 = vpop.permute.xlu0 %2654
    %2656 = vrot.lane.b32.xlu0 %v2647, 96
    %v2657 = vpop.permute.xlu0 %2656
    %2658 = vrot.lane.b32.xlu0 %v2648, 96
    %v2659 = vpop.permute.xlu0 %2658
    %2660 = vrot.lane.b32.xlu0 %v2649, 96
    %v2661 = vpop.permute.xlu0 %2660
    %v2666 = vsel %vm410, %v2629, %v2655
    %v2667 = vsel %vm410, %v2630, %v2657
    %v2668 = vsel %vm410, %v2631, %v2659
    %v2669 = vsel %vm410, %v2632, %v2661
    %v2670 = vrot.slane %v2439, 4
    %v2672 = vrot.slane %v2436, 4
    %v2673 = vrot.slane %v2437, 4
    %v2674 = vsel %vm421, %v2672, %v2673
    %v2675 = vrot.slane %v2438, 4
    %v2676 = vsel %vm421, %v2673, %v2675
    %v2677 = vsel %vm421, %v2675, %v2670
    %v2682 = vsel %vm421, %v2670, %v2672
    %v2683 = vsel %vm415, %v2682, 0.0
    %v2684 = vsel %vm416, %v2674, 0.0
    %v2685 = vsel %vm417, %v2676, 0.0
    %v2686 = vsel %vm418, %v2677, 0.0
    %2691 = vrot.lane.b32.xlu0 %v2683, 112
    %v2692 = vpop.permute.xlu0 %2691
    %2693 = vrot.lane.b32.xlu0 %v2684, 112
    %v2694 = vpop.permute.xlu0 %2693
    %2695 = vrot.lane.b32.xlu0 %v2685, 112
    %v2696 = vpop.permute.xlu0 %2695
    %2697 = vrot.lane.b32.xlu0 %v2686, 112
    %v2698 = vpop.permute.xlu0 %2697
    %v2703 = vsel %vm453, %v2666, %v2692
    %v2704 = vsel %vm453, %v2667, %v2694
    %v2705 = vsel %vm453, %v2668, %v2696
    %v2706 = vsel %vm453, %v2669, %v2698
    %v2707 = vsel %vm458, %v2456, 0.0
    %v2708 = vsel %vm459, %v2451, 0.0
    %v2709 = vsel %vm460, %v2452, 0.0
    %v2710 = vsel %vm461, %v2444, 0.0
    %v2711 = vsel %vm466, %v2473, 0.0
    %v2712 = vsel %vm467, %v2468, 0.0
    %v2713 = vsel %vm468, %v2469, 0.0
    %v2714 = vsel %vm469, %v2463, 0.0
    %2719 = vrot.lane.b32.xlu0 %v2711, 16
    %v2720 = vpop.permute.xlu0 %2719
    %2721 = vrot.lane.b32.xlu0 %v2712, 16
    %v2722 = vpop.permute.xlu0 %2721
    %2723 = vrot.lane.b32.xlu0 %v2713, 16
    %v2724 = vpop.permute.xlu0 %2723
    %2725 = vrot.lane.b32.xlu0 %v2714, 16
    %v2726 = vpop.permute.xlu0 %2725
    %v2731 = vsel %vm108, %v2707, %v2720
    %v2732 = vsel %vm108, %v2708, %v2722
    %v2733 = vsel %vm108, %v2709, %v2724
    %v2734 = vsel %vm108, %v2710, %v2726
    %v2735 = vsel %vm494, %v2510, 0.0
    %v2736 = vsel %vm495, %v2505, 0.0
    %v2737 = vsel %vm496, %v2506, 0.0
    %v2738 = vsel %vm497, %v2500, 0.0
    %2743 = vrot.lane.b32.xlu0 %v2735, 32
    %v2744 = vpop.permute.xlu0 %2743
    %2745 = vrot.lane.b32.xlu0 %v2736, 32
    %v2746 = vpop.permute.xlu0 %2745
    %2747 = vrot.lane.b32.xlu0 %v2737, 32
    %v2748 = vpop.permute.xlu0 %2747
    %2749 = vrot.lane.b32.xlu0 %v2738, 32
    %v2750 = vpop.permute.xlu0 %2749
    %v2755 = vsel %vm252, %v2731, %v2744
    %v2756 = vsel %vm252, %v2732, %v2746
    %v2757 = vsel %vm252, %v2733, %v2748
    %v2758 = vsel %vm252, %v2734, %v2750
    %2759 = vrot.lane.b32.xlu0 %v2436, 48
    %v2760 = vpop.permute.xlu0 %2759
    %2761 = vrot.lane.b32.xlu0 %v2437, 48
    %v2762 = vpop.permute.xlu0 %2761
    %2763 = vrot.lane.b32.xlu0 %v2438, 48
    %v2764 = vpop.permute.xlu0 %2763
    %2765 = vrot.lane.b32.xlu0 %v2439, 48
    %v2766 = vpop.permute.xlu0 %2765
    %v2771 = vsel %vm281, %v2755, %v2760
    %v2772 = vsel %vm281, %v2756, %v2762
    %v2773 = vsel %vm281, %v2757, %v2764
    %v2774 = vsel %vm281, %v2758, %v2766
    %s2775 = scalar_lea.vmem [#allocation2], 288
    %v2776 = vld [vmem:[%s2775] sm:$0xff]
    %v2777 = vld [vmem:[%s2775 + $0x8] sm:$0xff]
    %v2778 = vld [vmem:[%s2775 + $0x10] sm:$0xff]
    %v2779 = vld [vmem:[%s2775 + $0x18] sm:$0xff]
    %v2780 = vld [vmem:[%s2 + $0x9] sm:$0x1]
    %v2781 = vperm.slane %v2780, 0
    %v2783 = vsel %vm324, %v2771, 0
    %v2786 = vsel %vm324, %v2772, 0
    %v2789 = vsel %vm324, %v2773, 0
    %v2792 = vsel %vm324, %v2774, 0
    %v2795 = vsel %vm324, %v2777, 0
    %v2798 = vsel %vm324, %v2779, 0
    %2800 = vmatpush.xpose.msra.mxu0 0.0
    %2801 = vmatpush.xpose.msra.mxu0 0.0
    %2802 = vmatpush.xpose.msra.mxu0 0.0
    %2803 = vmatpush.xpose.msra.mxu0 0.0
    %2804 = vmatpush.xpose.msra.mxu0 0.0
    %2805 = vmatpush.xpose.msra.mxu0 0.0
    %2806 = vmatpush.xpose.msra.mxu0 0.0
    %2807 = vmatpush.xpose.msra.mxu0 0.0
    %2808 = vmatpush.xpose.msra.mxu0 0.0
    %2809 = vmatpush.xpose.msra.mxu0 0.0
    %2810 = vmatpush.xpose.msra.mxu0 0.0
    %2811 = vmatpush.xpose.msra.mxu0 0.0
    %2812 = vmatpush.xpose.msra.mxu0 0.0
    %2813 = vmatpush.xpose.msra.mxu0 0.0
    %2814 = vmatpush.xpose.msra.mxu0 %v2778
    %2815 = vmatpush.xpose.msra.mxu0 %v2776
    %2816 = vmatmul.f32.gmra.mxu0 %v2703
    %v2817 = vpop.f32.mrf.mxu0
    %v2818 = vadd.f32 %v2781, %v2817
    %2819 = vmatmul.f32.gmra.mxu0 %v2704
    %v2820 = vpop.f32.mrf.mxu0
    %v2821 = vadd.f32 %v2781, %v2820
    %2822 = vmatmul.f32.gmra.mxu0 %v2705
    %v2823 = vpop.f32.mrf.mxu0
    %v2824 = vadd.f32 %v2781, %v2823
    %2825 = vmatmul.f32.gmra.mxu0 %v2706
    %v2826 = vpop.f32.mrf.mxu0
    %v2827 = vadd.f32 %v2781, %v2826
    %2828 = vdwg.mxu0
    %2829 = vmatpush.xpose.msra.mxu0 0.0
    %2830 = vmatpush.xpose.msra.mxu0 0.0
    %2831 = vmatpush.xpose.msra.mxu0 0.0
    %2832 = vmatpush.xpose.msra.mxu0 0.0
    %2833 = vmatpush.xpose.msra.mxu0 0.0
    %2834 = vmatpush.xpose.msra.mxu0 0.0
    %2835 = vmatpush.xpose.msra.mxu0 0.0
    %2836 = vmatpush.xpose.msra.mxu0 0.0
    %2837 = vmatpush.xpose.msra.mxu0 0.0
    %2838 = vmatpush.xpose.msra.mxu0 0.0
    %2839 = vmatpush.xpose.msra.mxu0 0.0
    %2840 = vmatpush.xpose.msra.mxu0 0.0
    %2841 = vmatpush.xpose.msra.mxu0 0.0
    %2842 = vmatpush.xpose.msra.mxu0 0.0
    %2843 = vmatpush.xpose.msra.mxu0 %v2798
    %2844 = vmatpush.xpose.msra.mxu0 %v2795
    %2845 = vmatmul.f32.gmra.mxu0 %v2783
    %v2846 = vpop.f32.mrf.mxu0
    %v2847 = vadd.f32 %v2818, %v2846
    %2848 = vmatmul.f32.gmra.mxu0 %v2786
    %v2849 = vpop.f32.mrf.mxu0
    %v2850 = vadd.f32 %v2821, %v2849
    %2851 = vmatmul.f32.gmra.mxu0 %v2789
    %v2852 = vpop.f32.mrf.mxu0
    %v2853 = vadd.f32 %v2824, %v2852
    %2854 = vmatmul.f32.gmra.mxu0 %v2792
    %v2855 = vpop.f32.mrf.mxu0
    %v2856 = vadd.f32 %v2827, %v2855
    %2857 = vdwg.mxu0
    %v2858 = vtanh.pop %v2847
    %v2859 = vtanh.pop %v2850
    %v2860 = vtanh.pop %v2853
    %v2861 = vtanh.pop %v2856
    %v2862 = vadd.f32 %v2858, %v2014
    %v2863 = vadd.f32 %v2859, %v2015
    %v2864 = vadd.f32 %v2860, %v2016
    %v2865 = vadd.f32 %v2861, %v2017
    %v2866 = vtanh.pop %v2862
    %v2867 = vtanh.pop %v2863
    %v2868 = vtanh.pop %v2864
    %v2869 = vtanh.pop %v2865
    %v2872 = vrot.slane %v2868, 2
    %v2873 = vrot.slane %v2869, 2
    %v2874 = vsel %vm335, %v2872, %v2873
    %v2879 = vrot.slane %v2866, 2
    %v2880 = vrot.slane %v2867, 2
    %v2881 = vsel %vm335, %v2879, %v2880
    %v2882 = vsel %vm335, %v2880, %v2872
    %v2886 = vsel %vm335, %v2873, %v2879
    %v2887 = vsel %vm1054, %v2874, 0.0
    %v2888 = vsel %vm1055, %v2886, 0.0
    %v2889 = vsel %vm1056, %v2881, 0.0
    %v2890 = vsel %vm1057, %v2882, 0.0
    %v2891 = vrot.slane %v2868, 4
    %v2892 = vrot.slane %v2869, 4
    %v2893 = vsel %vm421, %v2891, %v2892
    %v2896 = vrot.slane %v2866, 4
    %v2897 = vrot.slane %v2867, 4
    %v2898 = vsel %vm421, %v2896, %v2897
    %v2899 = vsel %vm421, %v2897, %v2891
    %v2903 = vsel %vm421, %v2892, %v2896
    %v2904 = vsel %vm1079, %v2893, 0.0
    %v2905 = vsel %vm1080, %v2903, 0.0
    %v2906 = vsel %vm1081, %v2898, 0.0
    %v2907 = vsel %vm1082, %v2899, 0.0
    %2912 = vrot.lane.b32.xlu0 %v2904, 16
    %v2913 = vpop.permute.xlu0 %2912
    %2914 = vrot.lane.b32.xlu0 %v2905, 16
    %v2915 = vpop.permute.xlu0 %2914
    %2916 = vrot.lane.b32.xlu0 %v2906, 16
    %v2917 = vpop.permute.xlu0 %2916
    %2918 = vrot.lane.b32.xlu0 %v2907, 16
    %v2919 = vpop.permute.xlu0 %2918
    %v2924 = vsel %vm108, %v2887, %v2913
    %v2925 = vsel %vm108, %v2888, %v2915
    %v2926 = vsel %vm108, %v2889, %v2917
    %v2927 = vsel %vm108, %v2890, %v2919
    %v2928 = vrot.slane %v2868, 6
    %v2929 = vrot.slane %v2869, 6
    %v2930 = vsel %vm176, %v2928, %v2929
    %v2933 = vrot.slane %v2866, 6
    %v2934 = vrot.slane %v2867, 6
    %v2935 = vsel %vm176, %v2933, %v2934
    %v2936 = vsel %vm176, %v2934, %v2928
    %v2940 = vsel %vm176, %v2929, %v2933
    %v2941 = vsel %vm172, %v2930, 0.0
    %v2942 = vsel %vm173, %v2940, 0.0
    %v2943 = vsel %vm174, %v2935, 0.0
    %v2944 = vsel %vm175, %v2936, 0.0
    %2949 = vrot.lane.b32.xlu0 %v2941, 32
    %v2950 = vpop.permute.xlu0 %2949
    %2951 = vrot.lane.b32.xlu0 %v2942, 32
    %v2952 = vpop.permute.xlu0 %2951
    %2953 = vrot.lane.b32.xlu0 %v2943, 32
    %v2954 = vpop.permute.xlu0 %2953
    %2955 = vrot.lane.b32.xlu0 %v2944, 32
    %v2956 = vpop.permute.xlu0 %2955
    %v2961 = vsel %vm252, %v2924, %v2950
    %v2962 = vsel %vm252, %v2925, %v2952
    %v2963 = vsel %vm252, %v2926, %v2954
    %v2964 = vsel %vm252, %v2927, %v2956
    %v2965 = vsel %vm257, %v2869, 0.0
    %v2966 = vsel %vm258, %v2866, 0.0
    %v2967 = vsel %vm259, %v2867, 0.0
    %v2968 = vsel %vm260, %v2868, 0.0
    %2973 = vrot.lane.b32.xlu0 %v2965, 48
    %v2974 = vpop.permute.xlu0 %2973
    %2975 = vrot.lane.b32.xlu0 %v2966, 48
    %v2976 = vpop.permute.xlu0 %2975
    %2977 = vrot.lane.b32.xlu0 %v2967, 48
    %v2978 = vpop.permute.xlu0 %2977
    %2979 = vrot.lane.b32.xlu0 %v2968, 48
    %v2980 = vpop.permute.xlu0 %2979
    %v2985 = vsel %vm281, %v2961, %v2974
    %v2986 = vsel %vm281, %v2962, %v2976
    %v2987 = vsel %vm281, %v2963, %v2978
    %v2988 = vsel %vm281, %v2964, %v2980
    %v2989 = vsel %vm329, %v2886, 0.0
    %v2990 = vsel %vm330, %v2881, 0.0
    %v2991 = vsel %vm331, %v2882, 0.0
    %v2992 = vsel %vm332, %v2874, 0.0
    %2997 = vrot.lane.b32.xlu0 %v2989, 64
    %v2998 = vpop.permute.xlu0 %2997
    %2999 = vrot.lane.b32.xlu0 %v2990, 64
    %v3000 = vpop.permute.xlu0 %2999
    %3001 = vrot.lane.b32.xlu0 %v2991, 64
    %v3002 = vpop.permute.xlu0 %3001
    %3003 = vrot.lane.b32.xlu0 %v2992, 64
    %v3004 = vpop.permute.xlu0 %3003
    %v3009 = vsel %vm324, %v2985, %v2998
    %v3010 = vsel %vm324, %v2986, %v3000
    %v3011 = vsel %vm324, %v2987, %v3002
    %v3012 = vsel %vm324, %v2988, %v3004
    %v3013 = vsel %vm415, %v2903, 0.0
    %v3014 = vsel %vm416, %v2898, 0.0
    %v3015 = vsel %vm417, %v2899, 0.0
    %v3016 = vsel %vm418, %v2893, 0.0
    %3021 = vrot.lane.b32.xlu0 %v3013, 80
    %v3022 = vpop.permute.xlu0 %3021
    %3023 = vrot.lane.b32.xlu0 %v3014, 80
    %v3024 = vpop.permute.xlu0 %3023
    %3025 = vrot.lane.b32.xlu0 %v3015, 80
    %v3026 = vpop.permute.xlu0 %3025
    %3027 = vrot.lane.b32.xlu0 %v3016, 80
    %v3028 = vpop.permute.xlu0 %3027
    %v3033 = vsel %vm367, %v3009, %v3022
    %v3034 = vsel %vm367, %v3010, %v3024
    %v3035 = vsel %vm367, %v3011, %v3026
    %v3036 = vsel %vm367, %v3012, %v3028
    %v3037 = vsel %vm466, %v2940, 0.0
    %v3038 = vsel %vm467, %v2935, 0.0
    %v3039 = vsel %vm468, %v2936, 0.0
    %v3040 = vsel %vm469, %v2930, 0.0
    %3045 = vrot.lane.b32.xlu0 %v3037, 96
    %v3046 = vpop.permute.xlu0 %3045
    %3047 = vrot.lane.b32.xlu0 %v3038, 96
    %v3048 = vpop.permute.xlu0 %3047
    %3049 = vrot.lane.b32.xlu0 %v3039, 96
    %v3050 = vpop.permute.xlu0 %3049
    %3051 = vrot.lane.b32.xlu0 %v3040, 96
    %v3052 = vpop.permute.xlu0 %3051
    %v3057 = vsel %vm410, %v3033, %v3046
    %v3058 = vsel %vm410, %v3034, %v3048
    %v3059 = vsel %vm410, %v3035, %v3050
    %v3060 = vsel %vm410, %v3036, %v3052
    %3061 = vrot.lane.b32.xlu0 %v2866, 112
    %v3062 = vpop.permute.xlu0 %3061
    %3063 = vrot.lane.b32.xlu0 %v2867, 112
    %v3064 = vpop.permute.xlu0 %3063
    %3065 = vrot.lane.b32.xlu0 %v2868, 112
    %v3066 = vpop.permute.xlu0 %3065
    %3067 = vrot.lane.b32.xlu0 %v2869, 112
    %v3068 = vpop.permute.xlu0 %3067
    %v3073 = vsel %vm453, %v3057, %v3062
    %v3074 = vsel %vm453, %v3058, %v3064
    %v3075 = vsel %vm453, %v3059, %v3066
    %v3076 = vsel %vm453, %v3060, %v3068
    %s3077 = scalar_lea.vmem [#allocation2], 320
    %v3078 = vld [vmem:[%s3077] sm:$0xff]
    %v3079 = vld [vmem:[%s3077 + $0x10] sm:$0xff]
    %v3080 = vld [vmem:[%s2 + $0xa] sm:$0x1]
    %v3081 = vperm.slane %v3080, 0
    %3082 = vmatpush.xpose.msra.mxu0 0.0
    %3083 = vmatpush.xpose.msra.mxu0 0.0
    %3084 = vmatpush.xpose.msra.mxu0 0.0
    %3085 = vmatpush.xpose.msra.mxu0 0.0
    %3086 = vmatpush.xpose.msra.mxu0 0.0
    %3087 = vmatpush.xpose.msra.mxu0 0.0
    %3088 = vmatpush.xpose.msra.mxu0 0.0
    %3089 = vmatpush.xpose.msra.mxu0 0.0
    %3090 = vmatpush.xpose.msra.mxu0 0.0
    %3091 = vmatpush.xpose.msra.mxu0 0.0
    %3092 = vmatpush.xpose.msra.mxu0 0.0
    %3093 = vmatpush.xpose.msra.mxu0 0.0
    %3094 = vmatpush.xpose.msra.mxu0 0.0
    %3095 = vmatpush.xpose.msra.mxu0 0.0
    %3096 = vmatpush.xpose.msra.mxu0 %v3079
    %3097 = vmatpush.xpose.msra.mxu0 %v3078
    %3098 = vmatmul.f32.gmra.mxu0 %v3073
    %v3099 = vpop.f32.mrf.mxu0
    %v3100 = vadd.f32 %v3081, %v3099
    %3101 = vmatmul.f32.gmra.mxu0 %v3074
    %v3102 = vpop.f32.mrf.mxu0
    %v3103 = vadd.f32 %v3081, %v3102
    %3104 = vmatmul.f32.gmra.mxu0 %v3075
    %v3105 = vpop.f32.mrf.mxu0
    %v3106 = vadd.f32 %v3081, %v3105
    %3107 = vmatmul.f32.gmra.mxu0 %v3076
    %v3108 = vpop.f32.mrf.mxu0
    %v3109 = vadd.f32 %v3081, %v3108
    %3110 = vdwg.mxu0
    %v3111 = vtanh.pop %v3100
    %v3112 = vtanh.pop %v3103
    %v3113 = vtanh.pop %v3106
    %v3114 = vtanh.pop %v3109
    %v3117 = vrot.slane %v3113, 2
    %v3118 = vrot.slane %v3114, 2
    %v3119 = vsel %vm335, %v3117, %v3118
    %v3124 = vrot.slane %v3111, 2
    %v3125 = vrot.slane %v3112, 2
    %v3126 = vsel %vm335, %v3124, %v3125
    %v3127 = vsel %vm335, %v3125, %v3117
    %v3131 = vsel %vm335, %v3118, %v3124
    %v3132 = vsel %vm1054, %v3119, 0.0
    %v3133 = vsel %vm1055, %v3131, 0.0
    %v3134 = vsel %vm1056, %v3126, 0.0
    %v3135 = vsel %vm1057, %v3127, 0.0
    %v3136 = vrot.slane %v3113, 4
    %v3137 = vrot.slane %v3114, 4
    %v3138 = vsel %vm421, %v3136, %v3137
    %v3141 = vrot.slane %v3111, 4
    %v3142 = vrot.slane %v3112, 4
    %v3143 = vsel %vm421, %v3141, %v3142
    %v3144 = vsel %vm421, %v3142, %v3136
    %v3148 = vsel %vm421, %v3137, %v3141
    %v3149 = vsel %vm1079, %v3138, 0.0
    %v3150 = vsel %vm1080, %v3148, 0.0
    %v3151 = vsel %vm1081, %v3143, 0.0
    %v3152 = vsel %vm1082, %v3144, 0.0
    %3157 = vrot.lane.b32.xlu0 %v3149, 16
    %v3158 = vpop.permute.xlu0 %3157
    %3159 = vrot.lane.b32.xlu0 %v3150, 16
    %v3160 = vpop.permute.xlu0 %3159
    %3161 = vrot.lane.b32.xlu0 %v3151, 16
    %v3162 = vpop.permute.xlu0 %3161
    %3163 = vrot.lane.b32.xlu0 %v3152, 16
    %v3164 = vpop.permute.xlu0 %3163
    %v3169 = vsel %vm108, %v3132, %v3158
    %v3170 = vsel %vm108, %v3133, %v3160
    %v3171 = vsel %vm108, %v3134, %v3162
    %v3172 = vsel %vm108, %v3135, %v3164
    %v3173 = vrot.slane %v3113, 6
    %v3174 = vrot.slane %v3114, 6
    %v3175 = vsel %vm176, %v3173, %v3174
    %v3178 = vrot.slane %v3111, 6
    %v3179 = vrot.slane %v3112, 6
    %v3180 = vsel %vm176, %v3178, %v3179
    %v3181 = vsel %vm176, %v3179, %v3173
    %v3185 = vsel %vm176, %v3174, %v3178
    %v3186 = vsel %vm172, %v3175, 0.0
    %v3187 = vsel %vm173, %v3185, 0.0
    %v3188 = vsel %vm174, %v3180, 0.0
    %v3189 = vsel %vm175, %v3181, 0.0
    %3194 = vrot.lane.b32.xlu0 %v3186, 32
    %v3195 = vpop.permute.xlu0 %3194
    %3196 = vrot.lane.b32.xlu0 %v3187, 32
    %v3197 = vpop.permute.xlu0 %3196
    %3198 = vrot.lane.b32.xlu0 %v3188, 32
    %v3199 = vpop.permute.xlu0 %3198
    %3200 = vrot.lane.b32.xlu0 %v3189, 32
    %v3201 = vpop.permute.xlu0 %3200
    %v3206 = vsel %vm252, %v3169, %v3195
    %v3207 = vsel %vm252, %v3170, %v3197
    %v3208 = vsel %vm252, %v3171, %v3199
    %v3209 = vsel %vm252, %v3172, %v3201
    %v3210 = vsel %vm257, %v3114, 0.0
    %v3211 = vsel %vm258, %v3111, 0.0
    %v3212 = vsel %vm259, %v3112, 0.0
    %v3213 = vsel %vm260, %v3113, 0.0
    %3218 = vrot.lane.b32.xlu0 %v3210, 48
    %v3219 = vpop.permute.xlu0 %3218
    %3220 = vrot.lane.b32.xlu0 %v3211, 48
    %v3221 = vpop.permute.xlu0 %3220
    %3222 = vrot.lane.b32.xlu0 %v3212, 48
    %v3223 = vpop.permute.xlu0 %3222
    %3224 = vrot.lane.b32.xlu0 %v3213, 48
    %v3225 = vpop.permute.xlu0 %3224
    %v3230 = vsel %vm281, %v3206, %v3219
    %v3231 = vsel %vm281, %v3207, %v3221
    %v3232 = vsel %vm281, %v3208, %v3223
    %v3233 = vsel %vm281, %v3209, %v3225
    %v3234 = vsel %vm329, %v3131, 0.0
    %v3235 = vsel %vm330, %v3126, 0.0
    %v3236 = vsel %vm331, %v3127, 0.0
    %v3237 = vsel %vm332, %v3119, 0.0
    %3242 = vrot.lane.b32.xlu0 %v3234, 64
    %v3243 = vpop.permute.xlu0 %3242
    %3244 = vrot.lane.b32.xlu0 %v3235, 64
    %v3245 = vpop.permute.xlu0 %3244
    %3246 = vrot.lane.b32.xlu0 %v3236, 64
    %v3247 = vpop.permute.xlu0 %3246
    %3248 = vrot.lane.b32.xlu0 %v3237, 64
    %v3249 = vpop.permute.xlu0 %3248
    %v3254 = vsel %vm324, %v3230, %v3243
    %v3255 = vsel %vm324, %v3231, %v3245
    %v3256 = vsel %vm324, %v3232, %v3247
    %v3257 = vsel %vm324, %v3233, %v3249
    %v3258 = vsel %vm415, %v3148, 0.0
    %v3259 = vsel %vm416, %v3143, 0.0
    %v3260 = vsel %vm417, %v3144, 0.0
    %v3261 = vsel %vm418, %v3138, 0.0
    %3266 = vrot.lane.b32.xlu0 %v3258, 80
    %v3267 = vpop.permute.xlu0 %3266
    %3268 = vrot.lane.b32.xlu0 %v3259, 80
    %v3269 = vpop.permute.xlu0 %3268
    %3270 = vrot.lane.b32.xlu0 %v3260, 80
    %v3271 = vpop.permute.xlu0 %3270
    %3272 = vrot.lane.b32.xlu0 %v3261, 80
    %v3273 = vpop.permute.xlu0 %3272
    %v3278 = vsel %vm367, %v3254, %v3267
    %v3279 = vsel %vm367, %v3255, %v3269
    %v3280 = vsel %vm367, %v3256, %v3271
    %v3281 = vsel %vm367, %v3257, %v3273
    %v3282 = vsel %vm466, %v3185, 0.0
    %v3283 = vsel %vm467, %v3180, 0.0
    %v3284 = vsel %vm468, %v3181, 0.0
    %v3285 = vsel %vm469, %v3175, 0.0
    %3290 = vrot.lane.b32.xlu0 %v3282, 96
    %v3291 = vpop.permute.xlu0 %3290
    %3292 = vrot.lane.b32.xlu0 %v3283, 96
    %v3293 = vpop.permute.xlu0 %3292
    %3294 = vrot.lane.b32.xlu0 %v3284, 96
    %v3295 = vpop.permute.xlu0 %3294
    %3296 = vrot.lane.b32.xlu0 %v3285, 96
    %v3297 = vpop.permute.xlu0 %3296
    %v3302 = vsel %vm410, %v3278, %v3291
    %v3303 = vsel %vm410, %v3279, %v3293
    %v3304 = vsel %vm410, %v3280, %v3295
    %v3305 = vsel %vm410, %v3281, %v3297
    %3306 = vrot.lane.b32.xlu0 %v3111, 112
    %v3307 = vpop.permute.xlu0 %3306
    %3308 = vrot.lane.b32.xlu0 %v3112, 112
    %v3309 = vpop.permute.xlu0 %3308
    %3310 = vrot.lane.b32.xlu0 %v3113, 112
    %v3311 = vpop.permute.xlu0 %3310
    %3312 = vrot.lane.b32.xlu0 %v3114, 112
    %v3313 = vpop.permute.xlu0 %3312
    %v3318 = vsel %vm453, %v3302, %v3307
    %v3319 = vsel %vm453, %v3303, %v3309
    %v3320 = vsel %vm453, %v3304, %v3311
    %v3321 = vsel %vm453, %v3305, %v3313
    %s3322 = scalar_lea.vmem [#allocation2], 352
    %v3323 = vld [vmem:[%s3322] sm:$0xff]
    %v3324 = vld [vmem:[%s3322 + $0x10] sm:$0xff]
    %v3325 = vld [vmem:[%s2 + $0xb] sm:$0x1]
    %v3326 = vperm.slane %v3325, 0
    %3327 = vmatpush.xpose.msra.mxu0 0.0
    %3328 = vmatpush.xpose.msra.mxu0 0.0
    %3329 = vmatpush.xpose.msra.mxu0 0.0
    %3330 = vmatpush.xpose.msra.mxu0 0.0
    %3331 = vmatpush.xpose.msra.mxu0 0.0
    %3332 = vmatpush.xpose.msra.mxu0 0.0
    %3333 = vmatpush.xpose.msra.mxu0 0.0
    %3334 = vmatpush.xpose.msra.mxu0 0.0
    %3335 = vmatpush.xpose.msra.mxu0 0.0
    %3336 = vmatpush.xpose.msra.mxu0 0.0
    %3337 = vmatpush.xpose.msra.mxu0 0.0
    %3338 = vmatpush.xpose.msra.mxu0 0.0
    %3339 = vmatpush.xpose.msra.mxu0 0.0
    %3340 = vmatpush.xpose.msra.mxu0 0.0
    %3341 = vmatpush.xpose.msra.mxu0 %v3324
    %3342 = vmatpush.xpose.msra.mxu0 %v3323
    %3343 = vmatmul.f32.gmra.mxu0 %v3318
    %v3344 = vpop.f32.mrf.mxu0
    %v3345 = vadd.f32 %v3326, %v3344
    %3346 = vmatmul.f32.gmra.mxu0 %v3319
    %v3347 = vpop.f32.mrf.mxu0
    %v3348 = vadd.f32 %v3326, %v3347
    %3349 = vmatmul.f32.gmra.mxu0 %v3320
    %v3350 = vpop.f32.mrf.mxu0
    %v3351 = vadd.f32 %v3326, %v3350
    %3352 = vmatmul.f32.gmra.mxu0 %v3321
    %v3353 = vpop.f32.mrf.mxu0
    %v3354 = vadd.f32 %v3326, %v3353
    %3355 = vdwg.mxu0
    %v3356 = vtanh.pop %v3345
    %v3357 = vtanh.pop %v3348
    %v3358 = vtanh.pop %v3351
    %v3359 = vtanh.pop %v3354
    %v3360 = vadd.f32 %v3356, %v2866
    %v3361 = vadd.f32 %v3357, %v2867
    %v3362 = vadd.f32 %v3358, %v2868
    %v3363 = vadd.f32 %v3359, %v2869
    %v3364 = vtanh.pop %v3360
    %v3365 = vtanh.pop %v3361
    %v3366 = vtanh.pop %v3362
    %v3367 = vtanh.pop %v3363
    %v3370 = vrot.slane %v3366, 4
    %v3371 = vrot.slane %v3367, 4
    %v3372 = vsel %vm421, %v3370, %v3371
    %v3377 = vrot.slane %v3364, 4
    %v3378 = vrot.slane %v3365, 4
    %v3379 = vsel %vm421, %v3377, %v3378
    %v3380 = vsel %vm421, %v3378, %v3370
    %v3384 = vsel %vm421, %v3371, %v3377
    %v3385 = vsel %vm1079, %v3372, 0.0
    %v3386 = vsel %vm1080, %v3384, 0.0
    %v3387 = vsel %vm1081, %v3379, 0.0
    %v3388 = vsel %vm1082, %v3380, 0.0
    %v3389 = vsel %vm257, %v3367, 0.0
    %v3390 = vsel %vm258, %v3364, 0.0
    %v3391 = vsel %vm259, %v3365, 0.0
    %v3392 = vsel %vm260, %v3366, 0.0
    %3397 = vrot.lane.b32.xlu0 %v3389, 16
    %v3398 = vpop.permute.xlu0 %3397
    %3399 = vrot.lane.b32.xlu0 %v3390, 16
    %v3400 = vpop.permute.xlu0 %3399
    %3401 = vrot.lane.b32.xlu0 %v3391, 16
    %v3402 = vpop.permute.xlu0 %3401
    %3403 = vrot.lane.b32.xlu0 %v3392, 16
    %v3404 = vpop.permute.xlu0 %3403
    %v3409 = vsel %vm108, %v3385, %v3398
    %v3410 = vsel %vm108, %v3386, %v3400
    %v3411 = vsel %vm108, %v3387, %v3402
    %v3412 = vsel %vm108, %v3388, %v3404
    %v3413 = vsel %vm415, %v3384, 0.0
    %v3414 = vsel %vm416, %v3379, 0.0
    %v3415 = vsel %vm417, %v3380, 0.0
    %v3416 = vsel %vm418, %v3372, 0.0
    %3421 = vrot.lane.b32.xlu0 %v3413, 32
    %v3422 = vpop.permute.xlu0 %3421
    %3423 = vrot.lane.b32.xlu0 %v3414, 32
    %v3424 = vpop.permute.xlu0 %3423
    %3425 = vrot.lane.b32.xlu0 %v3415, 32
    %v3426 = vpop.permute.xlu0 %3425
    %3427 = vrot.lane.b32.xlu0 %v3416, 32
    %v3428 = vpop.permute.xlu0 %3427
    %v3433 = vsel %vm252, %v3409, %v3422
    %v3434 = vsel %vm252, %v3410, %v3424
    %v3435 = vsel %vm252, %v3411, %v3426
    %v3436 = vsel %vm252, %v3412, %v3428
    %3437 = vrot.lane.b32.xlu0 %v3364, 48
    %v3438 = vpop.permute.xlu0 %3437
    %3439 = vrot.lane.b32.xlu0 %v3365, 48
    %v3440 = vpop.permute.xlu0 %3439
    %3441 = vrot.lane.b32.xlu0 %v3366, 48
    %v3442 = vpop.permute.xlu0 %3441
    %3443 = vrot.lane.b32.xlu0 %v3367, 48
    %v3444 = vpop.permute.xlu0 %3443
    %v3449 = vsel %vm281, %v3433, %v3438
    %v3450 = vsel %vm281, %v3434, %v3440
    %v3451 = vsel %vm281, %v3435, %v3442
    %v3452 = vsel %vm281, %v3436, %v3444
    %s3453 = scalar_lea.vmem [#allocation2], 384
    %v3454 = vld [vmem:[%s3453] sm:$0xff]
    %v3455 = vld [vmem:[%s3453 + $0x10] sm:$0xff]
    %v3456 = vld [vmem:[%s2 + $0xc] sm:$0x1]
    %v3457 = vperm.slane %v3456, 0
    %v3459 = vsel %vm324, %v3449, 0
    %v3462 = vsel %vm324, %v3450, 0
    %v3465 = vsel %vm324, %v3451, 0
    %v3468 = vsel %vm324, %v3452, 0
    %v3471 = vsel %vm324, %v3454, 0
    %v3474 = vsel %vm324, %v3455, 0
    %3476 = vmatpush.xpose.msra.mxu0 0.0
    %3477 = vmatpush.xpose.msra.mxu0 0.0
    %3478 = vmatpush.xpose.msra.mxu0 0.0
    %3479 = vmatpush.xpose.msra.mxu0 0.0
    %3480 = vmatpush.xpose.msra.mxu0 0.0
    %3481 = vmatpush.xpose.msra.mxu0 0.0
    %3482 = vmatpush.xpose.msra.mxu0 0.0
    %3483 = vmatpush.xpose.msra.mxu0 0.0
    %3484 = vmatpush.xpose.msra.mxu0 0.0
    %3485 = vmatpush.xpose.msra.mxu0 0.0
    %3486 = vmatpush.xpose.msra.mxu0 0.0
    %3487 = vmatpush.xpose.msra.mxu0 0.0
    %3488 = vmatpush.xpose.msra.mxu0 0.0
    %3489 = vmatpush.xpose.msra.mxu0 0.0
    %3490 = vmatpush.xpose.msra.mxu0 %v3474
    %3491 = vmatpush.xpose.msra.mxu0 %v3471
    %3492 = vmatmul.f32.gmra.mxu0 %v3459
    %v3493 = vpop.f32.mrf.mxu0
    %v3494 = vadd.f32 %v3457, %v3493
    %3495 = vmatmul.f32.gmra.mxu0 %v3462
    %v3496 = vpop.f32.mrf.mxu0
    %v3497 = vadd.f32 %v3457, %v3496
    %3498 = vmatmul.f32.gmra.mxu0 %v3465
    %v3499 = vpop.f32.mrf.mxu0
    %v3500 = vadd.f32 %v3457, %v3499
    %3501 = vmatmul.f32.gmra.mxu0 %v3468
    %v3502 = vpop.f32.mrf.mxu0
    %v3503 = vadd.f32 %v3457, %v3502
    %3504 = vdwg.mxu0
    %v3505 = vtanh.pop %v3494
    %v3506 = vtanh.pop %v3497
    %v3507 = vtanh.pop %v3500
    %v3508 = vtanh.pop %v3503
    %v3511 = vrot.slane %v3507, 4
    %v3512 = vrot.slane %v3508, 4
    %v3513 = vsel %vm421, %v3511, %v3512
    %v3518 = vrot.slane %v3505, 4
    %v3519 = vrot.slane %v3506, 4
    %v3520 = vsel %vm421, %v3518, %v3519
    %v3521 = vsel %vm421, %v3519, %v3511
    %v3525 = vsel %vm421, %v3512, %v3518
    %v3526 = vsel %vm1079, %v3513, 0.0
    %v3527 = vsel %vm1080, %v3525, 0.0
    %v3528 = vsel %vm1081, %v3520, 0.0
    %v3529 = vsel %vm1082, %v3521, 0.0
    %v3530 = vsel %vm257, %v3508, 0.0
    %v3531 = vsel %vm258, %v3505, 0.0
    %v3532 = vsel %vm259, %v3506, 0.0
    %v3533 = vsel %vm260, %v3507, 0.0
    %3538 = vrot.lane.b32.xlu0 %v3530, 16
    %v3539 = vpop.permute.xlu0 %3538
    %3540 = vrot.lane.b32.xlu0 %v3531, 16
    %v3541 = vpop.permute.xlu0 %3540
    %3542 = vrot.lane.b32.xlu0 %v3532, 16
    %v3543 = vpop.permute.xlu0 %3542
    %3544 = vrot.lane.b32.xlu0 %v3533, 16
    %v3545 = vpop.permute.xlu0 %3544
    %v3550 = vsel %vm108, %v3526, %v3539
    %v3551 = vsel %vm108, %v3527, %v3541
    %v3552 = vsel %vm108, %v3528, %v3543
    %v3553 = vsel %vm108, %v3529, %v3545
    %v3554 = vsel %vm415, %v3525, 0.0
    %v3555 = vsel %vm416, %v3520, 0.0
    %v3556 = vsel %vm417, %v3521, 0.0
    %v3557 = vsel %vm418, %v3513, 0.0
    %3562 = vrot.lane.b32.xlu0 %v3554, 32
    %v3563 = vpop.permute.xlu0 %3562
    %3564 = vrot.lane.b32.xlu0 %v3555, 32
    %v3565 = vpop.permute.xlu0 %3564
    %3566 = vrot.lane.b32.xlu0 %v3556, 32
    %v3567 = vpop.permute.xlu0 %3566
    %3568 = vrot.lane.b32.xlu0 %v3557, 32
    %v3569 = vpop.permute.xlu0 %3568
    %v3574 = vsel %vm252, %v3550, %v3563
    %v3575 = vsel %vm252, %v3551, %v3565
    %v3576 = vsel %vm252, %v3552, %v3567
    %v3577 = vsel %vm252, %v3553, %v3569
    %3578 = vrot.lane.b32.xlu0 %v3505, 48
    %v3579 = vpop.permute.xlu0 %3578
    %3580 = vrot.lane.b32.xlu0 %v3506, 48
    %v3581 = vpop.permute.xlu0 %3580
    %3582 = vrot.lane.b32.xlu0 %v3507, 48
    %v3583 = vpop.permute.xlu0 %3582
    %3584 = vrot.lane.b32.xlu0 %v3508, 48
    %v3585 = vpop.permute.xlu0 %3584
    %v3590 = vsel %vm281, %v3574, %v3579
    %v3591 = vsel %vm281, %v3575, %v3581
    %v3592 = vsel %vm281, %v3576, %v3583
    %v3593 = vsel %vm281, %v3577, %v3585
    %s3594 = scalar_lea.vmem [#allocation2], 416
    %v3595 = vld [vmem:[%s3594] sm:$0xff]
    %v3596 = vld [vmem:[%s3594 + $0x10] sm:$0xff]
    %v3597 = vld [vmem:[%s2 + $0xd] sm:$0x1]
    %v3598 = vperm.slane %v3597, 0
    %v3600 = vsel %vm324, %v3590, 0
    %v3603 = vsel %vm324, %v3591, 0
    %v3606 = vsel %vm324, %v3592, 0
    %v3609 = vsel %vm324, %v3593, 0
    %v3612 = vsel %vm324, %v3595, 0
    %v3615 = vsel %vm324, %v3596, 0
    %3617 = vmatpush.xpose.msra.mxu0 0.0
    %3618 = vmatpush.xpose.msra.mxu0 0.0
    %3619 = vmatpush.xpose.msra.mxu0 0.0
    %3620 = vmatpush.xpose.msra.mxu0 0.0
    %3621 = vmatpush.xpose.msra.mxu0 0.0
    %3622 = vmatpush.xpose.msra.mxu0 0.0
    %3623 = vmatpush.xpose.msra.mxu0 0.0
    %3624 = vmatpush.xpose.msra.mxu0 0.0
    %3625 = vmatpush.xpose.msra.mxu0 0.0
    %3626 = vmatpush.xpose.msra.mxu0 0.0
    %3627 = vmatpush.xpose.msra.mxu0 0.0
    %3628 = vmatpush.xpose.msra.mxu0 0.0
    %3629 = vmatpush.xpose.msra.mxu0 0.0
    %3630 = vmatpush.xpose.msra.mxu0 0.0
    %3631 = vmatpush.xpose.msra.mxu0 %v3615
    %3632 = vmatpush.xpose.msra.mxu0 %v3612
    %3633 = vmatmul.f32.gmra.mxu0 %v3600
    %v3634 = vpop.f32.mrf.mxu0
    %v3635 = vadd.f32 %v3598, %v3634
    %3636 = vmatmul.f32.gmra.mxu0 %v3603
    %v3637 = vpop.f32.mrf.mxu0
    %v3638 = vadd.f32 %v3598, %v3637
    %3639 = vmatmul.f32.gmra.mxu0 %v3606
    %v3640 = vpop.f32.mrf.mxu0
    %v3641 = vadd.f32 %v3598, %v3640
    %3642 = vmatmul.f32.gmra.mxu0 %v3609
    %v3643 = vpop.f32.mrf.mxu0
    %v3644 = vadd.f32 %v3598, %v3643
    %3645 = vdwg.mxu0
    %v3646 = vtanh.pop %v3635
    %v3647 = vtanh.pop %v3638
    %v3648 = vtanh.pop %v3641
    %v3649 = vtanh.pop %v3644
    %v3650 = vadd.f32 %v3646, %v3364
    %v3651 = vadd.f32 %v3647, %v3365
    %v3652 = vadd.f32 %v3648, %v3366
    %v3653 = vadd.f32 %v3649, %v3367
    %v3654 = vtanh.pop %v3650
    %v3655 = vtanh.pop %v3651
    %v3656 = vtanh.pop %v3652
    %v3657 = vtanh.pop %v3653
    %v3658 = vsel %vm257, %v3657, 0.0
    %v3659 = vsel %vm258, %v3654, 0.0
    %v3660 = vsel %vm259, %v3655, 0.0
    %v3661 = vsel %vm260, %v3656, 0.0
    %3666 = vrot.lane.b32.xlu0 %v3654, 16
    %v3667 = vpop.permute.xlu0 %3666
    %3668 = vrot.lane.b32.xlu0 %v3655, 16
    %v3669 = vpop.permute.xlu0 %3668
    %3670 = vrot.lane.b32.xlu0 %v3656, 16
    %v3671 = vpop.permute.xlu0 %3670
    %3672 = vrot.lane.b32.xlu0 %v3657, 16
    %v3673 = vpop.permute.xlu0 %3672
    %v3678 = vsel %vm108, %v3658, %v3667
    %v3679 = vsel %vm108, %v3659, %v3669
    %v3680 = vsel %vm108, %v3660, %v3671
    %v3681 = vsel %vm108, %v3661, %v3673
    %s3682 = scalar_lea.vmem [#allocation2], 448
    %v3683 = vld [vmem:[%s3682] sm:$0xff]
    %v3684 = vld [vmem:[%s3682 + $0x10] sm:$0xff]
    %v3685 = vld [vmem:[%s2 + $0xe] sm:$0x1]
    %v3686 = vperm.slane %v3685, 0
    %v3688 = vsel %vm252, %v3678, 0
    %v3691 = vsel %vm252, %v3679, 0
    %v3694 = vsel %vm252, %v3680, 0
    %v3697 = vsel %vm252, %v3681, 0
    %v3700 = vsel %vm252, %v3683, 0
    %v3703 = vsel %vm252, %v3684, 0
    %3705 = vmatpush.xpose.msra.mxu0 0.0
    %3706 = vmatpush.xpose.msra.mxu0 0.0
    %3707 = vmatpush.xpose.msra.mxu0 0.0
    %3708 = vmatpush.xpose.msra.mxu0 0.0
    %3709 = vmatpush.xpose.msra.mxu0 0.0
    %3710 = vmatpush.xpose.msra.mxu0 0.0
    %3711 = vmatpush.xpose.msra.mxu0 0.0
    %3712 = vmatpush.xpose.msra.mxu0 0.0
    %3713 = vmatpush.xpose.msra.mxu0 0.0
    %3714 = vmatpush.xpose.msra.mxu0 0.0
    %3715 = vmatpush.xpose.msra.mxu0 0.0
    %3716 = vmatpush.xpose.msra.mxu0 0.0
    %3717 = vmatpush.xpose.msra.mxu0 0.0
    %3718 = vmatpush.xpose.msra.mxu0 0.0
    %3719 = vmatpush.xpose.msra.mxu0 %v3703
    %3720 = vmatpush.xpose.msra.mxu0 %v3700
    %3721 = vmatmul.f32.gmra.mxu0 %v3688
    %v3722 = vpop.f32.mrf.mxu0
    %v3723 = vadd.f32 %v3686, %v3722
    %3724 = vmatmul.f32.gmra.mxu0 %v3691
    %v3725 = vpop.f32.mrf.mxu0
    %v3726 = vadd.f32 %v3686, %v3725
    %3727 = vmatmul.f32.gmra.mxu0 %v3694
    %v3728 = vpop.f32.mrf.mxu0
    %v3729 = vadd.f32 %v3686, %v3728
    %3730 = vmatmul.f32.gmra.mxu0 %v3697
    %v3731 = vpop.f32.mrf.mxu0
    %v3732 = vadd.f32 %v3686, %v3731
    %3733 = vdwg.mxu0
    %v3734 = vtanh.pop %v3723
    %v3735 = vtanh.pop %v3726
    %v3736 = vtanh.pop %v3729
    %v3737 = vtanh.pop %v3732
    %v3738 = vsel %vm257, %v3737, 0.0
    %v3739 = vsel %vm258, %v3734, 0.0
    %v3740 = vsel %vm259, %v3735, 0.0
    %v3741 = vsel %vm260, %v3736, 0.0
    %3746 = vrot.lane.b32.xlu0 %v3734, 16
    %v3747 = vpop.permute.xlu0 %3746
    %3748 = vrot.lane.b32.xlu0 %v3735, 16
    %v3749 = vpop.permute.xlu0 %3748
    %3750 = vrot.lane.b32.xlu0 %v3736, 16
    %v3751 = vpop.permute.xlu0 %3750
    %3752 = vrot.lane.b32.xlu0 %v3737, 16
    %v3753 = vpop.permute.xlu0 %3752
    %v3758 = vsel %vm108, %v3738, %v3747
    %v3759 = vsel %vm108, %v3739, %v3749
    %v3760 = vsel %vm108, %v3740, %v3751
    %v3761 = vsel %vm108, %v3741, %v3753
    %s3762 = scalar_lea.vmem [#allocation2], 480
    %v3763 = vld [vmem:[%s3762] sm:$0xff]
    %v3764 = vld [vmem:[%s3762 + $0x10] sm:$0xff]
    %v3765 = vld [vmem:[%s2 + $0xf] sm:$0x1]
    %v3766 = vperm.slane %v3765, 0
    %v3768 = vsel %vm252, %v3758, 0
    %v3771 = vsel %vm252, %v3759, 0
    %v3774 = vsel %vm252, %v3760, 0
    %v3777 = vsel %vm252, %v3761, 0
    %v3780 = vsel %vm252, %v3763, 0
    %v3783 = vsel %vm252, %v3764, 0
    %3785 = vmatpush.xpose.msra.mxu0 0.0
    %3786 = vmatpush.xpose.msra.mxu0 0.0
    %3787 = vmatpush.xpose.msra.mxu0 0.0
    %3788 = vmatpush.xpose.msra.mxu0 0.0
    %3789 = vmatpush.xpose.msra.mxu0 0.0
    %3790 = vmatpush.xpose.msra.mxu0 0.0
    %3791 = vmatpush.xpose.msra.mxu0 0.0
    %3792 = vmatpush.xpose.msra.mxu0 0.0
    %3793 = vmatpush.xpose.msra.mxu0 0.0
    %3794 = vmatpush.xpose.msra.mxu0 0.0
    %3795 = vmatpush.xpose.msra.mxu0 0.0
    %3796 = vmatpush.xpose.msra.mxu0 0.0
    %3797 = vmatpush.xpose.msra.mxu0 0.0
    %3798 = vmatpush.xpose.msra.mxu0 0.0
    %3799 = vmatpush.xpose.msra.mxu0 %v3783
    %3800 = vmatpush.xpose.msra.mxu0 %v3780
    %3801 = vmatmul.f32.gmra.mxu0 %v3768
    %v3802 = vpop.f32.mrf.mxu0
    %v3803 = vadd.f32 %v3766, %v3802
    %3804 = vmatmul.f32.gmra.mxu0 %v3771
    %v3805 = vpop.f32.mrf.mxu0
    %v3806 = vadd.f32 %v3766, %v3805
    %3807 = vmatmul.f32.gmra.mxu0 %v3774
    %v3808 = vpop.f32.mrf.mxu0
    %v3809 = vadd.f32 %v3766, %v3808
    %3810 = vmatmul.f32.gmra.mxu0 %v3777
    %v3811 = vpop.f32.mrf.mxu0
    %v3812 = vadd.f32 %v3766, %v3811
    %3813 = vdwg.mxu0
    %v3814 = vtanh.pop %v3803
    %v3815 = vtanh.pop %v3806
    %v3816 = vtanh.pop %v3809
    %v3817 = vtanh.pop %v3812
    %v3818 = vadd.f32 %v3814, %v3654
    %v3819 = vadd.f32 %v3815, %v3655
    %v3820 = vadd.f32 %v3816, %v3656
    %v3821 = vadd.f32 %v3817, %v3657
    %v3822 = vtanh.pop %v3818
    %v3823 = vtanh.pop %v3819
    %v3824 = vtanh.pop %v3820
    %v3825 = vtanh.pop %v3821
    %v3826 = vld [vmem:[%s5] sm:$0xff]
    %v3827 = vld [vmem:[%s5 + $0x8] sm:$0xff]
    %v3829 = vsel %vm108, %v3822, 0
    %v3832 = vsel %vm108, %v3823, 0
    %v3835 = vsel %vm108, %v3824, 0
    %v3838 = vsel %vm108, %v3825, 0
    %3840 = vmatpush.msra.mxu0 0.0
    %3841 = vmatpush.msra.mxu0 0.0
    %3842 = vmatpush.msra.mxu0 0.0
    %3843 = vmatpush.msra.mxu0 0.0
    %3844 = vmatpush.msra.mxu0 0.0
    %3845 = vmatpush.msra.mxu0 0.0
    %3846 = vmatpush.msra.mxu0 0.0
    %3847 = vmatpush.msra.mxu0 0.0
    %3848 = vmatpush.msra.mxu0 0.0
    %3849 = vmatpush.msra.mxu0 0.0
    %3850 = vmatpush.msra.mxu0 0.0
    %3851 = vmatpush.msra.mxu0 0.0
    %3852 = vmatpush.msra.mxu0 0.0
    %3853 = vmatpush.msra.mxu0 0.0
    %3854 = vmatpush.msra.mxu0 %v3827
    %3855 = vmatpush.msra.mxu0 %v3826
    %3856 = vmatmul.f32.gmra.mxu0 %v3829
    %v3857 = vpop.f32.mrf.mxu0
    %v3858 = vadd.f32 0.0, %v3857
    %3859 = vmatmul.f32.gmra.mxu0 %v3832
    %v3860 = vpop.f32.mrf.mxu0
    %v3861 = vadd.f32 0.0, %v3860
    %3862 = vmatmul.f32.gmra.mxu0 %v3835
    %v3863 = vpop.f32.mrf.mxu0
    %v3864 = vadd.f32 0.0, %v3863
    %3865 = vmatmul.f32.gmra.mxu0 %v3838
    %v3866 = vpop.f32.mrf.mxu0
    %v3867 = vadd.f32 0.0, %v3866
    %3868 = vdwg.mxu0
    %v3869 = vmul.f32 %v3858, 6.2831855
    %v3870 = vmul.f32 %v3861, 6.2831855
    %v3871 = vmul.f32 %v3864, 6.2831855
    %v3872 = vmul.f32 %v3867, 6.2831855
    %v3873 = vand.u32 2147483647, %v3869
    %vm3874 = vcmp.le.f32.partialorder %v3873, 0.7853982
    %vm3875 = vcmp.lt.s32.totalorder %v3869, 0
    %v3876 = vand.u32 %v3869, 2139095040
    %v3877 = vshrl.u32 %v3876, 23
    %v3878 = vsub.s32 %v3877, 127
    %v3879 = vand.u32 2147483647, %v3869
    %v3880 = vand.u32 %v3879, 8388607
    %v3881 = vor.u32 %v3880, 8388608
    %v3882 = vsub.s32 0, %v3881
    %v3883 = vadd.s32 %v3878, 1
    %vm3884 = vcmp.gt.s32.totalorder %v3883, 0
    %v3885 = vsel %vm3884, %v3883, 0
    %v3886 = vshrl.u32 %v3885, 5
    %v3887 = vand.u32 %v3885, 31
    %v3888 = vsub.s32 32, %v3887
    %v3889 = vshrl.u32 683565275, %v3888
    %v3890 = vshll.u32 683565275, %v3887
    %v3891 = vshrl.u32 2475754826, %v3888
    %v3892 = vor.u32 %v3890, %v3891
    %v3893 = vshll.u32 2475754826, %v3887
    %v3894 = vshrl.u32 2131351028, %v3888
    %v3895 = vor.u32 %v3893, %v3894
    %v3896 = vshll.u32 2131351028, %v3887
    %v3897 = vshrl.u32 2102212464, %v3888
    %v3898 = vor.u32 %v3896, %v3897
    %v3899 = vshll.u32 2102212464, %v3887
    %v3900 = vshrl.u32 920167782, %v3888
    %v3901 = vor.u32 %v3899, %v3900
    %v3902 = vshll.u32 920167782, %v3887
    %v3903 = vshrl.u32 1326507024, %v3888
    %v3904 = vor.u32 %v3902, %v3903
    %vm3905 = vcmp.lt.s32.totalorder %v3886, 1
    %vm3906 = vcmp.lt.s32.totalorder %v3886, 2
    %vm3907 = vcmp.lt.s32.totalorder %v3886, 3
    %vm3908 = vcmp.lt.s32.totalorder %v3886, 4
    %v3909 = vsel %vm3905, %v3889, %v3892
    %v3910 = vsel %vm3908, %v3898, 2102212464
    %v3911 = vsel %vm3907, %v3895, %v3910
    %v3912 = vsel %vm3906, %v3909, %v3911
    %v3913 = vsel %vm3905, %v3892, %v3895
    %v3914 = vsel %vm3908, %v3901, 920167782
    %v3915 = vsel %vm3907, %v3898, %v3914
    %v3916 = vsel %vm3906, %v3913, %v3915
    %v3917 = vsel %vm3905, %v3895, %v3898
    %v3918 = vsel %vm3908, %v3904, 1326507024
    %v3919 = vsel %vm3907, %v3901, %v3918
    %v3920 = vsel %vm3906, %v3917, %v3919
    %v3921 = vshll.u32 %v3881, 8
    %v3922 = vand.u32 %v3921, 65535
    %v3923 = vshrl.u32 %v3921, 16
    %v3924 = vand.u32 %v3920, 65535
    %v3925 = vshrl.u32 %v3920, 16
    %v3926 = vmul.u32 %v3922, %v3924
    %v3927 = vmul.u32 %v3922, %v3925
    %v3928 = vmul.u32 %v3923, %v3924
    %v3929 = vmul.u32 %v3923, %v3925
    %v3930 = vshll.u32 %v3927, 16
    %v3931 = vshrl.u32 %v3927, 16
    %v3932 = vshll.u32 %v3928, 16
    %v3933 = vshrl.u32 %v3928, 16
    %vm3934 = vc.u32 %v3926, %v3930
    %v3935 = vsel %vm3934, 1, 0
    %v3936 = vadd.s32 %v3926, %v3930
    %v3937 = vadd.s32 %v3929, %v3935
    %vm3938 = vc.u32 %v3936, %v3932
    %v3939 = vsel %vm3938, 1, 0
    %v3940 = vadd.s32 %v3936, %v3932
    %v3941 = vadd.s32 %v3937, %v3939
    %v3942 = vadd.s32 %v3941, %v3931
    %v3943 = vadd.s32 %v3942, %v3933
    %v3944 = vand.u32 %v3921, 65535
    %v3945 = vshrl.u32 %v3921, 16
    %v3946 = vand.u32 %v3916, 65535
    %v3947 = vshrl.u32 %v3916, 16
    %v3948 = vmul.u32 %v3944, %v3946
    %v3949 = vmul.u32 %v3944, %v3947
    %v3950 = vmul.u32 %v3945, %v3946
    %v3951 = vmul.u32 %v3945, %v3947
    %v3952 = vshll.u32 %v3949, 16
    %v3953 = vshrl.u32 %v3949, 16
    %v3954 = vshll.u32 %v3950, 16
    %v3955 = vshrl.u32 %v3950, 16
    %vm3956 = vc.u32 %v3948, %v3952
    %v3957 = vsel %vm3956, 1, 0
    %v3958 = vadd.s32 %v3948, %v3952
    %v3959 = vadd.s32 %v3951, %v3957
    %vm3960 = vc.u32 %v3958, %v3954
    %v3961 = vsel %vm3960, 1, 0
    %v3962 = vadd.s32 %v3958, %v3954
    %v3963 = vadd.s32 %v3959, %v3961
    %v3964 = vadd.s32 %v3963, %v3953
    %v3965 = vadd.s32 %v3964, %v3955
    %v3966 = vmul.u32 %v3921, %v3912
    %v3967 = vadd.s32 %v3943, %v3962
    %vm3968 = vc.u32 %v3943, %v3962
    %v3969 = vadd.s32 %v3965, 1
    %v3970 = vsel %vm3968, %v3969, %v3965
    %v3971 = vadd.s32 %v3966, %v3970
    %v3972 = vadd.s32 %v3971, 536870912
    %v3973 = vshrl.u32 %v3972, 30
    %v3974 = vshll.u32 %v3973, 30
    %v3975 = vsub.s32 %v3971, %v3974
    %vm3976 = vcmp.lt.s32.totalorder %v3975, 0
    %v3977 = vsub.s32 0, %v3975
    %v3978 = vsel %vm3976, %v3977, %v3975
    %v3979 = vclz %v3978
    %v3980 = vsub.s32 %v3979, 2
    %vm3981 = vcmp.gt.s32.totalorder 0, %v3980
    %v3982 = vsel %vm3981, 0, %v3980
    %v3983 = vsub.s32 32, %v3982
    %v3984 = vshll.u32 %v3975, %v3982
    %v3985 = vshrl.u32 %v3967, %v3983
    %v3986 = vor.u32 %v3984, %v3985
    %v3987 = vsub.s32 4294967266, %v3982
    %v3988 = vadd.s32 %v3987, 127
    %v3989 = vshll.u32 %v3988, 23
    %v3990 = vor.u32 4788187, %v3989
    %v3991 = vand.u32 2147483647, %v3990
    %v3993 = vcvt.s32.f32 %v3986
    %v3994 = vmul.f32 %v3993, %v3991
    %v3995 = vxor.u32 %v3994, 2147483648
    %v3996 = vsel %vm3875, %v3995, %v3994
    %v3997 = vsub.s32 4, %v3973
    %v3998 = vsel %vm3875, %v3997, %v3973
    %v3999 = vsel %vm3874, %v3869, %v3996
    %v4000 = vsel %vm3874, 0, %v3998
    %v4001 = vmul.f32 %v3999, %v3999
    %v4002 = vmul.f32 %v4001, -0.001358992
    %v4003 = vadd.f32 %v4002, 0.041655596
    %v4004 = vmul.f32 %v4001, %v4003
    %v4005 = vadd.f32 %v4004, -0.4999988
    %v4006 = vmul.f32 %v4001, %v4005
    %v4007 = vadd.f32 1.0, %v4006
    %v4008 = vmul.f32 %v3999, %v3999
    %v4009 = vmul.f32 %v4008, -0.00019511016
    %v4010 = vadd.f32 %v4009, 0.008332121
    %v4011 = vmul.f32 %v4008, %v4010
    %v4012 = vadd.f32 %v4011, -0.16666654
    %v4013 = vmul.f32 %v4008, %v4012
    %v4014 = vadd.f32 %v4013, 1.0
    %v4015 = vmul.f32 %v4014, %v3999
    %vm4016 = vweird.f32 %v3869
    %v4017 = vand.u32 %v4000, 3
    %vm4018 = vcmp.lt.s32.totalorder %v4017, 2
    %vm4019 = vcmp.eq.s32.totalorder %v4017, 0
    %v4020 = vxor.u32 %v4015, 2147483648
    %v4021 = vsel %vm4019, %v4007, %v4020
    %vm4022 = vcmp.eq.s32.totalorder %v4017, 2
    %v4023 = vxor.u32 %v4007, 2147483648
    %v4024 = vsel %vm4022, %v4023, %v4015
    %v4025 = vsel %vm4018, %v4021, %v4024
    %v4026 = vsel %vm4016, nan, %v4025
    %v4027 = vand.u32 2147483647, %v3870
    %vm4028 = vcmp.le.f32.partialorder %v4027, 0.7853982
    %vm4029 = vcmp.lt.s32.totalorder %v3870, 0
    %v4030 = vand.u32 %v3870, 2139095040
    %v4031 = vshrl.u32 %v4030, 23
    %v4032 = vsub.s32 %v4031, 127
    %v4033 = vand.u32 2147483647, %v3870
    %v4034 = vand.u32 %v4033, 8388607
    %v4035 = vor.u32 %v4034, 8388608
    %v4036 = vsub.s32 0, %v4035
    %v4037 = vadd.s32 %v4032, 1
    %vm4038 = vcmp.gt.s32.totalorder %v4037, 0
    %v4039 = vsel %vm4038, %v4037, 0
    %v4040 = vshrl.u32 %v4039, 5
    %v4041 = vand.u32 %v4039, 31
    %v4042 = vsub.s32 32, %v4041
    %v4043 = vshrl.u32 683565275, %v4042
    %v4044 = vshll.u32 683565275, %v4041
    %v4045 = vshrl.u32 2475754826, %v4042
    %v4046 = vor.u32 %v4044, %v4045
    %v4047 = vshll.u32 2475754826, %v4041
    %v4048 = vshrl.u32 2131351028, %v4042
    %v4049 = vor.u32 %v4047, %v4048
    %v4050 = vshll.u32 2131351028, %v4041
    %v4051 = vshrl.u32 2102212464, %v4042
    %v4052 = vor.u32 %v4050, %v4051
    %v4053 = vshll.u32 2102212464, %v4041
    %v4054 = vshrl.u32 920167782, %v4042
    %v4055 = vor.u32 %v4053, %v4054
    %v4056 = vshll.u32 920167782, %v4041
    %v4057 = vshrl.u32 1326507024, %v4042
    %v4058 = vor.u32 %v4056, %v4057
    %vm4059 = vcmp.lt.s32.totalorder %v4040, 1
    %vm4060 = vcmp.lt.s32.totalorder %v4040, 2
    %vm4061 = vcmp.lt.s32.totalorder %v4040, 3
    %vm4062 = vcmp.lt.s32.totalorder %v4040, 4
    %v4063 = vsel %vm4059, %v4043, %v4046
    %v4064 = vsel %vm4062, %v4052, 2102212464
    %v4065 = vsel %vm4061, %v4049, %v4064
    %v4066 = vsel %vm4060, %v4063, %v4065
    %v4067 = vsel %vm4059, %v4046, %v4049
    %v4068 = vsel %vm4062, %v4055, 920167782
    %v4069 = vsel %vm4061, %v4052, %v4068
    %v4070 = vsel %vm4060, %v4067, %v4069
    %v4071 = vsel %vm4059, %v4049, %v4052
    %v4072 = vsel %vm4062, %v4058, 1326507024
    %v4073 = vsel %vm4061, %v4055, %v4072
    %v4074 = vsel %vm4060, %v4071, %v4073
    %v4075 = vshll.u32 %v4035, 8
    %v4076 = vand.u32 %v4075, 65535
    %v4077 = vshrl.u32 %v4075, 16
    %v4078 = vand.u32 %v4074, 65535
    %v4079 = vshrl.u32 %v4074, 16
    %v4080 = vmul.u32 %v4076, %v4078
    %v4081 = vmul.u32 %v4076, %v4079
    %v4082 = vmul.u32 %v4077, %v4078
    %v4083 = vmul.u32 %v4077, %v4079
    %v4084 = vshll.u32 %v4081, 16
    %v4085 = vshrl.u32 %v4081, 16
    %v4086 = vshll.u32 %v4082, 16
    %v4087 = vshrl.u32 %v4082, 16
    %vm4088 = vc.u32 %v4080, %v4084
    %v4089 = vsel %vm4088, 1, 0
    %v4090 = vadd.s32 %v4080, %v4084
    %v4091 = vadd.s32 %v4083, %v4089
    %vm4092 = vc.u32 %v4090, %v4086
    %v4093 = vsel %vm4092, 1, 0
    %v4094 = vadd.s32 %v4090, %v4086
    %v4095 = vadd.s32 %v4091, %v4093
    %v4096 = vadd.s32 %v4095, %v4085
    %v4097 = vadd.s32 %v4096, %v4087
    %v4098 = vand.u32 %v4075, 65535
    %v4099 = vshrl.u32 %v4075, 16
    %v4100 = vand.u32 %v4070, 65535
    %v4101 = vshrl.u32 %v4070, 16
    %v4102 = vmul.u32 %v4098, %v4100
    %v4103 = vmul.u32 %v4098, %v4101
    %v4104 = vmul.u32 %v4099, %v4100
    %v4105 = vmul.u32 %v4099, %v4101
    %v4106 = vshll.u32 %v4103, 16
    %v4107 = vshrl.u32 %v4103, 16
    %v4108 = vshll.u32 %v4104, 16
    %v4109 = vshrl.u32 %v4104, 16
    %vm4110 = vc.u32 %v4102, %v4106
    %v4111 = vsel %vm4110, 1, 0
    %v4112 = vadd.s32 %v4102, %v4106
    %v4113 = vadd.s32 %v4105, %v4111
    %vm4114 = vc.u32 %v4112, %v4108
    %v4115 = vsel %vm4114, 1, 0
    %v4116 = vadd.s32 %v4112, %v4108
    %v4117 = vadd.s32 %v4113, %v4115
    %v4118 = vadd.s32 %v4117, %v4107
    %v4119 = vadd.s32 %v4118, %v4109
    %v4120 = vmul.u32 %v4075, %v4066
    %v4121 = vadd.s32 %v4097, %v4116
    %vm4122 = vc.u32 %v4097, %v4116
    %v4123 = vadd.s32 %v4119, 1
    %v4124 = vsel %vm4122, %v4123, %v4119
    %v4125 = vadd.s32 %v4120, %v4124
    %v4126 = vadd.s32 %v4125, 536870912
    %v4127 = vshrl.u32 %v4126, 30
    %v4128 = vshll.u32 %v4127, 30
    %v4129 = vsub.s32 %v4125, %v4128
    %vm4130 = vcmp.lt.s32.totalorder %v4129, 0
    %v4131 = vsub.s32 0, %v4129
    %v4132 = vsel %vm4130, %v4131, %v4129
    %v4133 = vclz %v4132
    %v4134 = vsub.s32 %v4133, 2
    %vm4135 = vcmp.gt.s32.totalorder 0, %v4134
    %v4136 = vsel %vm4135, 0, %v4134
    %v4137 = vsub.s32 32, %v4136
    %v4138 = vshll.u32 %v4129, %v4136
    %v4139 = vshrl.u32 %v4121, %v4137
    %v4140 = vor.u32 %v4138, %v4139
    %v4141 = vsub.s32 4294967266, %v4136
    %v4142 = vadd.s32 %v4141, 127
    %v4143 = vshll.u32 %v4142, 23
    %v4144 = vor.u32 4788187, %v4143
    %v4145 = vand.u32 2147483647, %v4144
    %v4147 = vcvt.s32.f32 %v4140
    %v4148 = vmul.f32 %v4147, %v4145
    %v4149 = vxor.u32 %v4148, 2147483648
    %v4150 = vsel %vm4029, %v4149, %v4148
    %v4151 = vsub.s32 4, %v4127
    %v4152 = vsel %vm4029, %v4151, %v4127
    %v4153 = vsel %vm4028, %v3870, %v4150
    %v4154 = vsel %vm4028, 0, %v4152
    %v4155 = vmul.f32 %v4153, %v4153
    %v4156 = vmul.f32 %v4155, -0.001358992
    %v4157 = vadd.f32 %v4156, 0.041655596
    %v4158 = vmul.f32 %v4155, %v4157
    %v4159 = vadd.f32 %v4158, -0.4999988
    %v4160 = vmul.f32 %v4155, %v4159
    %v4161 = vadd.f32 1.0, %v4160
    %v4162 = vmul.f32 %v4153, %v4153
    %v4163 = vmul.f32 %v4162, -0.00019511016
    %v4164 = vadd.f32 %v4163, 0.008332121
    %v4165 = vmul.f32 %v4162, %v4164
    %v4166 = vadd.f32 %v4165, -0.16666654
    %v4167 = vmul.f32 %v4162, %v4166
    %v4168 = vadd.f32 %v4167, 1.0
    %v4169 = vmul.f32 %v4168, %v4153
    %vm4170 = vweird.f32 %v3870
    %v4171 = vand.u32 %v4154, 3
    %vm4172 = vcmp.lt.s32.totalorder %v4171, 2
    %vm4173 = vcmp.eq.s32.totalorder %v4171, 0
    %v4174 = vxor.u32 %v4169, 2147483648
    %v4175 = vsel %vm4173, %v4161, %v4174
    %vm4176 = vcmp.eq.s32.totalorder %v4171, 2
    %v4177 = vxor.u32 %v4161, 2147483648
    %v4178 = vsel %vm4176, %v4177, %v4169
    %v4179 = vsel %vm4172, %v4175, %v4178
    %v4180 = vsel %vm4170, nan, %v4179
    %v4181 = vand.u32 2147483647, %v3871
    %vm4182 = vcmp.le.f32.partialorder %v4181, 0.7853982
    %vm4183 = vcmp.lt.s32.totalorder %v3871, 0
    %v4184 = vand.u32 %v3871, 2139095040
    %v4185 = vshrl.u32 %v4184, 23
    %v4186 = vsub.s32 %v4185, 127
    %v4187 = vand.u32 2147483647, %v3871
    %v4188 = vand.u32 %v4187, 8388607
    %v4189 = vor.u32 %v4188, 8388608
    %v4190 = vsub.s32 0, %v4189
    %v4191 = vadd.s32 %v4186, 1
    %vm4192 = vcmp.gt.s32.totalorder %v4191, 0
    %v4193 = vsel %vm4192, %v4191, 0
    %v4194 = vshrl.u32 %v4193, 5
    %v4195 = vand.u32 %v4193, 31
    %v4196 = vsub.s32 32, %v4195
    %v4197 = vshrl.u32 683565275, %v4196
    %v4198 = vshll.u32 683565275, %v4195
    %v4199 = vshrl.u32 2475754826, %v4196
    %v4200 = vor.u32 %v4198, %v4199
    %v4201 = vshll.u32 2475754826, %v4195
    %v4202 = vshrl.u32 2131351028, %v4196
    %v4203 = vor.u32 %v4201, %v4202
    %v4204 = vshll.u32 2131351028, %v4195
    %v4205 = vshrl.u32 2102212464, %v4196
    %v4206 = vor.u32 %v4204, %v4205
    %v4207 = vshll.u32 2102212464, %v4195
    %v4208 = vshrl.u32 920167782, %v4196
    %v4209 = vor.u32 %v4207, %v4208
    %v4210 = vshll.u32 920167782, %v4195
    %v4211 = vshrl.u32 1326507024, %v4196
    %v4212 = vor.u32 %v4210, %v4211
    %vm4213 = vcmp.lt.s32.totalorder %v4194, 1
    %vm4214 = vcmp.lt.s32.totalorder %v4194, 2
    %vm4215 = vcmp.lt.s32.totalorder %v4194, 3
    %vm4216 = vcmp.lt.s32.totalorder %v4194, 4
    %v4217 = vsel %vm4213, %v4197, %v4200
    %v4218 = vsel %vm4216, %v4206, 2102212464
    %v4219 = vsel %vm4215, %v4203, %v4218
    %v4220 = vsel %vm4214, %v4217, %v4219
    %v4221 = vsel %vm4213, %v4200, %v4203
    %v4222 = vsel %vm4216, %v4209, 920167782
    %v4223 = vsel %vm4215, %v4206, %v4222
    %v4224 = vsel %vm4214, %v4221, %v4223
    %v4225 = vsel %vm4213, %v4203, %v4206
    %v4226 = vsel %vm4216, %v4212, 1326507024
    %v4227 = vsel %vm4215, %v4209, %v4226
    %v4228 = vsel %vm4214, %v4225, %v4227
    %v4229 = vshll.u32 %v4189, 8
    %v4230 = vand.u32 %v4229, 65535
    %v4231 = vshrl.u32 %v4229, 16
    %v4232 = vand.u32 %v4228, 65535
    %v4233 = vshrl.u32 %v4228, 16
    %v4234 = vmul.u32 %v4230, %v4232
    %v4235 = vmul.u32 %v4230, %v4233
    %v4236 = vmul.u32 %v4231, %v4232
    %v4237 = vmul.u32 %v4231, %v4233
    %v4238 = vshll.u32 %v4235, 16
    %v4239 = vshrl.u32 %v4235, 16
    %v4240 = vshll.u32 %v4236, 16
    %v4241 = vshrl.u32 %v4236, 16
    %vm4242 = vc.u32 %v4234, %v4238
    %v4243 = vsel %vm4242, 1, 0
    %v4244 = vadd.s32 %v4234, %v4238
    %v4245 = vadd.s32 %v4237, %v4243
    %vm4246 = vc.u32 %v4244, %v4240
    %v4247 = vsel %vm4246, 1, 0
    %v4248 = vadd.s32 %v4244, %v4240
    %v4249 = vadd.s32 %v4245, %v4247
    %v4250 = vadd.s32 %v4249, %v4239
    %v4251 = vadd.s32 %v4250, %v4241
    %v4252 = vand.u32 %v4229, 65535
    %v4253 = vshrl.u32 %v4229, 16
    %v4254 = vand.u32 %v4224, 65535
    %v4255 = vshrl.u32 %v4224, 16
    %v4256 = vmul.u32 %v4252, %v4254
    %v4257 = vmul.u32 %v4252, %v4255
    %v4258 = vmul.u32 %v4253, %v4254
    %v4259 = vmul.u32 %v4253, %v4255
    %v4260 = vshll.u32 %v4257, 16
    %v4261 = vshrl.u32 %v4257, 16
    %v4262 = vshll.u32 %v4258, 16
    %v4263 = vshrl.u32 %v4258, 16
    %vm4264 = vc.u32 %v4256, %v4260
    %v4265 = vsel %vm4264, 1, 0
    %v4266 = vadd.s32 %v4256, %v4260
    %v4267 = vadd.s32 %v4259, %v4265
    %vm4268 = vc.u32 %v4266, %v4262
    %v4269 = vsel %vm4268, 1, 0
    %v4270 = vadd.s32 %v4266, %v4262
    %v4271 = vadd.s32 %v4267, %v4269
    %v4272 = vadd.s32 %v4271, %v4261
    %v4273 = vadd.s32 %v4272, %v4263
    %v4274 = vmul.u32 %v4229, %v4220
    %v4275 = vadd.s32 %v4251, %v4270
    %vm4276 = vc.u32 %v4251, %v4270
    %v4277 = vadd.s32 %v4273, 1
    %v4278 = vsel %vm4276, %v4277, %v4273
    %v4279 = vadd.s32 %v4274, %v4278
    %v4280 = vadd.s32 %v4279, 536870912
    %v4281 = vshrl.u32 %v4280, 30
    %v4282 = vshll.u32 %v4281, 30
    %v4283 = vsub.s32 %v4279, %v4282
    %vm4284 = vcmp.lt.s32.totalorder %v4283, 0
    %v4285 = vsub.s32 0, %v4283
    %v4286 = vsel %vm4284, %v4285, %v4283
    %v4287 = vclz %v4286
    %v4288 = vsub.s32 %v4287, 2
    %vm4289 = vcmp.gt.s32.totalorder 0, %v4288
    %v4290 = vsel %vm4289, 0, %v4288
    %v4291 = vsub.s32 32, %v4290
    %v4292 = vshll.u32 %v4283, %v4290
    %v4293 = vshrl.u32 %v4275, %v4291
    %v4294 = vor.u32 %v4292, %v4293
    %v4295 = vsub.s32 4294967266, %v4290
    %v4296 = vadd.s32 %v4295, 127
    %v4297 = vshll.u32 %v4296, 23
    %v4298 = vor.u32 4788187, %v4297
    %v4299 = vand.u32 2147483647, %v4298
    %v4301 = vcvt.s32.f32 %v4294
    %v4302 = vmul.f32 %v4301, %v4299
    %v4303 = vxor.u32 %v4302, 2147483648
    %v4304 = vsel %vm4183, %v4303, %v4302
    %v4305 = vsub.s32 4, %v4281
    %v4306 = vsel %vm4183, %v4305, %v4281
    %v4307 = vsel %vm4182, %v3871, %v4304
    %v4308 = vsel %vm4182, 0, %v4306
    %v4309 = vmul.f32 %v4307, %v4307
    %v4310 = vmul.f32 %v4309, -0.001358992
    %v4311 = vadd.f32 %v4310, 0.041655596
    %v4312 = vmul.f32 %v4309, %v4311
    %v4313 = vadd.f32 %v4312, -0.4999988
    %v4314 = vmul.f32 %v4309, %v4313
    %v4315 = vadd.f32 1.0, %v4314
    %v4316 = vmul.f32 %v4307, %v4307
    %v4317 = vmul.f32 %v4316, -0.00019511016
    %v4318 = vadd.f32 %v4317, 0.008332121
    %v4319 = vmul.f32 %v4316, %v4318
    %v4320 = vadd.f32 %v4319, -0.16666654
    %v4321 = vmul.f32 %v4316, %v4320
    %v4322 = vadd.f32 %v4321, 1.0
    %v4323 = vmul.f32 %v4322, %v4307
    %vm4324 = vweird.f32 %v3871
    %v4325 = vand.u32 %v4308, 3
    %vm4326 = vcmp.lt.s32.totalorder %v4325, 2
    %vm4327 = vcmp.eq.s32.totalorder %v4325, 0
    %v4328 = vxor.u32 %v4323, 2147483648
    %v4329 = vsel %vm4327, %v4315, %v4328
    %vm4330 = vcmp.eq.s32.totalorder %v4325, 2
    %v4331 = vxor.u32 %v4315, 2147483648
    %v4332 = vsel %vm4330, %v4331, %v4323
    %v4333 = vsel %vm4326, %v4329, %v4332
    %v4334 = vsel %vm4324, nan, %v4333
    %v4335 = vand.u32 2147483647, %v3872
    %vm4336 = vcmp.le.f32.partialorder %v4335, 0.7853982
    %vm4337 = vcmp.lt.s32.totalorder %v3872, 0
    %v4338 = vand.u32 %v3872, 2139095040
    %v4339 = vshrl.u32 %v4338, 23
    %v4340 = vsub.s32 %v4339, 127
    %v4341 = vand.u32 2147483647, %v3872
    %v4342 = vand.u32 %v4341, 8388607
    %v4343 = vor.u32 %v4342, 8388608
    %v4344 = vsub.s32 0, %v4343
    %v4345 = vadd.s32 %v4340, 1
    %vm4346 = vcmp.gt.s32.totalorder %v4345, 0
    %v4347 = vsel %vm4346, %v4345, 0
    %v4348 = vshrl.u32 %v4347, 5
    %v4349 = vand.u32 %v4347, 31
    %v4350 = vsub.s32 32, %v4349
    %v4351 = vshrl.u32 683565275, %v4350
    %v4352 = vshll.u32 683565275, %v4349
    %v4353 = vshrl.u32 2475754826, %v4350
    %v4354 = vor.u32 %v4352, %v4353
    %v4355 = vshll.u32 2475754826, %v4349
    %v4356 = vshrl.u32 2131351028, %v4350
    %v4357 = vor.u32 %v4355, %v4356
    %v4358 = vshll.u32 2131351028, %v4349
    %v4359 = vshrl.u32 2102212464, %v4350
    %v4360 = vor.u32 %v4358, %v4359
    %v4361 = vshll.u32 2102212464, %v4349
    %v4362 = vshrl.u32 920167782, %v4350
    %v4363 = vor.u32 %v4361, %v4362
    %v4364 = vshll.u32 920167782, %v4349
    %v4365 = vshrl.u32 1326507024, %v4350
    %v4366 = vor.u32 %v4364, %v4365
    %vm4367 = vcmp.lt.s32.totalorder %v4348, 1
    %vm4368 = vcmp.lt.s32.totalorder %v4348, 2
    %vm4369 = vcmp.lt.s32.totalorder %v4348, 3
    %vm4370 = vcmp.lt.s32.totalorder %v4348, 4
    %v4371 = vsel %vm4367, %v4351, %v4354
    %v4372 = vsel %vm4370, %v4360, 2102212464
    %v4373 = vsel %vm4369, %v4357, %v4372
    %v4374 = vsel %vm4368, %v4371, %v4373
    %v4375 = vsel %vm4367, %v4354, %v4357
    %v4376 = vsel %vm4370, %v4363, 920167782
    %v4377 = vsel %vm4369, %v4360, %v4376
    %v4378 = vsel %vm4368, %v4375, %v4377
    %v4379 = vsel %vm4367, %v4357, %v4360
    %v4380 = vsel %vm4370, %v4366, 1326507024
    %v4381 = vsel %vm4369, %v4363, %v4380
    %v4382 = vsel %vm4368, %v4379, %v4381
    %v4383 = vshll.u32 %v4343, 8
    %v4384 = vand.u32 %v4383, 65535
    %v4385 = vshrl.u32 %v4383, 16
    %v4386 = vand.u32 %v4382, 65535
    %v4387 = vshrl.u32 %v4382, 16
    %v4388 = vmul.u32 %v4384, %v4386
    %v4389 = vmul.u32 %v4384, %v4387
    %v4390 = vmul.u32 %v4385, %v4386
    %v4391 = vmul.u32 %v4385, %v4387
    %v4392 = vshll.u32 %v4389, 16
    %v4393 = vshrl.u32 %v4389, 16
    %v4394 = vshll.u32 %v4390, 16
    %v4395 = vshrl.u32 %v4390, 16
    %vm4396 = vc.u32 %v4388, %v4392
    %v4397 = vsel %vm4396, 1, 0
    %v4398 = vadd.s32 %v4388, %v4392
    %v4399 = vadd.s32 %v4391, %v4397
    %vm4400 = vc.u32 %v4398, %v4394
    %v4401 = vsel %vm4400, 1, 0
    %v4402 = vadd.s32 %v4398, %v4394
    %v4403 = vadd.s32 %v4399, %v4401
    %v4404 = vadd.s32 %v4403, %v4393
    %v4405 = vadd.s32 %v4404, %v4395
    %v4406 = vand.u32 %v4383, 65535
    %v4407 = vshrl.u32 %v4383, 16
    %v4408 = vand.u32 %v4378, 65535
    %v4409 = vshrl.u32 %v4378, 16
    %v4410 = vmul.u32 %v4406, %v4408
    %v4411 = vmul.u32 %v4406, %v4409
    %v4412 = vmul.u32 %v4407, %v4408
    %v4413 = vmul.u32 %v4407, %v4409
    %v4414 = vshll.u32 %v4411, 16
    %v4415 = vshrl.u32 %v4411, 16
    %v4416 = vshll.u32 %v4412, 16
    %v4417 = vshrl.u32 %v4412, 16
    %vm4418 = vc.u32 %v4410, %v4414
    %v4419 = vsel %vm4418, 1, 0
    %v4420 = vadd.s32 %v4410, %v4414
    %v4421 = vadd.s32 %v4413, %v4419
    %vm4422 = vc.u32 %v4420, %v4416
    %v4423 = vsel %vm4422, 1, 0
    %v4424 = vadd.s32 %v4420, %v4416
    %v4425 = vadd.s32 %v4421, %v4423
    %v4426 = vadd.s32 %v4425, %v4415
    %v4427 = vadd.s32 %v4426, %v4417
    %v4428 = vmul.u32 %v4383, %v4374
    %v4429 = vadd.s32 %v4405, %v4424
    %vm4430 = vc.u32 %v4405, %v4424
    %v4431 = vadd.s32 %v4427, 1
    %v4432 = vsel %vm4430, %v4431, %v4427
    %v4433 = vadd.s32 %v4428, %v4432
    %v4434 = vadd.s32 %v4433, 536870912
    %v4435 = vshrl.u32 %v4434, 30
    %v4436 = vshll.u32 %v4435, 30
    %v4437 = vsub.s32 %v4433, %v4436
    %vm4438 = vcmp.lt.s32.totalorder %v4437, 0
    %v4439 = vsub.s32 0, %v4437
    %v4440 = vsel %vm4438, %v4439, %v4437
    %v4441 = vclz %v4440
    %v4442 = vsub.s32 %v4441, 2
    %vm4443 = vcmp.gt.s32.totalorder 0, %v4442
    %v4444 = vsel %vm4443, 0, %v4442
    %v4445 = vsub.s32 32, %v4444
    %v4446 = vshll.u32 %v4437, %v4444
    %v4447 = vshrl.u32 %v4429, %v4445
    %v4448 = vor.u32 %v4446, %v4447
    %v4449 = vsub.s32 4294967266, %v4444
    %v4450 = vadd.s32 %v4449, 127
    %v4451 = vshll.u32 %v4450, 23
    %v4452 = vor.u32 4788187, %v4451
    %v4453 = vand.u32 2147483647, %v4452
    %v4455 = vcvt.s32.f32 %v4448
    %v4456 = vmul.f32 %v4455, %v4453
    %v4457 = vxor.u32 %v4456, 2147483648
    %v4458 = vsel %vm4337, %v4457, %v4456
    %v4459 = vsub.s32 4, %v4435
    %v4460 = vsel %vm4337, %v4459, %v4435
    %v4461 = vsel %vm4336, %v3872, %v4458
    %v4462 = vsel %vm4336, 0, %v4460
    %v4463 = vmul.f32 %v4461, %v4461
    %v4464 = vmul.f32 %v4463, -0.001358992
    %v4465 = vadd.f32 %v4464, 0.041655596
    %v4466 = vmul.f32 %v4463, %v4465
    %v4467 = vadd.f32 %v4466, -0.4999988
    %v4468 = vmul.f32 %v4463, %v4467
    %v4469 = vadd.f32 1.0, %v4468
    %v4470 = vmul.f32 %v4461, %v4461
    %v4471 = vmul.f32 %v4470, -0.00019511016
    %v4472 = vadd.f32 %v4471, 0.008332121
    %v4473 = vmul.f32 %v4470, %v4472
    %v4474 = vadd.f32 %v4473, -0.16666654
    %v4475 = vmul.f32 %v4470, %v4474
    %v4476 = vadd.f32 %v4475, 1.0
    %v4477 = vmul.f32 %v4476, %v4461
    %vm4478 = vweird.f32 %v3872
    %v4479 = vand.u32 %v4462, 3
    %vm4480 = vcmp.lt.s32.totalorder %v4479, 2
    %vm4481 = vcmp.eq.s32.totalorder %v4479, 0
    %v4482 = vxor.u32 %v4477, 2147483648
    %v4483 = vsel %vm4481, %v4469, %v4482
    %vm4484 = vcmp.eq.s32.totalorder %v4479, 2
    %v4485 = vxor.u32 %v4469, 2147483648
    %v4486 = vsel %vm4484, %v4485, %v4477
    %v4487 = vsel %vm4480, %v4483, %v4486
    %v4488 = vsel %vm4478, nan, %v4487
    %v4489 = vand.u32 2147483647, %v3869
    %vm4490 = vcmp.le.f32.partialorder %v4489, 0.7853982
    %vm4491 = vcmp.lt.s32.totalorder %v3869, 0
    %v4492 = vand.u32 %v3869, 2139095040
    %v4493 = vshrl.u32 %v4492, 23
    %v4494 = vsub.s32 %v4493, 127
    %v4495 = vand.u32 2147483647, %v3869
    %v4496 = vand.u32 %v4495, 8388607
    %v4497 = vor.u32 %v4496, 8388608
    %v4498 = vsub.s32 0, %v4497
    %v4499 = vadd.s32 %v4494, 1
    %vm4500 = vcmp.gt.s32.totalorder %v4499, 0
    %v4501 = vsel %vm4500, %v4499, 0
    %v4502 = vshrl.u32 %v4501, 5
    %v4503 = vand.u32 %v4501, 31
    %v4504 = vsub.s32 32, %v4503
    %v4505 = vshrl.u32 683565275, %v4504
    %v4506 = vshll.u32 683565275, %v4503
    %v4507 = vshrl.u32 2475754826, %v4504
    %v4508 = vor.u32 %v4506, %v4507
    %v4509 = vshll.u32 2475754826, %v4503
    %v4510 = vshrl.u32 2131351028, %v4504
    %v4511 = vor.u32 %v4509, %v4510
    %v4512 = vshll.u32 2131351028, %v4503
    %v4513 = vshrl.u32 2102212464, %v4504
    %v4514 = vor.u32 %v4512, %v4513
    %v4515 = vshll.u32 2102212464, %v4503
    %v4516 = vshrl.u32 920167782, %v4504
    %v4517 = vor.u32 %v4515, %v4516
    %v4518 = vshll.u32 920167782, %v4503
    %v4519 = vshrl.u32 1326507024, %v4504
    %v4520 = vor.u32 %v4518, %v4519
    %vm4521 = vcmp.lt.s32.totalorder %v4502, 1
    %vm4522 = vcmp.lt.s32.totalorder %v4502, 2
    %vm4523 = vcmp.lt.s32.totalorder %v4502, 3
    %vm4524 = vcmp.lt.s32.totalorder %v4502, 4
    %v4525 = vsel %vm4521, %v4505, %v4508
    %v4526 = vsel %vm4524, %v4514, 2102212464
    %v4527 = vsel %vm4523, %v4511, %v4526
    %v4528 = vsel %vm4522, %v4525, %v4527
    %v4529 = vsel %vm4521, %v4508, %v4511
    %v4530 = vsel %vm4524, %v4517, 920167782
    %v4531 = vsel %vm4523, %v4514, %v4530
    %v4532 = vsel %vm4522, %v4529, %v4531
    %v4533 = vsel %vm4521, %v4511, %v4514
    %v4534 = vsel %vm4524, %v4520, 1326507024
    %v4535 = vsel %vm4523, %v4517, %v4534
    %v4536 = vsel %vm4522, %v4533, %v4535
    %v4537 = vshll.u32 %v4497, 8
    %v4538 = vand.u32 %v4537, 65535
    %v4539 = vshrl.u32 %v4537, 16
    %v4540 = vand.u32 %v4536, 65535
    %v4541 = vshrl.u32 %v4536, 16
    %v4542 = vmul.u32 %v4538, %v4540
    %v4543 = vmul.u32 %v4538, %v4541
    %v4544 = vmul.u32 %v4539, %v4540
    %v4545 = vmul.u32 %v4539, %v4541
    %v4546 = vshll.u32 %v4543, 16
    %v4547 = vshrl.u32 %v4543, 16
    %v4548 = vshll.u32 %v4544, 16
    %v4549 = vshrl.u32 %v4544, 16
    %vm4550 = vc.u32 %v4542, %v4546
    %v4551 = vsel %vm4550, 1, 0
    %v4552 = vadd.s32 %v4542, %v4546
    %v4553 = vadd.s32 %v4545, %v4551
    %vm4554 = vc.u32 %v4552, %v4548
    %v4555 = vsel %vm4554, 1, 0
    %v4556 = vadd.s32 %v4552, %v4548
    %v4557 = vadd.s32 %v4553, %v4555
    %v4558 = vadd.s32 %v4557, %v4547
    %v4559 = vadd.s32 %v4558, %v4549
    %v4560 = vand.u32 %v4537, 65535
    %v4561 = vshrl.u32 %v4537, 16
    %v4562 = vand.u32 %v4532, 65535
    %v4563 = vshrl.u32 %v4532, 16
    %v4564 = vmul.u32 %v4560, %v4562
    %v4565 = vmul.u32 %v4560, %v4563
    %v4566 = vmul.u32 %v4561, %v4562
    %v4567 = vmul.u32 %v4561, %v4563
    %v4568 = vshll.u32 %v4565, 16
    %v4569 = vshrl.u32 %v4565, 16
    %v4570 = vshll.u32 %v4566, 16
    %v4571 = vshrl.u32 %v4566, 16
    %vm4572 = vc.u32 %v4564, %v4568
    %v4573 = vsel %vm4572, 1, 0
    %v4574 = vadd.s32 %v4564, %v4568
    %v4575 = vadd.s32 %v4567, %v4573
    %vm4576 = vc.u32 %v4574, %v4570
    %v4577 = vsel %vm4576, 1, 0
    %v4578 = vadd.s32 %v4574, %v4570
    %v4579 = vadd.s32 %v4575, %v4577
    %v4580 = vadd.s32 %v4579, %v4569
    %v4581 = vadd.s32 %v4580, %v4571
    %v4582 = vmul.u32 %v4537, %v4528
    %v4583 = vadd.s32 %v4559, %v4578
    %vm4584 = vc.u32 %v4559, %v4578
    %v4585 = vadd.s32 %v4581, 1
    %v4586 = vsel %vm4584, %v4585, %v4581
    %v4587 = vadd.s32 %v4582, %v4586
    %v4588 = vadd.s32 %v4587, 536870912
    %v4589 = vshrl.u32 %v4588, 30
    %v4590 = vshll.u32 %v4589, 30
    %v4591 = vsub.s32 %v4587, %v4590
    %vm4592 = vcmp.lt.s32.totalorder %v4591, 0
    %v4593 = vsub.s32 0, %v4591
    %v4594 = vsel %vm4592, %v4593, %v4591
    %v4595 = vclz %v4594
    %v4596 = vsub.s32 %v4595, 2
    %vm4597 = vcmp.gt.s32.totalorder 0, %v4596
    %v4598 = vsel %vm4597, 0, %v4596
    %v4599 = vsub.s32 32, %v4598
    %v4600 = vshll.u32 %v4591, %v4598
    %v4601 = vshrl.u32 %v4583, %v4599
    %v4602 = vor.u32 %v4600, %v4601
    %v4603 = vsub.s32 4294967266, %v4598
    %v4604 = vadd.s32 %v4603, 127
    %v4605 = vshll.u32 %v4604, 23
    %v4606 = vor.u32 4788187, %v4605
    %v4607 = vand.u32 2147483647, %v4606
    %v4609 = vcvt.s32.f32 %v4602
    %v4610 = vmul.f32 %v4609, %v4607
    %v4611 = vxor.u32 %v4610, 2147483648
    %v4612 = vsel %vm4491, %v4611, %v4610
    %v4613 = vsub.s32 4, %v4589
    %v4614 = vsel %vm4491, %v4613, %v4589
    %v4615 = vsel %vm4490, %v3869, %v4612
    %v4616 = vsel %vm4490, 0, %v4614
    %v4617 = vmul.f32 %v4615, %v4615
    %v4618 = vmul.f32 %v4617, -0.001358992
    %v4619 = vadd.f32 %v4618, 0.041655596
    %v4620 = vmul.f32 %v4617, %v4619
    %v4621 = vadd.f32 %v4620, -0.4999988
    %v4622 = vmul.f32 %v4617, %v4621
    %v4623 = vadd.f32 1.0, %v4622
    %v4624 = vmul.f32 %v4615, %v4615
    %v4625 = vmul.f32 %v4624, -0.00019511016
    %v4626 = vadd.f32 %v4625, 0.008332121
    %v4627 = vmul.f32 %v4624, %v4626
    %v4628 = vadd.f32 %v4627, -0.16666654
    %v4629 = vmul.f32 %v4624, %v4628
    %v4630 = vadd.f32 %v4629, 1.0
    %v4631 = vmul.f32 %v4630, %v4615
    %vm4632 = vweird.f32 %v3869
    %v4633 = vadd.s32 %v4616, 3
    %v4634 = vand.u32 %v4633, 3
    %vm4635 = vcmp.lt.s32.totalorder %v4634, 2
    %vm4636 = vcmp.eq.s32.totalorder %v4634, 0
    %v4637 = vxor.u32 %v4631, 2147483648
    %v4638 = vsel %vm4636, %v4623, %v4637
    %vm4639 = vcmp.eq.s32.totalorder %v4634, 2
    %v4640 = vxor.u32 %v4623, 2147483648
    %v4641 = vsel %vm4639, %v4640, %v4631
    %v4642 = vsel %vm4635, %v4638, %v4641
    %v4643 = vsel %vm4632, nan, %v4642
    %v4644 = vand.u32 2147483647, %v3870
    %vm4645 = vcmp.le.f32.partialorder %v4644, 0.7853982
    %vm4646 = vcmp.lt.s32.totalorder %v3870, 0
    %v4647 = vand.u32 %v3870, 2139095040
    %v4648 = vshrl.u32 %v4647, 23
    %v4649 = vsub.s32 %v4648, 127
    %v4650 = vand.u32 2147483647, %v3870
    %v4651 = vand.u32 %v4650, 8388607
    %v4652 = vor.u32 %v4651, 8388608
    %v4653 = vsub.s32 0, %v4652
    %v4654 = vadd.s32 %v4649, 1
    %vm4655 = vcmp.gt.s32.totalorder %v4654, 0
    %v4656 = vsel %vm4655, %v4654, 0
    %v4657 = vshrl.u32 %v4656, 5
    %v4658 = vand.u32 %v4656, 31
    %v4659 = vsub.s32 32, %v4658
    %v4660 = vshrl.u32 683565275, %v4659
    %v4661 = vshll.u32 683565275, %v4658
    %v4662 = vshrl.u32 2475754826, %v4659
    %v4663 = vor.u32 %v4661, %v4662
    %v4664 = vshll.u32 2475754826, %v4658
    %v4665 = vshrl.u32 2131351028, %v4659
    %v4666 = vor.u32 %v4664, %v4665
    %v4667 = vshll.u32 2131351028, %v4658
    %v4668 = vshrl.u32 2102212464, %v4659
    %v4669 = vor.u32 %v4667, %v4668
    %v4670 = vshll.u32 2102212464, %v4658
    %v4671 = vshrl.u32 920167782, %v4659
    %v4672 = vor.u32 %v4670, %v4671
    %v4673 = vshll.u32 920167782, %v4658
    %v4674 = vshrl.u32 1326507024, %v4659
    %v4675 = vor.u32 %v4673, %v4674
    %vm4676 = vcmp.lt.s32.totalorder %v4657, 1
    %vm4677 = vcmp.lt.s32.totalorder %v4657, 2
    %vm4678 = vcmp.lt.s32.totalorder %v4657, 3
    %vm4679 = vcmp.lt.s32.totalorder %v4657, 4
    %v4680 = vsel %vm4676, %v4660, %v4663
    %v4681 = vsel %vm4679, %v4669, 2102212464
    %v4682 = vsel %vm4678, %v4666, %v4681
    %v4683 = vsel %vm4677, %v4680, %v4682
    %v4684 = vsel %vm4676, %v4663, %v4666
    %v4685 = vsel %vm4679, %v4672, 920167782
    %v4686 = vsel %vm4678, %v4669, %v4685
    %v4687 = vsel %vm4677, %v4684, %v4686
    %v4688 = vsel %vm4676, %v4666, %v4669
    %v4689 = vsel %vm4679, %v4675, 1326507024
    %v4690 = vsel %vm4678, %v4672, %v4689
    %v4691 = vsel %vm4677, %v4688, %v4690
    %v4692 = vshll.u32 %v4652, 8
    %v4693 = vand.u32 %v4692, 65535
    %v4694 = vshrl.u32 %v4692, 16
    %v4695 = vand.u32 %v4691, 65535
    %v4696 = vshrl.u32 %v4691, 16
    %v4697 = vmul.u32 %v4693, %v4695
    %v4698 = vmul.u32 %v4693, %v4696
    %v4699 = vmul.u32 %v4694, %v4695
    %v4700 = vmul.u32 %v4694, %v4696
    %v4701 = vshll.u32 %v4698, 16
    %v4702 = vshrl.u32 %v4698, 16
    %v4703 = vshll.u32 %v4699, 16
    %v4704 = vshrl.u32 %v4699, 16
    %vm4705 = vc.u32 %v4697, %v4701
    %v4706 = vsel %vm4705, 1, 0
    %v4707 = vadd.s32 %v4697, %v4701
    %v4708 = vadd.s32 %v4700, %v4706
    %vm4709 = vc.u32 %v4707, %v4703
    %v4710 = vsel %vm4709, 1, 0
    %v4711 = vadd.s32 %v4707, %v4703
    %v4712 = vadd.s32 %v4708, %v4710
    %v4713 = vadd.s32 %v4712, %v4702
    %v4714 = vadd.s32 %v4713, %v4704
    %v4715 = vand.u32 %v4692, 65535
    %v4716 = vshrl.u32 %v4692, 16
    %v4717 = vand.u32 %v4687, 65535
    %v4718 = vshrl.u32 %v4687, 16
    %v4719 = vmul.u32 %v4715, %v4717
    %v4720 = vmul.u32 %v4715, %v4718
    %v4721 = vmul.u32 %v4716, %v4717
    %v4722 = vmul.u32 %v4716, %v4718
    %v4723 = vshll.u32 %v4720, 16
    %v4724 = vshrl.u32 %v4720, 16
    %v4725 = vshll.u32 %v4721, 16
    %v4726 = vshrl.u32 %v4721, 16
    %vm4727 = vc.u32 %v4719, %v4723
    %v4728 = vsel %vm4727, 1, 0
    %v4729 = vadd.s32 %v4719, %v4723
    %v4730 = vadd.s32 %v4722, %v4728
    %vm4731 = vc.u32 %v4729, %v4725
    %v4732 = vsel %vm4731, 1, 0
    %v4733 = vadd.s32 %v4729, %v4725
    %v4734 = vadd.s32 %v4730, %v4732
    %v4735 = vadd.s32 %v4734, %v4724
    %v4736 = vadd.s32 %v4735, %v4726
    %v4737 = vmul.u32 %v4692, %v4683
    %v4738 = vadd.s32 %v4714, %v4733
    %vm4739 = vc.u32 %v4714, %v4733
    %v4740 = vadd.s32 %v4736, 1
    %v4741 = vsel %vm4739, %v4740, %v4736
    %v4742 = vadd.s32 %v4737, %v4741
    %v4743 = vadd.s32 %v4742, 536870912
    %v4744 = vshrl.u32 %v4743, 30
    %v4745 = vshll.u32 %v4744, 30
    %v4746 = vsub.s32 %v4742, %v4745
    %vm4747 = vcmp.lt.s32.totalorder %v4746, 0
    %v4748 = vsub.s32 0, %v4746
    %v4749 = vsel %vm4747, %v4748, %v4746
    %v4750 = vclz %v4749
    %v4751 = vsub.s32 %v4750, 2
    %vm4752 = vcmp.gt.s32.totalorder 0, %v4751
    %v4753 = vsel %vm4752, 0, %v4751
    %v4754 = vsub.s32 32, %v4753
    %v4755 = vshll.u32 %v4746, %v4753
    %v4756 = vshrl.u32 %v4738, %v4754
    %v4757 = vor.u32 %v4755, %v4756
    %v4758 = vsub.s32 4294967266, %v4753
    %v4759 = vadd.s32 %v4758, 127
    %v4760 = vshll.u32 %v4759, 23
    %v4761 = vor.u32 4788187, %v4760
    %v4762 = vand.u32 2147483647, %v4761
    %v4764 = vcvt.s32.f32 %v4757
    %v4765 = vmul.f32 %v4764, %v4762
    %v4766 = vxor.u32 %v4765, 2147483648
    %v4767 = vsel %vm4646, %v4766, %v4765
    %v4768 = vsub.s32 4, %v4744
    %v4769 = vsel %vm4646, %v4768, %v4744
    %v4770 = vsel %vm4645, %v3870, %v4767
    %v4771 = vsel %vm4645, 0, %v4769
    %v4772 = vmul.f32 %v4770, %v4770
    %v4773 = vmul.f32 %v4772, -0.001358992
    %v4774 = vadd.f32 %v4773, 0.041655596
    %v4775 = vmul.f32 %v4772, %v4774
    %v4776 = vadd.f32 %v4775, -0.4999988
    %v4777 = vmul.f32 %v4772, %v4776
    %v4778 = vadd.f32 1.0, %v4777
    %v4779 = vmul.f32 %v4770, %v4770
    %v4780 = vmul.f32 %v4779, -0.00019511016
    %v4781 = vadd.f32 %v4780, 0.008332121
    %v4782 = vmul.f32 %v4779, %v4781
    %v4783 = vadd.f32 %v4782, -0.16666654
    %v4784 = vmul.f32 %v4779, %v4783
    %v4785 = vadd.f32 %v4784, 1.0
    %v4786 = vmul.f32 %v4785, %v4770
    %vm4787 = vweird.f32 %v3870
    %v4788 = vadd.s32 %v4771, 3
    %v4789 = vand.u32 %v4788, 3
    %vm4790 = vcmp.lt.s32.totalorder %v4789, 2
    %vm4791 = vcmp.eq.s32.totalorder %v4789, 0
    %v4792 = vxor.u32 %v4786, 2147483648
    %v4793 = vsel %vm4791, %v4778, %v4792
    %vm4794 = vcmp.eq.s32.totalorder %v4789, 2
    %v4795 = vxor.u32 %v4778, 2147483648
    %v4796 = vsel %vm4794, %v4795, %v4786
    %v4797 = vsel %vm4790, %v4793, %v4796
    %v4798 = vsel %vm4787, nan, %v4797
    %v4799 = vand.u32 2147483647, %v3871
    %vm4800 = vcmp.le.f32.partialorder %v4799, 0.7853982
    %vm4801 = vcmp.lt.s32.totalorder %v3871, 0
    %v4802 = vand.u32 %v3871, 2139095040
    %v4803 = vshrl.u32 %v4802, 23
    %v4804 = vsub.s32 %v4803, 127
    %v4805 = vand.u32 2147483647, %v3871
    %v4806 = vand.u32 %v4805, 8388607
    %v4807 = vor.u32 %v4806, 8388608
    %v4808 = vsub.s32 0, %v4807
    %v4809 = vadd.s32 %v4804, 1
    %vm4810 = vcmp.gt.s32.totalorder %v4809, 0
    %v4811 = vsel %vm4810, %v4809, 0
    %v4812 = vshrl.u32 %v4811, 5
    %v4813 = vand.u32 %v4811, 31
    %v4814 = vsub.s32 32, %v4813
    %v4815 = vshrl.u32 683565275, %v4814
    %v4816 = vshll.u32 683565275, %v4813
    %v4817 = vshrl.u32 2475754826, %v4814
    %v4818 = vor.u32 %v4816, %v4817
    %v4819 = vshll.u32 2475754826, %v4813
    %v4820 = vshrl.u32 2131351028, %v4814
    %v4821 = vor.u32 %v4819, %v4820
    %v4822 = vshll.u32 2131351028, %v4813
    %v4823 = vshrl.u32 2102212464, %v4814
    %v4824 = vor.u32 %v4822, %v4823
    %v4825 = vshll.u32 2102212464, %v4813
    %v4826 = vshrl.u32 920167782, %v4814
    %v4827 = vor.u32 %v4825, %v4826
    %v4828 = vshll.u32 920167782, %v4813
    %v4829 = vshrl.u32 1326507024, %v4814
    %v4830 = vor.u32 %v4828, %v4829
    %vm4831 = vcmp.lt.s32.totalorder %v4812, 1
    %vm4832 = vcmp.lt.s32.totalorder %v4812, 2
    %vm4833 = vcmp.lt.s32.totalorder %v4812, 3
    %vm4834 = vcmp.lt.s32.totalorder %v4812, 4
    %v4835 = vsel %vm4831, %v4815, %v4818
    %v4836 = vsel %vm4834, %v4824, 2102212464
    %v4837 = vsel %vm4833, %v4821, %v4836
    %v4838 = vsel %vm4832, %v4835, %v4837
    %v4839 = vsel %vm4831, %v4818, %v4821
    %v4840 = vsel %vm4834, %v4827, 920167782
    %v4841 = vsel %vm4833, %v4824, %v4840
    %v4842 = vsel %vm4832, %v4839, %v4841
    %v4843 = vsel %vm4831, %v4821, %v4824
    %v4844 = vsel %vm4834, %v4830, 1326507024
    %v4845 = vsel %vm4833, %v4827, %v4844
    %v4846 = vsel %vm4832, %v4843, %v4845
    %v4847 = vshll.u32 %v4807, 8
    %v4848 = vand.u32 %v4847, 65535
    %v4849 = vshrl.u32 %v4847, 16
    %v4850 = vand.u32 %v4846, 65535
    %v4851 = vshrl.u32 %v4846, 16
    %v4852 = vmul.u32 %v4848, %v4850
    %v4853 = vmul.u32 %v4848, %v4851
    %v4854 = vmul.u32 %v4849, %v4850
    %v4855 = vmul.u32 %v4849, %v4851
    %v4856 = vshll.u32 %v4853, 16
    %v4857 = vshrl.u32 %v4853, 16
    %v4858 = vshll.u32 %v4854, 16
    %v4859 = vshrl.u32 %v4854, 16
    %vm4860 = vc.u32 %v4852, %v4856
    %v4861 = vsel %vm4860, 1, 0
    %v4862 = vadd.s32 %v4852, %v4856
    %v4863 = vadd.s32 %v4855, %v4861
    %vm4864 = vc.u32 %v4862, %v4858
    %v4865 = vsel %vm4864, 1, 0
    %v4866 = vadd.s32 %v4862, %v4858
    %v4867 = vadd.s32 %v4863, %v4865
    %v4868 = vadd.s32 %v4867, %v4857
    %v4869 = vadd.s32 %v4868, %v4859
    %v4870 = vand.u32 %v4847, 65535
    %v4871 = vshrl.u32 %v4847, 16
    %v4872 = vand.u32 %v4842, 65535
    %v4873 = vshrl.u32 %v4842, 16
    %v4874 = vmul.u32 %v4870, %v4872
    %v4875 = vmul.u32 %v4870, %v4873
    %v4876 = vmul.u32 %v4871, %v4872
    %v4877 = vmul.u32 %v4871, %v4873
    %v4878 = vshll.u32 %v4875, 16
    %v4879 = vshrl.u32 %v4875, 16
    %v4880 = vshll.u32 %v4876, 16
    %v4881 = vshrl.u32 %v4876, 16
    %vm4882 = vc.u32 %v4874, %v4878
    %v4883 = vsel %vm4882, 1, 0
    %v4884 = vadd.s32 %v4874, %v4878
    %v4885 = vadd.s32 %v4877, %v4883
    %vm4886 = vc.u32 %v4884, %v4880
    %v4887 = vsel %vm4886, 1, 0
    %v4888 = vadd.s32 %v4884, %v4880
    %v4889 = vadd.s32 %v4885, %v4887
    %v4890 = vadd.s32 %v4889, %v4879
    %v4891 = vadd.s32 %v4890, %v4881
    %v4892 = vmul.u32 %v4847, %v4838
    %v4893 = vadd.s32 %v4869, %v4888
    %vm4894 = vc.u32 %v4869, %v4888
    %v4895 = vadd.s32 %v4891, 1
    %v4896 = vsel %vm4894, %v4895, %v4891
    %v4897 = vadd.s32 %v4892, %v4896
    %v4898 = vadd.s32 %v4897, 536870912
    %v4899 = vshrl.u32 %v4898, 30
    %v4900 = vshll.u32 %v4899, 30
    %v4901 = vsub.s32 %v4897, %v4900
    %vm4902 = vcmp.lt.s32.totalorder %v4901, 0
    %v4903 = vsub.s32 0, %v4901
    %v4904 = vsel %vm4902, %v4903, %v4901
    %v4905 = vclz %v4904
    %v4906 = vsub.s32 %v4905, 2
    %vm4907 = vcmp.gt.s32.totalorder 0, %v4906
    %v4908 = vsel %vm4907, 0, %v4906
    %v4909 = vsub.s32 32, %v4908
    %v4910 = vshll.u32 %v4901, %v4908
    %v4911 = vshrl.u32 %v4893, %v4909
    %v4912 = vor.u32 %v4910, %v4911
    %v4913 = vsub.s32 4294967266, %v4908
    %v4914 = vadd.s32 %v4913, 127
    %v4915 = vshll.u32 %v4914, 23
    %v4916 = vor.u32 4788187, %v4915
    %v4917 = vand.u32 2147483647, %v4916
    %v4919 = vcvt.s32.f32 %v4912
    %v4920 = vmul.f32 %v4919, %v4917
    %v4921 = vxor.u32 %v4920, 2147483648
    %v4922 = vsel %vm4801, %v4921, %v4920
    %v4923 = vsub.s32 4, %v4899
    %v4924 = vsel %vm4801, %v4923, %v4899
    %v4925 = vsel %vm4800, %v3871, %v4922
    %v4926 = vsel %vm4800, 0, %v4924
    %v4927 = vmul.f32 %v4925, %v4925
    %v4928 = vmul.f32 %v4927, -0.001358992
    %v4929 = vadd.f32 %v4928, 0.041655596
    %v4930 = vmul.f32 %v4927, %v4929
    %v4931 = vadd.f32 %v4930, -0.4999988
    %v4932 = vmul.f32 %v4927, %v4931
    %v4933 = vadd.f32 1.0, %v4932
    %v4934 = vmul.f32 %v4925, %v4925
    %v4935 = vmul.f32 %v4934, -0.00019511016
    %v4936 = vadd.f32 %v4935, 0.008332121
    %v4937 = vmul.f32 %v4934, %v4936
    %v4938 = vadd.f32 %v4937, -0.16666654
    %v4939 = vmul.f32 %v4934, %v4938
    %v4940 = vadd.f32 %v4939, 1.0
    %v4941 = vmul.f32 %v4940, %v4925
    %vm4942 = vweird.f32 %v3871
    %v4943 = vadd.s32 %v4926, 3
    %v4944 = vand.u32 %v4943, 3
    %vm4945 = vcmp.lt.s32.totalorder %v4944, 2
    %vm4946 = vcmp.eq.s32.totalorder %v4944, 0
    %v4947 = vxor.u32 %v4941, 2147483648
    %v4948 = vsel %vm4946, %v4933, %v4947
    %vm4949 = vcmp.eq.s32.totalorder %v4944, 2
    %v4950 = vxor.u32 %v4933, 2147483648
    %v4951 = vsel %vm4949, %v4950, %v4941
    %v4952 = vsel %vm4945, %v4948, %v4951
    %v4953 = vsel %vm4942, nan, %v4952
    %v4954 = vand.u32 2147483647, %v3872
    %vm4955 = vcmp.le.f32.partialorder %v4954, 0.7853982
    %vm4956 = vcmp.lt.s32.totalorder %v3872, 0
    %v4957 = vand.u32 %v3872, 2139095040
    %v4958 = vshrl.u32 %v4957, 23
    %v4959 = vsub.s32 %v4958, 127
    %v4960 = vand.u32 2147483647, %v3872
    %v4961 = vand.u32 %v4960, 8388607
    %v4962 = vor.u32 %v4961, 8388608
    %v4963 = vsub.s32 0, %v4962
    %v4964 = vadd.s32 %v4959, 1
    %vm4965 = vcmp.gt.s32.totalorder %v4964, 0
    %v4966 = vsel %vm4965, %v4964, 0
    %v4967 = vshrl.u32 %v4966, 5
    %v4968 = vand.u32 %v4966, 31
    %v4969 = vsub.s32 32, %v4968
    %v4970 = vshrl.u32 683565275, %v4969
    %v4971 = vshll.u32 683565275, %v4968
    %v4972 = vshrl.u32 2475754826, %v4969
    %v4973 = vor.u32 %v4971, %v4972
    %v4974 = vshll.u32 2475754826, %v4968
    %v4975 = vshrl.u32 2131351028, %v4969
    %v4976 = vor.u32 %v4974, %v4975
    %v4977 = vshll.u32 2131351028, %v4968
    %v4978 = vshrl.u32 2102212464, %v4969
    %v4979 = vor.u32 %v4977, %v4978
    %v4980 = vshll.u32 2102212464, %v4968
    %v4981 = vshrl.u32 920167782, %v4969
    %v4982 = vor.u32 %v4980, %v4981
    %v4983 = vshll.u32 920167782, %v4968
    %v4984 = vshrl.u32 1326507024, %v4969
    %v4985 = vor.u32 %v4983, %v4984
    %vm4986 = vcmp.lt.s32.totalorder %v4967, 1
    %vm4987 = vcmp.lt.s32.totalorder %v4967, 2
    %vm4988 = vcmp.lt.s32.totalorder %v4967, 3
    %vm4989 = vcmp.lt.s32.totalorder %v4967, 4
    %v4990 = vsel %vm4986, %v4970, %v4973
    %v4991 = vsel %vm4989, %v4979, 2102212464
    %v4992 = vsel %vm4988, %v4976, %v4991
    %v4993 = vsel %vm4987, %v4990, %v4992
    %v4994 = vsel %vm4986, %v4973, %v4976
    %v4995 = vsel %vm4989, %v4982, 920167782
    %v4996 = vsel %vm4988, %v4979, %v4995
    %v4997 = vsel %vm4987, %v4994, %v4996
    %v4998 = vsel %vm4986, %v4976, %v4979
    %v4999 = vsel %vm4989, %v4985, 1326507024
    %v5000 = vsel %vm4988, %v4982, %v4999
    %v5001 = vsel %vm4987, %v4998, %v5000
    %v5002 = vshll.u32 %v4962, 8
    %v5003 = vand.u32 %v5002, 65535
    %v5004 = vshrl.u32 %v5002, 16
    %v5005 = vand.u32 %v5001, 65535
    %v5006 = vshrl.u32 %v5001, 16
    %v5007 = vmul.u32 %v5003, %v5005
    %v5008 = vmul.u32 %v5003, %v5006
    %v5009 = vmul.u32 %v5004, %v5005
    %v5010 = vmul.u32 %v5004, %v5006
    %v5011 = vshll.u32 %v5008, 16
    %v5012 = vshrl.u32 %v5008, 16
    %v5013 = vshll.u32 %v5009, 16
    %v5014 = vshrl.u32 %v5009, 16
    %vm5015 = vc.u32 %v5007, %v5011
    %v5016 = vsel %vm5015, 1, 0
    %v5017 = vadd.s32 %v5007, %v5011
    %v5018 = vadd.s32 %v5010, %v5016
    %vm5019 = vc.u32 %v5017, %v5013
    %v5020 = vsel %vm5019, 1, 0
    %v5021 = vadd.s32 %v5017, %v5013
    %v5022 = vadd.s32 %v5018, %v5020
    %v5023 = vadd.s32 %v5022, %v5012
    %v5024 = vadd.s32 %v5023, %v5014
    %v5025 = vand.u32 %v5002, 65535
    %v5026 = vshrl.u32 %v5002, 16
    %v5027 = vand.u32 %v4997, 65535
    %v5028 = vshrl.u32 %v4997, 16
    %v5029 = vmul.u32 %v5025, %v5027
    %v5030 = vmul.u32 %v5025, %v5028
    %v5031 = vmul.u32 %v5026, %v5027
    %v5032 = vmul.u32 %v5026, %v5028
    %v5033 = vshll.u32 %v5030, 16
    %v5034 = vshrl.u32 %v5030, 16
    %v5035 = vshll.u32 %v5031, 16
    %v5036 = vshrl.u32 %v5031, 16
    %vm5037 = vc.u32 %v5029, %v5033
    %v5038 = vsel %vm5037, 1, 0
    %v5039 = vadd.s32 %v5029, %v5033
    %v5040 = vadd.s32 %v5032, %v5038
    %vm5041 = vc.u32 %v5039, %v5035
    %v5042 = vsel %vm5041, 1, 0
    %v5043 = vadd.s32 %v5039, %v5035
    %v5044 = vadd.s32 %v5040, %v5042
    %v5045 = vadd.s32 %v5044, %v5034
    %v5046 = vadd.s32 %v5045, %v5036
    %v5047 = vmul.u32 %v5002, %v4993
    %v5048 = vadd.s32 %v5024, %v5043
    %vm5049 = vc.u32 %v5024, %v5043
    %v5050 = vadd.s32 %v5046, 1
    %v5051 = vsel %vm5049, %v5050, %v5046
    %v5052 = vadd.s32 %v5047, %v5051
    %v5053 = vadd.s32 %v5052, 536870912
    %v5054 = vshrl.u32 %v5053, 30
    %v5055 = vshll.u32 %v5054, 30
    %v5056 = vsub.s32 %v5052, %v5055
    %vm5057 = vcmp.lt.s32.totalorder %v5056, 0
    %v5058 = vsub.s32 0, %v5056
    %v5059 = vsel %vm5057, %v5058, %v5056
    %v5060 = vclz %v5059
    %v5061 = vsub.s32 %v5060, 2
    %vm5062 = vcmp.gt.s32.totalorder 0, %v5061
    %v5063 = vsel %vm5062, 0, %v5061
    %v5064 = vsub.s32 32, %v5063
    %v5065 = vshll.u32 %v5056, %v5063
    %v5066 = vshrl.u32 %v5048, %v5064
    %v5067 = vor.u32 %v5065, %v5066
    %v5068 = vsub.s32 4294967266, %v5063
    %v5069 = vadd.s32 %v5068, 127
    %v5070 = vshll.u32 %v5069, 23
    %v5071 = vor.u32 4788187, %v5070
    %v5072 = vand.u32 2147483647, %v5071
    %v5074 = vcvt.s32.f32 %v5067
    %v5075 = vmul.f32 %v5074, %v5072
    %v5076 = vxor.u32 %v5075, 2147483648
    %v5077 = vsel %vm4956, %v5076, %v5075
    %v5078 = vsub.s32 4, %v5054
    %v5079 = vsel %vm4956, %v5078, %v5054
    %v5080 = vsel %vm4955, %v3872, %v5077
    %v5081 = vsel %vm4955, 0, %v5079
    %v5082 = vmul.f32 %v5080, %v5080
    %v5083 = vmul.f32 %v5082, -0.001358992
    %v5084 = vadd.f32 %v5083, 0.041655596
    %v5085 = vmul.f32 %v5082, %v5084
    %v5086 = vadd.f32 %v5085, -0.4999988
    %v5087 = vmul.f32 %v5082, %v5086
    %v5088 = vadd.f32 1.0, %v5087
    %v5089 = vmul.f32 %v5080, %v5080
    %v5090 = vmul.f32 %v5089, -0.00019511016
    %v5091 = vadd.f32 %v5090, 0.008332121
    %v5092 = vmul.f32 %v5089, %v5091
    %v5093 = vadd.f32 %v5092, -0.16666654
    %v5094 = vmul.f32 %v5089, %v5093
    %v5095 = vadd.f32 %v5094, 1.0
    %v5096 = vmul.f32 %v5095, %v5080
    %vm5097 = vweird.f32 %v3872
    %v5098 = vadd.s32 %v5081, 3
    %v5099 = vand.u32 %v5098, 3
    %vm5100 = vcmp.lt.s32.totalorder %v5099, 2
    %vm5101 = vcmp.eq.s32.totalorder %v5099, 0
    %v5102 = vxor.u32 %v5096, 2147483648
    %v5103 = vsel %vm5101, %v5088, %v5102
    %vm5104 = vcmp.eq.s32.totalorder %v5099, 2
    %v5105 = vxor.u32 %v5088, 2147483648
    %v5106 = vsel %vm5104, %v5105, %v5096
    %v5107 = vsel %vm5100, %v5103, %v5106
    %v5108 = vsel %vm5097, nan, %v5107
    %5113 = vrot.lane.b32.xlu0 %v4643, 4
    %v5114 = vpop.permute.xlu0 %5113
    %5115 = vrot.lane.b32.xlu0 %v4798, 4
    %v5116 = vpop.permute.xlu0 %5115
    %5117 = vrot.lane.b32.xlu0 %v4953, 4
    %v5118 = vpop.permute.xlu0 %5117
    %5119 = vrot.lane.b32.xlu0 %v5108, 4
    %v5120 = vpop.permute.xlu0 %5119
    %vm5125 = vcmask 31744
    %v5126 = vsel %vm5125, %v4026, %v5114
    %v5127 = vsel %vm5125, %v4180, %v5116
    %v5128 = vsel %vm5125, %v4334, %v5118
    %v5129 = vsel %vm5125, %v4488, %v5120
    %v5130 = vld [vmem:[%s6] sm:$0xff]
    %v5131 = vld [vmem:[%s7] sm:$0x1]
    %v5133 = vperm.slane %v5131, 0
    %vm5135 = vcmask 64512
    %v5137 = vsel %vm5135, %v5126, 0
    %v5140 = vsel %vm5135, %v5127, 0
    %v5143 = vsel %vm5135, %v5128, 0
    %v5146 = vsel %vm5135, %v5129, 0
    %5148 = vmatpush.msra.mxu0 0.0
    %5149 = vmatpush.msra.mxu0 0.0
    %5150 = vmatpush.msra.mxu0 0.0
    %5151 = vmatpush.msra.mxu0 0.0
    %5152 = vmatpush.msra.mxu0 0.0
    %5153 = vmatpush.msra.mxu0 0.0
    %5154 = vmatpush.msra.mxu0 0.0
    %5155 = vmatpush.msra.mxu0 0.0
    %5156 = vmatpush.msra.mxu0 0.0
    %5157 = vmatpush.msra.mxu0 0.0
    %5158 = vmatpush.msra.mxu0 0.0
    %5159 = vmatpush.msra.mxu0 0.0
    %5160 = vmatpush.msra.mxu0 0.0
    %5161 = vmatpush.msra.mxu0 0.0
    %5162 = vmatpush.msra.mxu0 0.0
    %5163 = vmatpush.msra.mxu0 %v5130
    %5164 = vmatmul.f32.gmra.mxu0 %v5137
    %v5165 = vpop.f32.mrf.mxu0
    %v5166 = vadd.f32 %v5133, %v5165
    %5167 = vmatmul.f32.gmra.mxu0 %v5140
    %v5168 = vpop.f32.mrf.mxu0
    %v5169 = vadd.f32 %v5133, %v5168
    %5170 = vmatmul.f32.gmra.mxu0 %v5143
    %v5171 = vpop.f32.mrf.mxu0
    %v5172 = vadd.f32 %v5133, %v5171
    %5173 = vmatmul.f32.gmra.mxu0 %v5146
    %v5174 = vpop.f32.mrf.mxu0
    %v5175 = vadd.f32 %v5133, %v5174
    %5176 = vdwg.mxu0
    %vm5177 = vcmask 23552
    %5178 = vst.msk [vmem:[%s8] sm:$0xff] %vm5177, %v5166
    %5179 = vst.msk [vmem:[%s8 + $0x8] sm:$0xff] %vm5177, %v5169
    %5180 = vst.msk [vmem:[%s8 + $0x10] sm:$0xff] %vm5177, %v5172
    %5181 = vst.msk [vmem:[%s8 + $0x18] sm:$0xff] %vm5177, %v5175
    // Predicated region
    $region38: #{tpu_custom_call.1} parent=1 // pred_check
      _
    $region39: #{tpu_custom_call.1} parent=1 // pred_check_branch
      %5183 = sbr.rel (0) target = $region41
    $region40: #{tpu_custom_call.1} parent=1 // pred_region
      _
    $region41: #{tpu_custom_call.1} parent=1 // pred_fallthru
      _
    // Predicated region
    $region42: #{tpu_custom_call.1} parent=1 // pred_check
      _
    $region43: #{tpu_custom_call.1} parent=1 // pred_check_branch
      %5185 = sbr.rel (0) target = $region45
    $region44: #{tpu_custom_call.1} parent=1 // pred_region
      _
    $region45: #{tpu_custom_call.1} parent=1 // pred_fallthru
      _
    %5186 = vsyncpa [#allocation3], 1

</llo_original>
